<compile_context>
chip_gen: v7x
topology: tpu7x:2x2x1
jax: 0.10.0
libtpu: 0.0.40
codegen_flags: <defaults>
</compile_context>

<pallas_src>
import functools

import jax
import jax.numpy as jnp
from jax.experimental import pallas as pl
from jax.experimental.pallas import tpu as pltpu


def _encoder_kernel(col_ref, w_ref, b_ref, lw_ref, lb_ref, o_ref, *, hw_chunk):
    """One grid step == (one view, one batch tile).

    col_ref: (Bt, HW, Kp)  bf16  — wrapper-side im2col, K zero-padded to Kp
    w_ref  : (Kp, D)       bf16  — 3x3xCxD conv kernel, (kh,kw,c) flattened, K-padded
    b_ref  : (1, D)        f32
    lw_ref : (D, OUT)      bf16  — linear weight with 1/(H*W) folded in
    lb_ref : (1, OUT)      f32
    o_ref  : (Bt, OUT)     f32
    """
    Bt, HW, Kp = col_ref.shape
    D = w_ref.shape[-1]

    w = w_ref[...]
    b = b_ref[...]

    # Streamed conv + bias + ReLU + spatial-sum epilogue: small static chunks
    # over the H*W axis keep the f32 activation tile small (no big acc
    # round-trip through VMEM); pooled accumulator is only (Bt, D) f32.
    pooled = jnp.zeros((Bt, D), jnp.float32)
    for s in range(0, HW, hw_chunk):
        colc = col_ref[:, s:s + hw_chunk, :].reshape(Bt * hw_chunk, Kp)
        acc = jnp.dot(colc, w, preferred_element_type=jnp.float32)
        acc = jnp.maximum(acc + b, 0.0)                       # bias + ReLU, f32
        pooled = pooled + jnp.sum(acc.reshape(Bt, hw_chunk, D), axis=1)

    # Mean scale is folded into lw in the wrapper, so pooled is a plain sum.
    out = jnp.dot(pooled.astype(lw_ref.dtype), lw_ref[...],
                  preferred_element_type=jnp.float32) + lb_ref[...]
    o_ref[...] = out.astype(o_ref.dtype)                      # lane-dense vst


def multiview_stack_forward(x, conv_w, conv_b, lin_w, lin_b, *, tile_b=64):
    """x: (..., V, C, H, W) -> reshape(*orig_shape[:-3], -1), matching torch.

    conv_w: (V, 3, 3, C, D)  conv_b: (V, D)
    lin_w : (V, D, OUT)      lin_b : (V, OUT)
    """
    orig_shape = x.shape
    V, C, H, W = x.shape[-4:]
    x = x.reshape((-1, V, C, H, W))                    # '(...) V C H W'
    B = x.shape[0]
    D = conv_w.shape[-1]
    OUT = lin_w.shape[-1]
    HW = H * W
    K = 9 * C
    Kp = max(128, ((K + 127) // 128) * 128)            # pad K to lane width

    # Clamp tile_b so tiny batches don't over-pad; keep it a multiple of 8.
    tile_b = max(8, min(tile_b, ((B + 7) // 8) * 8))
    pad_b = (-B) % tile_b
    Bp = B + pad_b

    # bf16 early so the wrapper transpose/pad/im2col move half the bytes.
    xb = x.astype(jnp.bfloat16)
    xv = jnp.transpose(xb, (1, 0, 3, 4, 2))            # (V, B, H, W, C)
    xv = jnp.pad(xv, ((0, 0), (0, 0), (1, 1), (1, 1), (0, 0)))

    # Wrapper-side im2col: (V, B, H, W, 9*C) in (kh, kw, c) order, matching
    # conv_w.reshape(V, 9*C, D); then pad K up to Kp and batch up to Bp.
    patches = [xv[:, :, kh:kh + H, kw:kw + W, :]
               for kh in range(3) for kw in range(3)]
    col = jnp.concatenate(patches, axis=-1).reshape(V, B, HW, K)
    col = jnp.pad(col, ((0, 0), (0, pad_b), (0, 0), (0, Kp - K)))

    w2 = jnp.pad(conv_w.reshape(V, K, D).astype(jnp.bfloat16),
                 ((0, 0), (0, Kp - K), (0, 0)))                     # (V, Kp, D)
    cb = conv_b.reshape(V, 1, D).astype(jnp.float32)
    lw = (lin_w.astype(jnp.float32) * (1.0 / HW)).astype(jnp.bfloat16)
    lb = lin_b.reshape(V, 1, OUT).astype(jnp.float32)

    # Static epilogue chunk over H*W (multiple of the bf16 sublane tile).
    hw_chunk = HW
    for cand in (64, 32, 16):
        if HW % cand == 0:
            hw_chunk = cand
            break

    kernel = functools.partial(_encoder_kernel, hw_chunk=hw_chunk)

    out = pl.pallas_call(
        kernel,
        out_shape=jax.ShapeDtypeStruct((V, Bp, OUT), jnp.float32),
        grid_spec=pltpu.PrefetchScalarGridSpec(
            num_scalar_prefetch=0,
            grid=(V, Bp // tile_b),                    # batch innermost: per-view
            in_specs=[                                 # weights stay VMEM-resident
                pl.BlockSpec((None, tile_b, HW, Kp), lambda v, b: (v, b, 0, 0)),
                pl.BlockSpec((None, Kp, D), lambda v, b: (v, 0, 0)),
                pl.BlockSpec((None, 1, D), lambda v, b: (v, 0, 0)),
                pl.BlockSpec((None, D, OUT), lambda v, b: (v, 0, 0)),
                pl.BlockSpec((None, 1, OUT), lambda v, b: (v, 0, 0)),
            ],
            out_specs=pl.BlockSpec((None, tile_b, OUT), lambda v, b: (v, b, 0)),
        ),
        compiler_params=pltpu.CompilerParams(
            dimension_semantics=("parallel", "parallel"),
            vmem_limit_bytes=32 * 1024 * 1024),
    )(col, w2, cb, lw, lb)                             # (V, Bp, OUT) f32

    out = out[:, :B]                                   # drop padded batch rows
    # torch.stack(outputs, dim=-1) -> (B, OUT, V); then the module's exact
    # reshape(*orig_shape[:-3], -1) (same row-major flat ordering).
    stacked = jnp.transpose(out, (1, 2, 0))            # (B, OUT, V)
    return stacked.reshape(orig_shape[:-3] + (-1,))


def _reference_forward(x, conv_w, conv_b, lin_w, lin_b):
    """Pure-JAX reference matching the kernel numerics (bf16 MXU, f32 acc)."""
    orig_shape = x.shape
    V, C, H, W = x.shape[-4:]
    xb = x.reshape((-1, V, C, H, W))
    HW = H * W
    lw_scaled = (lin_w.astype(jnp.float32) * (1.0 / HW)).astype(jnp.bfloat16)
    outs = []
    for v in range(V):
        xv = jnp.transpose(xb[:, v], (0, 2, 3, 1)).astype(jnp.bfloat16)
        y = jax.lax.conv_general_dilated(
            xv, conv_w[v].astype(jnp.bfloat16),
            window_strides=(1, 1), padding="SAME",
            dimension_numbers=("NHWC", "HWIO", "NHWC"),
            preferred_element_type=jnp.float32)
        y = jnp.maximum(y + conv_b[v].reshape(1, 1, 1, -1), 0.0)
        summed = jnp.sum(y, axis=(1, 2))                      # f32 spatial sum
        outs.append(jnp.dot(summed.astype(jnp.bfloat16), lw_scaled[v],
                            preferred_element_type=jnp.float32)
                    + lin_b[v].reshape(1, -1))
    stacked = jnp.stack(outs, axis=-1)                        # (B, OUT, V)
    return stacked.reshape(orig_shape[:-3] + (-1,))


if __name__ == "__main__":
    # Small deterministic setup: batch=16, V=2 views, C=4, H=W=16,
    # encoder hidden D=128, per-view output_dim OUT=128 (lane-dense).
    B, V, C, H, W = 16, 2, 4, 16, 16
    D, OUT = 128, 128

    key = jax.random.PRNGKey(0)
    kx, kw, kb, klw, klb = jax.random.split(key, 5)

    x = jax.random.normal(kx, (B, V, C, H, W), dtype=jnp.float32)
    conv_w = jax.random.normal(kw, (V, 3, 3, C, D), dtype=jnp.float32) * 0.1
    conv_b = jax.random.normal(kb, (V, D), dtype=jnp.float32) * 0.1
    lin_w = jax.random.normal(klw, (V, D, OUT), dtype=jnp.float32) * 0.1
    lin_b = jax.random.normal(klb, (V, OUT), dtype=jnp.float32) * 0.1

    fwd = jax.jit(multiview_stack_forward)
    out = jax.block_until_ready(fwd(x, conv_w, conv_b, lin_w, lin_b))

    ref = _reference_forward(x, conv_w, conv_b, lin_w, lin_b)
    assert out.shape == (B, V, OUT), out.shape
    max_err = float(jnp.max(jnp.abs(out - ref)))
    assert jnp.allclose(out, ref, atol=2e-2, rtol=2e-2), max_err

    print("KERNEL_OK")
</pallas_src>

<mosaic_0001>
module attributes {stable_mosaic.version = 11 : i64} {
  func.func @_encoder_kernel(%arg0: i32, %arg1: i32, %arg2: memref<1x16x256x128xbf16, #tpu.memory_space<vmem>>, %arg3: memref<1x128x128xbf16, #tpu.memory_space<vmem>>, %arg4: memref<1x1x128xf32, #tpu.memory_space<vmem>>, %arg5: memref<1x128x128xbf16, #tpu.memory_space<vmem>>, %arg6: memref<1x1x128xf32, #tpu.memory_space<vmem>>, %arg7: memref<1x16x128xf32, #tpu.memory_space<vmem>>) attributes {dimension_semantics = [#tpu.dimension_semantics<parallel>, #tpu.dimension_semantics<parallel>], iteration_bounds = array<i64: 2, 1>, scalar_prefetch = 0 : i64, scratch_operands = 0 : i64, tpu.core_type = #tpu.core_type<tc>, window_params = [{transform_indices = @transform_0, window_bounds = array<i64: 1, 16, 256, 128>}, {transform_indices = @transform_1, window_bounds = array<i64: 1, 128, 128>}, {transform_indices = @transform_2, window_bounds = array<i64: 1, 1, 128>}, {transform_indices = @transform_3, window_bounds = array<i64: 1, 128, 128>}, {transform_indices = @transform_4, window_bounds = array<i64: 1, 1, 128>}, {transform_indices = @transform_5, window_bounds = array<i64: 1, 16, 128>}]} {
    %c0 = arith.constant 0 : index
    %c0_0 = arith.constant 0 : index
    %c0_1 = arith.constant 0 : index
    %0 = vector.load %arg3[%c0, %c0_0, %c0_1] : memref<1x128x128xbf16, #tpu.memory_space<vmem>>, vector<1x128x128xbf16>
    %1 = vector.shape_cast %0 : vector<1x128x128xbf16> to vector<128x128xbf16>
    %c0_2 = arith.constant 0 : index
    %c0_3 = arith.constant 0 : index
    %c0_4 = arith.constant 0 : index
    %2 = vector.load %arg4[%c0_2, %c0_3, %c0_4] : memref<1x1x128xf32, #tpu.memory_space<vmem>>, vector<1x1x128xf32>
    %3 = vector.shape_cast %2 : vector<1x1x128xf32> to vector<1x128xf32>
    %cst = arith.constant 0.000000e+00 : f32
    %4 = vector.broadcast %cst : f32 to vector<16x128xf32>
    %c0_5 = arith.constant 0 : index
    %c0_6 = arith.constant 0 : index
    %c0_7 = arith.constant 0 : index
    %c0_8 = arith.constant 0 : index
    %5 = vector.load %arg2[%c0_5, %c0_6, %c0_7, %c0_8] : memref<1x16x256x128xbf16, #tpu.memory_space<vmem>>, vector<1x16x64x128xbf16>
    %6 = vector.shape_cast %5 : vector<1x16x64x128xbf16> to vector<16x64x128xbf16>
    %7 = vector.shape_cast %6 : vector<16x64x128xbf16> to vector<1024x128xbf16>
    %cst_9 = arith.constant dense<0.000000e+00> : vector<1024x128xf32>
    %8 = tpu.matmul %7, %1, %cst_9 {dimension_numbers = #tpu.dot_dimension_numbers<[1], [0], [0], [1], [0, 0, 1, 1], [], []>} : vector<1024x128xbf16>, vector<128x128xbf16>, vector<1024x128xf32> -> vector<1024x128xf32>
    %9 = vector.broadcast %3 : vector<1x128xf32> to vector<1024x128xf32>
    %10 = arith.addf %8, %9 : vector<1024x128xf32>
    %cst_10 = arith.constant 0.000000e+00 : f32
    %11 = vector.broadcast %cst_10 : f32 to vector<1024x128xf32>
    %12 = arith.maximumf %10, %11 : vector<1024x128xf32>
    %13 = vector.shape_cast %12 : vector<1024x128xf32> to vector<16x64x128xf32>
    %cst_11 = arith.constant dense<0.000000e+00> : vector<16x128xf32>
    %14 = vector.multi_reduction <add>, %13, %cst_11 [1] : vector<16x64x128xf32> to vector<16x128xf32>
    %15 = arith.addf %4, %14 : vector<16x128xf32>
    %c0_12 = arith.constant 0 : index
    %c0_13 = arith.constant 0 : index
    %c64 = arith.constant 64 : index
    %c0_14 = arith.constant 0 : index
    %16 = vector.load %arg2[%c0_12, %c0_13, %c64, %c0_14] : memref<1x16x256x128xbf16, #tpu.memory_space<vmem>>, vector<1x16x64x128xbf16>
    %17 = vector.shape_cast %16 : vector<1x16x64x128xbf16> to vector<16x64x128xbf16>
    %18 = vector.shape_cast %17 : vector<16x64x128xbf16> to vector<1024x128xbf16>
    %cst_15 = arith.constant dense<0.000000e+00> : vector<1024x128xf32>
    %19 = tpu.matmul %18, %1, %cst_15 {dimension_numbers = #tpu.dot_dimension_numbers<[1], [0], [0], [1], [0, 0, 1, 1], [], []>} : vector<1024x128xbf16>, vector<128x128xbf16>, vector<1024x128xf32> -> vector<1024x128xf32>
    %20 = vector.broadcast %3 : vector<1x128xf32> to vector<1024x128xf32>
    %21 = arith.addf %19, %20 : vector<1024x128xf32>
    %cst_16 = arith.constant 0.000000e+00 : f32
    %22 = vector.broadcast %cst_16 : f32 to vector<1024x128xf32>
    %23 = arith.maximumf %21, %22 : vector<1024x128xf32>
    %24 = vector.shape_cast %23 : vector<1024x128xf32> to vector<16x64x128xf32>
    %cst_17 = arith.constant dense<0.000000e+00> : vector<16x128xf32>
    %25 = vector.multi_reduction <add>, %24, %cst_17 [1] : vector<16x64x128xf32> to vector<16x128xf32>
    %26 = arith.addf %15, %25 : vector<16x128xf32>
    %c0_18 = arith.constant 0 : index
    %c0_19 = arith.constant 0 : index
    %c128 = arith.constant 128 : index
    %c0_20 = arith.constant 0 : index
    %27 = vector.load %arg2[%c0_18, %c0_19, %c128, %c0_20] : memref<1x16x256x128xbf16, #tpu.memory_space<vmem>>, vector<1x16x64x128xbf16>
    %28 = vector.shape_cast %27 : vector<1x16x64x128xbf16> to vector<16x64x128xbf16>
    %29 = vector.shape_cast %28 : vector<16x64x128xbf16> to vector<1024x128xbf16>
    %cst_21 = arith.constant dense<0.000000e+00> : vector<1024x128xf32>
    %30 = tpu.matmul %29, %1, %cst_21 {dimension_numbers = #tpu.dot_dimension_numbers<[1], [0], [0], [1], [0, 0, 1, 1], [], []>} : vector<1024x128xbf16>, vector<128x128xbf16>, vector<1024x128xf32> -> vector<1024x128xf32>
    %31 = vector.broadcast %3 : vector<1x128xf32> to vector<1024x128xf32>
    %32 = arith.addf %30, %31 : vector<1024x128xf32>
    %cst_22 = arith.constant 0.000000e+00 : f32
    %33 = vector.broadcast %cst_22 : f32 to vector<1024x128xf32>
    %34 = arith.maximumf %32, %33 : vector<1024x128xf32>
    %35 = vector.shape_cast %34 : vector<1024x128xf32> to vector<16x64x128xf32>
    %cst_23 = arith.constant dense<0.000000e+00> : vector<16x128xf32>
    %36 = vector.multi_reduction <add>, %35, %cst_23 [1] : vector<16x64x128xf32> to vector<16x128xf32>
    %37 = arith.addf %26, %36 : vector<16x128xf32>
    %c0_24 = arith.constant 0 : index
    %c0_25 = arith.constant 0 : index
    %c192 = arith.constant 192 : index
    %c0_26 = arith.constant 0 : index
    %38 = vector.load %arg2[%c0_24, %c0_25, %c192, %c0_26] : memref<1x16x256x128xbf16, #tpu.memory_space<vmem>>, vector<1x16x64x128xbf16>
    %39 = vector.shape_cast %38 : vector<1x16x64x128xbf16> to vector<16x64x128xbf16>
    %40 = vector.shape_cast %39 : vector<16x64x128xbf16> to vector<1024x128xbf16>
    %cst_27 = arith.constant dense<0.000000e+00> : vector<1024x128xf32>
    %41 = tpu.matmul %40, %1, %cst_27 {dimension_numbers = #tpu.dot_dimension_numbers<[1], [0], [0], [1], [0, 0, 1, 1], [], []>} : vector<1024x128xbf16>, vector<128x128xbf16>, vector<1024x128xf32> -> vector<1024x128xf32>
    %42 = vector.broadcast %3 : vector<1x128xf32> to vector<1024x128xf32>
    %43 = arith.addf %41, %42 : vector<1024x128xf32>
    %cst_28 = arith.constant 0.000000e+00 : f32
    %44 = vector.broadcast %cst_28 : f32 to vector<1024x128xf32>
    %45 = arith.maximumf %43, %44 : vector<1024x128xf32>
    %46 = vector.shape_cast %45 : vector<1024x128xf32> to vector<16x64x128xf32>
    %cst_29 = arith.constant dense<0.000000e+00> : vector<16x128xf32>
    %47 = vector.multi_reduction <add>, %46, %cst_29 [1] : vector<16x64x128xf32> to vector<16x128xf32>
    %48 = arith.addf %37, %47 : vector<16x128xf32>
    %49 = arith.truncf %48 : vector<16x128xf32> to vector<16x128xbf16>
    %c0_30 = arith.constant 0 : index
    %c0_31 = arith.constant 0 : index
    %c0_32 = arith.constant 0 : index
    %50 = vector.load %arg5[%c0_30, %c0_31, %c0_32] : memref<1x128x128xbf16, #tpu.memory_space<vmem>>, vector<1x128x128xbf16>
    %51 = vector.shape_cast %50 : vector<1x128x128xbf16> to vector<128x128xbf16>
    %cst_33 = arith.constant dense<0.000000e+00> : vector<16x128xf32>
    %52 = tpu.matmul %49, %51, %cst_33 {dimension_numbers = #tpu.dot_dimension_numbers<[1], [0], [0], [1], [0, 0, 1, 1], [], []>} : vector<16x128xbf16>, vector<128x128xbf16>, vector<16x128xf32> -> vector<16x128xf32>
    %c0_34 = arith.constant 0 : index
    %c0_35 = arith.constant 0 : index
    %c0_36 = arith.constant 0 : index
    %53 = vector.load %arg6[%c0_34, %c0_35, %c0_36] : memref<1x1x128xf32, #tpu.memory_space<vmem>>, vector<1x1x128xf32>
    %54 = vector.shape_cast %53 : vector<1x1x128xf32> to vector<1x128xf32>
    %55 = vector.broadcast %54 : vector<1x128xf32> to vector<16x128xf32>
    %56 = arith.addf %52, %55 : vector<16x128xf32>
    %c0_37 = arith.constant 0 : index
    %c0_38 = arith.constant 0 : index
    %c0_39 = arith.constant 0 : index
    %57 = vector.load %arg7[%c0_37, %c0_38, %c0_39] : memref<1x16x128xf32, #tpu.memory_space<vmem>>, vector<1x16x128xf32>
    %58 = vector.shape_cast %57 : vector<1x16x128xf32> to vector<16x128xf32>
    %59 = vector.shape_cast %56 : vector<16x128xf32> to vector<1x16x128xf32>
    tpu.vector_store %arg7[%c0_37, %c0_38, %c0_39], %59 {strides = array<i32>} : memref<1x16x128xf32, #tpu.memory_space<vmem>>, vector<1x16x128xf32>,
    return
  }
  func.func @transform_0(%arg0: i32, %arg1: i32) -> (i32, i32, i32, i32) {
    %c0_i32 = arith.constant 0 : i32
    %c0_i32_0 = arith.constant 0 : i32
    %c0_i32_1 = arith.constant 0 : i32
    return %arg0, %arg1, %c0_i32, %c0_i32_0 : i32, i32, i32, i32
  }
  func.func @transform_1(%arg0: i32, %arg1: i32) -> (i32, i32, i32) {
    %c0_i32 = arith.constant 0 : i32
    %c0_i32_0 = arith.constant 0 : i32
    %c0_i32_1 = arith.constant 0 : i32
    return %arg0, %c0_i32, %c0_i32_0 : i32, i32, i32
  }
  func.func @transform_2(%arg0: i32, %arg1: i32) -> (i32, i32, i32) {
    %c0_i32 = arith.constant 0 : i32
    %c0_i32_0 = arith.constant 0 : i32
    %c0_i32_1 = arith.constant 0 : i32
    return %arg0, %c0_i32, %c0_i32_0 : i32, i32, i32
  }
  func.func @transform_3(%arg0: i32, %arg1: i32) -> (i32, i32, i32) {
    %c0_i32 = arith.constant 0 : i32
    %c0_i32_0 = arith.constant 0 : i32
    %c0_i32_1 = arith.constant 0 : i32
    return %arg0, %c0_i32, %c0_i32_0 : i32, i32, i32
  }
  func.func @transform_4(%arg0: i32, %arg1: i32) -> (i32, i32, i32) {
    %c0_i32 = arith.constant 0 : i32
    %c0_i32_0 = arith.constant 0 : i32
    %c0_i32_1 = arith.constant 0 : i32
    return %arg0, %c0_i32, %c0_i32_0 : i32, i32, i32
  }
  func.func @transform_5(%arg0: i32, %arg1: i32) -> (i32, i32, i32) {
    %c0_i32 = arith.constant 0 : i32
    %c0_i32_0 = arith.constant 0 : i32
    return %arg0, %arg1, %c0_i32 : i32, i32, i32
  }
}

</mosaic_0001>

<llo_original>
// kernel: multiview_stack_forward.1
$region0: #{multiview_stack_forward.1}
  #allocation0 [shape = 'u32[]', space=smem, size = 0x4, offset = 0x4, fixed_abs, tag = 'smem constant byte address 0x4 - core index']
  #allocation1 [shape = 'u32[144,128]{1,0:T(1,128)}', space=vmem, size = 0x12000, scoped, tag = 'internal scratch']
  %s0 = inlined_call_operand.vmem [shape: bf16[2,16,256,128], index: 0, kind: input, shape index: {}]
  %s1 = inlined_call_operand.vmem [shape: bf16[2,128,128], index: 1, kind: input, shape index: {}]
  %s2 = inlined_call_operand.vmem [shape: f32[2,1,128], index: 2, kind: input, shape index: {}]
  %s3 = inlined_call_operand.vmem [shape: bf16[2,128,128], index: 3, kind: input, shape index: {}]
  %s4 = inlined_call_operand.vmem [shape: f32[2,1,128], index: 4, kind: input, shape index: {}]
  %s5 = inlined_call_operand.vmem [shape: f32[2,16,128], index: 5, kind: output, shape index: {}]
  %s6 = sld [smem:[#allocation0]]
  $region53: #{multiview_stack_forward.1} parent=0
    _
  %s8 = ssub.s32 1, %s6
  %s9 = scalar_select 0, %s8, %s6
  loop: start=0, step=1, limit=4
  $region2: #{multiview_stack_forward.1} parent=0 // loop_pre_header
    _
  $region3: #{multiview_stack_forward.1} parent=0 // loop_header
    %s11 = sphi 0, %s15
    %p12 = scmp.ge.s32.totalorder %s11, 4
    %s18 = sphi 0, %s30
    %s19 = sphi 0, %s26
    %s20 = sphi 0, %s18
    %s21 = sphi 0, %s19
    %s22 = sphi 0, %s20
    %s23 = sphi 0, %s21
    %s35 = sphi 0, %s37
    %s38 = sphi 0, %s35
    %s39 = sphi 0, %s38
    %s55 = sphi 0, %s39
    %s61 = sphi 0, %s63
    %s64 = sphi 0, %s61
    %s65 = sphi 0, %s64
    %s81 = sphi 0, %s65
    %s87 = sphi 0, %s89
    %s90 = sphi 0, %s87
    %s91 = sphi 0, %s90
    %s107 = sphi 0, %s91
    %s113 = sphi 0, %s115
    %s116 = sphi 0, %s113
    %s117 = sphi 0, %s116
    %s133 = sphi 0, %s117
    %s139 = sphi 0, %s141
    %s142 = sphi 0, %s139
    %s143 = sphi 0, %s142
    %s159 = sphi 0, %s143
    %s167 = sphi 0, %s169
    %s170 = sphi 0, %s167
    %s171 = sphi 0, %s170
    %s187 = sphi 0, %s171
  $region4: #{multiview_stack_forward.1} parent=0 // loop_header_branch
    %14 = sbr.rel (%p12) target = $region8
  $region5: #{multiview_stack_forward.1} parent=0 // loop_body
    %s16 = ssub.s32 %s11, 1
    %s17 = ssub.s32 %s11, 2
    %s24 = sadd.s32 1, %s19
    %p25 = scmp.ge.s32.totalorder %s24, 1
    %s26 = scalar_select %p25, 0, %s24
    %s27 = sadd.s32 1, %s18
    %s28 = scalar_select %p25, %s27, %s18
    %p29 = scmp.ge.s32.totalorder %s28, 2
    %s30 = scalar_select %p29, 0, %s28
    %s31 = ssub.s32 %s18, %s30
    %s32 = ssub.s32 %s19, %s26
    %s33 = sor.u32 %s31, %s32
    %p34 = scmp.eq.s32.totalorder %s33, 0
    %s36 = sadd.s32 %s35, 1
    %s37 = scalar_select %p34, %s35, %s36
    %p40 = pneg %p34
    %p41 = scmp.eq.s32.totalorder %s11, 1
    %p42 = por %p40, %p41
    %p43 = scmp.ne.s32.totalorder %s35, %s38
    %p44 = scmp.eq.s32.totalorder %s11, 0
    %p45 = por %p43, %p44
    %p46 = scmp.ne.s32.totalorder %s35, %s38
    %p47 = scmp.eq.s32.totalorder %s16, 1
    %p48 = por %p46, %p47
    %p49 = scmp.ne.s32.totalorder %s38, %s39
    %p50 = scmp.eq.s32.totalorder %s16, 0
    %p51 = por %p49, %p50
    %p52 = scmp.ne.s32.totalorder %s38, %s39
    %p53 = scmp.eq.s32.totalorder %s17, 1
    %p54 = por %p52, %p53
    %p56 = scmp.ne.s32.totalorder %s39, %s55
    %p57 = scmp.eq.s32.totalorder %s17, 0
    %p58 = por %p56, %p57
    %s59 = ssub.s32 %s18, %s30
    %p60 = scmp.eq.s32.totalorder %s59, 0
    %s62 = sadd.s32 %s61, 1
    %s63 = scalar_select %p60, %s61, %s62
    %p66 = pneg %p60
    %p67 = scmp.eq.s32.totalorder %s11, 1
    %p68 = por %p66, %p67
    %p69 = scmp.ne.s32.totalorder %s61, %s64
    %p70 = scmp.eq.s32.totalorder %s11, 0
    %p71 = por %p69, %p70
    %p72 = scmp.ne.s32.totalorder %s61, %s64
    %p73 = scmp.eq.s32.totalorder %s16, 1
    %p74 = por %p72, %p73
    %p75 = scmp.ne.s32.totalorder %s64, %s65
    %p76 = scmp.eq.s32.totalorder %s16, 0
    %p77 = por %p75, %p76
    %p78 = scmp.ne.s32.totalorder %s64, %s65
    %p79 = scmp.eq.s32.totalorder %s17, 1
    %p80 = por %p78, %p79
    %p82 = scmp.ne.s32.totalorder %s65, %s81
    %p83 = scmp.eq.s32.totalorder %s17, 0
    %p84 = por %p82, %p83
    %s85 = ssub.s32 %s18, %s30
    %p86 = scmp.eq.s32.totalorder %s85, 0
    %s88 = sadd.s32 %s87, 1
    %s89 = scalar_select %p86, %s87, %s88
    %p92 = pneg %p86
    %p93 = scmp.eq.s32.totalorder %s11, 1
    %p94 = por %p92, %p93
    %p95 = scmp.ne.s32.totalorder %s87, %s90
    %p96 = scmp.eq.s32.totalorder %s11, 0
    %p97 = por %p95, %p96
    %p98 = scmp.ne.s32.totalorder %s87, %s90
    %p99 = scmp.eq.s32.totalorder %s16, 1
    %p100 = por %p98, %p99
    %p101 = scmp.ne.s32.totalorder %s90, %s91
    %p102 = scmp.eq.s32.totalorder %s16, 0
    %p103 = por %p101, %p102
    %p104 = scmp.ne.s32.totalorder %s90, %s91
    %p105 = scmp.eq.s32.totalorder %s17, 1
    %p106 = por %p104, %p105
    %p108 = scmp.ne.s32.totalorder %s91, %s107
    %p109 = scmp.eq.s32.totalorder %s17, 0
    %p110 = por %p108, %p109
    %s111 = ssub.s32 %s18, %s30
    %p112 = scmp.eq.s32.totalorder %s111, 0
    %s114 = sadd.s32 %s113, 1
    %s115 = scalar_select %p112, %s113, %s114
    %p118 = pneg %p112
    %p119 = scmp.eq.s32.totalorder %s11, 1
    %p120 = por %p118, %p119
    %p121 = scmp.ne.s32.totalorder %s113, %s116
    %p122 = scmp.eq.s32.totalorder %s11, 0
    %p123 = por %p121, %p122
    %p124 = scmp.ne.s32.totalorder %s113, %s116
    %p125 = scmp.eq.s32.totalorder %s16, 1
    %p126 = por %p124, %p125
    %p127 = scmp.ne.s32.totalorder %s116, %s117
    %p128 = scmp.eq.s32.totalorder %s16, 0
    %p129 = por %p127, %p128
    %p130 = scmp.ne.s32.totalorder %s116, %s117
    %p131 = scmp.eq.s32.totalorder %s17, 1
    %p132 = por %p130, %p131
    %p134 = scmp.ne.s32.totalorder %s117, %s133
    %p135 = scmp.eq.s32.totalorder %s17, 0
    %p136 = por %p134, %p135
    %s137 = ssub.s32 %s18, %s30
    %p138 = scmp.eq.s32.totalorder %s137, 0
    %s140 = sadd.s32 %s139, 1
    %s141 = scalar_select %p138, %s139, %s140
    %p144 = pneg %p138
    %p145 = scmp.eq.s32.totalorder %s11, 1
    %p146 = por %p144, %p145
    %p147 = scmp.ne.s32.totalorder %s139, %s142
    %p148 = scmp.eq.s32.totalorder %s11, 0
    %p149 = por %p147, %p148
    %p150 = scmp.ne.s32.totalorder %s139, %s142
    %p151 = scmp.eq.s32.totalorder %s16, 1
    %p152 = por %p150, %p151
    %p153 = scmp.ne.s32.totalorder %s142, %s143
    %p154 = scmp.eq.s32.totalorder %s16, 0
    %p155 = por %p153, %p154
    %p156 = scmp.ne.s32.totalorder %s142, %s143
    %p157 = scmp.eq.s32.totalorder %s17, 1
    %p158 = por %p156, %p157
    %p160 = scmp.ne.s32.totalorder %s143, %s159
    %p161 = scmp.eq.s32.totalorder %s17, 0
    %p162 = por %p160, %p161
    %s163 = ssub.s32 %s18, %s30
    %s164 = ssub.s32 %s19, %s26
    %s165 = sor.u32 %s163, %s164
    %p166 = scmp.eq.s32.totalorder %s165, 0
    %s168 = sadd.s32 %s167, 1
    %s169 = scalar_select %p166, %s167, %s168
    %p172 = pneg %p166
    %p173 = scmp.eq.s32.totalorder %s11, 1
    %p174 = por %p172, %p173
    %p175 = scmp.ne.s32.totalorder %s167, %s170
    %p176 = scmp.eq.s32.totalorder %s11, 0
    %p177 = por %p175, %p176
    %p178 = scmp.ne.s32.totalorder %s167, %s170
    %p179 = scmp.eq.s32.totalorder %s16, 1
    %p180 = por %p178, %p179
    %p181 = scmp.ne.s32.totalorder %s170, %s171
    %p182 = scmp.eq.s32.totalorder %s16, 0
    %p183 = por %p181, %p182
    %p184 = scmp.ne.s32.totalorder %s170, %s171
    %p185 = scmp.eq.s32.totalorder %s17, 1
    %p186 = por %p184, %p185
    %p188 = scmp.ne.s32.totalorder %s171, %s187
    %p189 = scmp.eq.s32.totalorder %s17, 0
    %p190 = por %p188, %p189
    %p191 = scmp.le.s32.totalorder 1, %s11
    %p192 = scmp.lt.s32.totalorder %s11, 3
    %p193 = pnand %p191, %p192
    %p194 = pneg %p193
    // Predicated region
    $region9: #{multiview_stack_forward.1} parent=5 // pred_check
      _
    $region10: #{multiview_stack_forward.1} parent=5 // pred_check_branch
      %196 = sbr.rel (%p193) target = $region12
    $region11: #{multiview_stack_forward.1} parent=5 // pred_region
      %s197 = ssub.s32 %s11, 1
    $region12: #{multiview_stack_forward.1} parent=5 // pred_fallthru
      _
    %p198 = scmp.lt.s32.totalorder %s11, 2
    // Predicated region
    $region13: #{multiview_stack_forward.1} parent=5 // pred_check
      %p199 = pneg %p198
    $region14: #{multiview_stack_forward.1} parent=5 // pred_check_branch
      %201 = sbr.rel (%p199) target = $region16
    $region15: #{multiview_stack_forward.1} parent=5 // pred_region
      // Predicated region
      $region17: #{multiview_stack_forward.1} parent=15 // pred_check
        %p202 = pneg %p45
      $region18: #{multiview_stack_forward.1} parent=15 // pred_check_branch
        %204 = sbr.rel (%p202) target = $region20
      $region19: #{multiview_stack_forward.1} parent=15 // pred_region
        %s205 = smul.u32 16, %s19
        %p206 = scmp.lt.s32.totalorder %s18, 1
        %s207 = scalar_select %p206, %s18, 1
        %p208 = scmp.lt.s32.totalorder %s205, 15
        %s209 = scalar_select %p208, %s205, 15
        %s210 = smul.addr %s209, 32
        %s211 = smul.addr %s207, 512
        %s212 = sadd.s32 %s210, %s211
        %s213 = smul.addr %s212, 4
        %s214 = scalar_lea.vmem %s0, %s213
        %s215 = smul.u32 16, %s19
      $region20: #{multiview_stack_forward.1} parent=15 // pred_fallthru
        _
      // Predicated region
      $region21: #{multiview_stack_forward.1} parent=15 // pred_check
        %p216 = pneg %p71
      $region22: #{multiview_stack_forward.1} parent=15 // pred_check_branch
        %218 = sbr.rel (%p216) target = $region24
      $region23: #{multiview_stack_forward.1} parent=15 // pred_region
        %p219 = scmp.lt.s32.totalorder %s18, 1
        %s220 = scalar_select %p219, %s18, 1
        %s221 = smul.addr %s220, 16
        %s222 = smul.addr %s221, 4
        %s223 = scalar_lea.vmem %s1, %s222
      $region24: #{multiview_stack_forward.1} parent=15 // pred_fallthru
        _
      // Predicated region
      $region25: #{multiview_stack_forward.1} parent=15 // pred_check
        %p224 = pneg %p97
      $region26: #{multiview_stack_forward.1} parent=15 // pred_check_branch
        %226 = sbr.rel (%p224) target = $region28
      $region27: #{multiview_stack_forward.1} parent=15 // pred_region
        %p227 = scmp.lt.s32.totalorder %s18, 1
        %s228 = scalar_select %p227, %s18, 1
        %s229 = scalar_lea.vmem %s2, %s228
      $region28: #{multiview_stack_forward.1} parent=15 // pred_fallthru
        _
      // Predicated region
      $region29: #{multiview_stack_forward.1} parent=15 // pred_check
        %p230 = pneg %p123
      $region30: #{multiview_stack_forward.1} parent=15 // pred_check_branch
        %232 = sbr.rel (%p230) target = $region32
      $region31: #{multiview_stack_forward.1} parent=15 // pred_region
        %p233 = scmp.lt.s32.totalorder %s18, 1
        %s234 = scalar_select %p233, %s18, 1
        %s235 = smul.addr %s234, 16
        %s236 = smul.addr %s235, 4
        %s237 = scalar_lea.vmem %s3, %s236
      $region32: #{multiview_stack_forward.1} parent=15 // pred_fallthru
        _
      // Predicated region
      $region33: #{multiview_stack_forward.1} parent=15 // pred_check
        %p238 = pneg %p149
      $region34: #{multiview_stack_forward.1} parent=15 // pred_check_branch
        %240 = sbr.rel (%p238) target = $region36
      $region35: #{multiview_stack_forward.1} parent=15 // pred_region
        %p241 = scmp.lt.s32.totalorder %s18, 1
        %s242 = scalar_select %p241, %s18, 1
        %s243 = scalar_lea.vmem %s4, %s242
      $region36: #{multiview_stack_forward.1} parent=15 // pred_fallthru
        _
    $region16: #{multiview_stack_forward.1} parent=5 // pred_fallthru
      _
    %p244 = scmp.le.s32.totalorder 1, %s11
    %p245 = scmp.lt.s32.totalorder %s11, 3
    %p246 = pnand %p244, %p245
    %p247 = pneg %p246
    // Predicated region
    $region37: #{multiview_stack_forward.1} parent=5 // pred_check
      _
    $region38: #{multiview_stack_forward.1} parent=5 // pred_check_branch
      %249 = sbr.rel (%p246) target = $region40
    $region39: #{multiview_stack_forward.1} parent=5 // pred_region
      %s250 = ssub.s32 %s11, 1
      %s251 = smul.u32 16, %s21
      %p252 = scmp.lt.s32.totalorder %s20, 1
      %s253 = scalar_select %p252, %s20, 1
      %p254 = scmp.lt.s32.totalorder %s251, 15
      %s255 = scalar_select %p254, %s251, 15
      %s256 = smul.addr %s255, 32
      %s257 = smul.addr %s253, 512
      %s258 = sadd.s32 %s256, %s257
      %s259 = smul.addr %s258, 4
      %s260 = scalar_lea.vmem %s0, %s259
      %p261 = pneg %p51
      %p262 = pneg %p48
      %p263 = scmp.lt.s32.totalorder %s20, 1
      %s264 = scalar_select %p263, %s20, 1
      %s265 = smul.addr %s264, 16
      %s266 = smul.addr %s265, 4
      %s267 = scalar_lea.vmem %s1, %s266
      %p268 = pneg %p77
      %p269 = pneg %p74
      %p270 = scmp.lt.s32.totalorder %s20, 1
      %s271 = scalar_select %p270, %s20, 1
      %s272 = scalar_lea.vmem %s2, %s271
      %p273 = pneg %p103
      %p274 = pneg %p100
      %p275 = scmp.lt.s32.totalorder %s20, 1
      %s276 = scalar_select %p275, %s20, 1
      %s277 = smul.addr %s276, 16
      %s278 = smul.addr %s277, 4
      %s279 = scalar_lea.vmem %s3, %s278
      %p280 = pneg %p129
      %p281 = pneg %p126
      %p282 = scmp.lt.s32.totalorder %s20, 1
      %s283 = scalar_select %p282, %s20, 1
      %s284 = scalar_lea.vmem %s4, %s283
      %p285 = pneg %p155
      %p286 = pneg %p152
      %p287 = pneg %p183
      %p288 = pneg %p180
      %s289 = smul.u32 2, %s21
      %p290 = scmp.lt.s32.totalorder %s20, 1
      %s291 = scalar_select %p290, %s20, 1
      %p292 = scmp.lt.s32.totalorder %s289, 1
      %s293 = scalar_select %p292, %s289, 1
      %s294 = smul.addr %s291, 2
      %s295 = sadd.s32 %s293, %s294
      %s296 = smul.addr %s295, 8
      %s297 = scalar_lea.vmem %s5, %s296
      %s298 = smul.u32 16, %s21
      %p299 = scmp.lt.s32.totalorder %s20, 1
      %s300 = scalar_select %p299, %s20, 1
      %p301 = scmp.lt.s32.totalorder %s298, 15
      %s302 = scalar_select %p301, %s298, 15
      %s303 = smul.addr %s302, 32
      %s304 = smul.addr %s300, 512
      %s305 = sadd.s32 %s303, %s304
      %s306 = smul.addr %s305, 4
      %s307 = scalar_lea.vmem %s0, %s306
      %s308 = smul.u32 16, %s21
      %p309 = scmp.lt.s32.totalorder %s20, 1
      %s310 = scalar_select %p309, %s20, 1
      %s311 = smul.addr %s310, 16
      %s312 = smul.addr %s311, 4
      %s313 = scalar_lea.vmem %s1, %s312
      %p314 = scmp.lt.s32.totalorder %s20, 1
      %s315 = scalar_select %p314, %s20, 1
      %s316 = scalar_lea.vmem %s2, %s315
      %p317 = scmp.lt.s32.totalorder %s20, 1
      %s318 = scalar_select %p317, %s20, 1
      %s319 = smul.addr %s318, 16
      %s320 = smul.addr %s319, 4
      %s321 = scalar_lea.vmem %s3, %s320
      %p322 = scmp.lt.s32.totalorder %s20, 1
      %s323 = scalar_select %p322, %s20, 1
      %s324 = scalar_lea.vmem %s4, %s323
      %s325 = smul.u32 2, %s21
      %p326 = scmp.lt.s32.totalorder %s20, 1
      %s327 = scalar_select %p326, %s20, 1
      %p328 = scmp.lt.s32.totalorder %s325, 1
      %s329 = scalar_select %p328, %s325, 1
      %s330 = smul.addr %s327, 2
      %s331 = sadd.s32 %s329, %s330
      %s332 = smul.addr %s331, 8
      %s333 = scalar_lea.vmem %s5, %s332
      %s334 = smul.u32 2, %s21
      %v336 = vld [vmem:[%s313] sm:$0xf]
      %v337 = vld [vmem:[%s313 + $0x4] sm:$0xf]
      %v338 = vld [vmem:[%s313 + $0x8] sm:$0xf]
      %v339 = vld [vmem:[%s313 + $0xc] sm:$0xf]
      %v340 = vld [vmem:[%s313 + $0x10] sm:$0xf]
      %v341 = vld [vmem:[%s313 + $0x14] sm:$0xf]
      %v342 = vld [vmem:[%s313 + $0x18] sm:$0xf]
      %v343 = vld [vmem:[%s313 + $0x1c] sm:$0xf]
      %v344 = vld [vmem:[%s313 + $0x20] sm:$0xf]
      %v345 = vld [vmem:[%s313 + $0x24] sm:$0xf]
      %v346 = vld [vmem:[%s313 + $0x28] sm:$0xf]
      %v347 = vld [vmem:[%s313 + $0x2c] sm:$0xf]
      %v348 = vld [vmem:[%s313 + $0x30] sm:$0xf]
      %v349 = vld [vmem:[%s313 + $0x34] sm:$0xf]
      %v350 = vld [vmem:[%s313 + $0x38] sm:$0xf]
      %v351 = vld [vmem:[%s313 + $0x3c] sm:$0xf]
      %v352 = vld [vmem:[%s316] sm:$0x1]
      %v353 = vld [vmem:[%s307] sm:$0xf]
      %v354 = vld [vmem:[%s307 + $0x4] sm:$0xf]
      %v355 = vld [vmem:[%s307 + $0x8] sm:$0xf]
      %v356 = vld [vmem:[%s307 + $0xc] sm:$0xf]
      %v357 = vld [vmem:[%s307 + $0x10] sm:$0xf]
      %v358 = vld [vmem:[%s307 + $0x14] sm:$0xf]
      %v359 = vld [vmem:[%s307 + $0x18] sm:$0xf]
      %v360 = vld [vmem:[%s307 + $0x1c] sm:$0xf]
      %v361 = vld [vmem:[%s307 + $0x80] sm:$0xf]
      %v362 = vld [vmem:[%s307 + $0x84] sm:$0xf]
      %v363 = vld [vmem:[%s307 + $0x88] sm:$0xf]
      %v364 = vld [vmem:[%s307 + $0x8c] sm:$0xf]
      %v365 = vld [vmem:[%s307 + $0x90] sm:$0xf]
      %v366 = vld [vmem:[%s307 + $0x94] sm:$0xf]
      %v367 = vld [vmem:[%s307 + $0x98] sm:$0xf]
      %v368 = vld [vmem:[%s307 + $0x9c] sm:$0xf]
      %v369 = vld [vmem:[%s307 + $0x100] sm:$0xf]
      %v370 = vld [vmem:[%s307 + $0x104] sm:$0xf]
      %v371 = vld [vmem:[%s307 + $0x108] sm:$0xf]
      %v372 = vld [vmem:[%s307 + $0x10c] sm:$0xf]
      %v373 = vld [vmem:[%s307 + $0x110] sm:$0xf]
      %v374 = vld [vmem:[%s307 + $0x114] sm:$0xf]
      %v375 = vld [vmem:[%s307 + $0x118] sm:$0xf]
      %v376 = vld [vmem:[%s307 + $0x11c] sm:$0xf]
      %v377 = vld [vmem:[%s307 + $0x180] sm:$0xf]
      %v378 = vld [vmem:[%s307 + $0x184] sm:$0xf]
      %v379 = vld [vmem:[%s307 + $0x188] sm:$0xf]
      %v380 = vld [vmem:[%s307 + $0x18c] sm:$0xf]
      %v381 = vld [vmem:[%s307 + $0x190] sm:$0xf]
      %v382 = vld [vmem:[%s307 + $0x194] sm:$0xf]
      %v383 = vld [vmem:[%s307 + $0x198] sm:$0xf]
      %v384 = vld [vmem:[%s307 + $0x19c] sm:$0xf]
      %v385 = vld [vmem:[%s307 + $0x200] sm:$0xf]
      %v386 = vld [vmem:[%s307 + $0x204] sm:$0xf]
      %v387 = vld [vmem:[%s307 + $0x208] sm:$0xf]
      %v388 = vld [vmem:[%s307 + $0x20c] sm:$0xf]
      %v389 = vld [vmem:[%s307 + $0x210] sm:$0xf]
      %v390 = vld [vmem:[%s307 + $0x214] sm:$0xf]
      %v391 = vld [vmem:[%s307 + $0x218] sm:$0xf]
      %v392 = vld [vmem:[%s307 + $0x21c] sm:$0xf]
      %v393 = vld [vmem:[%s307 + $0x280] sm:$0xf]
      %v394 = vld [vmem:[%s307 + $0x284] sm:$0xf]
      %v395 = vld [vmem:[%s307 + $0x288] sm:$0xf]
      %v396 = vld [vmem:[%s307 + $0x28c] sm:$0xf]
      %v397 = vld [vmem:[%s307 + $0x290] sm:$0xf]
      %v398 = vld [vmem:[%s307 + $0x294] sm:$0xf]
      %v399 = vld [vmem:[%s307 + $0x298] sm:$0xf]
      %v400 = vld [vmem:[%s307 + $0x29c] sm:$0xf]
      %v401 = vld [vmem:[%s307 + $0x300] sm:$0xf]
      %v402 = vld [vmem:[%s307 + $0x304] sm:$0xf]
      %v403 = vld [vmem:[%s307 + $0x308] sm:$0xf]
      %v404 = vld [vmem:[%s307 + $0x30c] sm:$0xf]
      %v405 = vld [vmem:[%s307 + $0x310] sm:$0xf]
      %v406 = vld [vmem:[%s307 + $0x314] sm:$0xf]
      %v407 = vld [vmem:[%s307 + $0x318] sm:$0xf]
      %v408 = vld [vmem:[%s307 + $0x31c] sm:$0xf]
      %v409 = vld [vmem:[%s307 + $0x380] sm:$0xf]
      %v410 = vld [vmem:[%s307 + $0x384] sm:$0xf]
      %v411 = vld [vmem:[%s307 + $0x388] sm:$0xf]
      %v412 = vld [vmem:[%s307 + $0x38c] sm:$0xf]
      %v413 = vld [vmem:[%s307 + $0x390] sm:$0xf]
      %v414 = vld [vmem:[%s307 + $0x394] sm:$0xf]
      %v415 = vld [vmem:[%s307 + $0x398] sm:$0xf]
      %v416 = vld [vmem:[%s307 + $0x39c] sm:$0xf]
      %v417 = vld [vmem:[%s307 + $0x400] sm:$0xf]
      %v418 = vld [vmem:[%s307 + $0x404] sm:$0xf]
      %v419 = vld [vmem:[%s307 + $0x408] sm:$0xf]
      %v420 = vld [vmem:[%s307 + $0x40c] sm:$0xf]
      %v421 = vld [vmem:[%s307 + $0x410] sm:$0xf]
      %v422 = vld [vmem:[%s307 + $0x414] sm:$0xf]
      %v423 = vld [vmem:[%s307 + $0x418] sm:$0xf]
      %v424 = vld [vmem:[%s307 + $0x41c] sm:$0xf]
      %v425 = vld [vmem:[%s307 + $0x480] sm:$0xf]
      %v426 = vld [vmem:[%s307 + $0x484] sm:$0xf]
      %v427 = vld [vmem:[%s307 + $0x488] sm:$0xf]
      %v428 = vld [vmem:[%s307 + $0x48c] sm:$0xf]
      %v429 = vld [vmem:[%s307 + $0x490] sm:$0xf]
      %v430 = vld [vmem:[%s307 + $0x494] sm:$0xf]
      %v431 = vld [vmem:[%s307 + $0x498] sm:$0xf]
      %v432 = vld [vmem:[%s307 + $0x49c] sm:$0xf]
      %v433 = vld [vmem:[%s307 + $0x500] sm:$0xf]
      %v434 = vld [vmem:[%s307 + $0x504] sm:$0xf]
      %v435 = vld [vmem:[%s307 + $0x508] sm:$0xf]
      %v436 = vld [vmem:[%s307 + $0x50c] sm:$0xf]
      %v437 = vld [vmem:[%s307 + $0x510] sm:$0xf]
      %v438 = vld [vmem:[%s307 + $0x514] sm:$0xf]
      %v439 = vld [vmem:[%s307 + $0x518] sm:$0xf]
      %v440 = vld [vmem:[%s307 + $0x51c] sm:$0xf]
      %v441 = vld [vmem:[%s307 + $0x580] sm:$0xf]
      %v442 = vld [vmem:[%s307 + $0x584] sm:$0xf]
      %v443 = vld [vmem:[%s307 + $0x588] sm:$0xf]
      %v444 = vld [vmem:[%s307 + $0x58c] sm:$0xf]
      %v445 = vld [vmem:[%s307 + $0x590] sm:$0xf]
      %v446 = vld [vmem:[%s307 + $0x594] sm:$0xf]
      %v447 = vld [vmem:[%s307 + $0x598] sm:$0xf]
      %v448 = vld [vmem:[%s307 + $0x59c] sm:$0xf]
      %v449 = vld [vmem:[%s307 + $0x600] sm:$0xf]
      %v450 = vld [vmem:[%s307 + $0x604] sm:$0xf]
      %v451 = vld [vmem:[%s307 + $0x608] sm:$0xf]
      %v452 = vld [vmem:[%s307 + $0x60c] sm:$0xf]
      %v453 = vld [vmem:[%s307 + $0x610] sm:$0xf]
      %v454 = vld [vmem:[%s307 + $0x614] sm:$0xf]
      %v455 = vld [vmem:[%s307 + $0x618] sm:$0xf]
      %v456 = vld [vmem:[%s307 + $0x61c] sm:$0xf]
      %v457 = vld [vmem:[%s307 + $0x680] sm:$0xf]
      %v458 = vld [vmem:[%s307 + $0x684] sm:$0xf]
      %v459 = vld [vmem:[%s307 + $0x688] sm:$0xf]
      %v460 = vld [vmem:[%s307 + $0x68c] sm:$0xf]
      %v461 = vld [vmem:[%s307 + $0x690] sm:$0xf]
      %v462 = vld [vmem:[%s307 + $0x694] sm:$0xf]
      %v463 = vld [vmem:[%s307 + $0x698] sm:$0xf]
      %v464 = vld [vmem:[%s307 + $0x69c] sm:$0xf]
      %v465 = vld [vmem:[%s307 + $0x700] sm:$0xf]
      %v466 = vld [vmem:[%s307 + $0x704] sm:$0xf]
      %v467 = vld [vmem:[%s307 + $0x708] sm:$0xf]
      %v468 = vld [vmem:[%s307 + $0x70c] sm:$0xf]
      %v469 = vld [vmem:[%s307 + $0x710] sm:$0xf]
      %v470 = vld [vmem:[%s307 + $0x714] sm:$0xf]
      %v471 = vld [vmem:[%s307 + $0x718] sm:$0xf]
      %v472 = vld [vmem:[%s307 + $0x71c] sm:$0xf]
      %v473 = vld [vmem:[%s307 + $0x780] sm:$0xf]
      %v474 = vld [vmem:[%s307 + $0x784] sm:$0xf]
      %v475 = vld [vmem:[%s307 + $0x788] sm:$0xf]
      %v476 = vld [vmem:[%s307 + $0x78c] sm:$0xf]
      %v477 = vld [vmem:[%s307 + $0x790] sm:$0xf]
      %v478 = vld [vmem:[%s307 + $0x794] sm:$0xf]
      %v479 = vld [vmem:[%s307 + $0x798] sm:$0xf]
      %v480 = vld [vmem:[%s307 + $0x79c] sm:$0xf]
      %v482 = vlaneseq
      %v483 = vshrl.u32 %v482, 7
      %v484 = vsub.s32 0, %v483
      %v485 = vrot.slane %v352, %v484
      %v615 = vunpack.c.l.b16 %v353
      %v616 = vunpack.c.l.b16 %v354
      %v617 = vunpack.c.l.b16 %v355
      %v618 = vunpack.c.l.b16 %v356
      %v619 = vunpack.c.l.b16 %v357
      %v620 = vunpack.c.l.b16 %v358
      %v621 = vunpack.c.l.b16 %v359
      %v622 = vunpack.c.l.b16 %v360
      %v623 = vunpack.c.l.b16 %v361
      %v624 = vunpack.c.l.b16 %v362
      %v625 = vunpack.c.l.b16 %v363
      %v626 = vunpack.c.l.b16 %v364
      %v627 = vunpack.c.l.b16 %v365
      %v628 = vunpack.c.l.b16 %v366
      %v629 = vunpack.c.l.b16 %v367
      %v630 = vunpack.c.l.b16 %v368
      %v631 = vunpack.c.l.b16 %v369
      %v632 = vunpack.c.l.b16 %v370
      %v633 = vunpack.c.l.b16 %v371
      %v634 = vunpack.c.l.b16 %v372
      %v635 = vunpack.c.l.b16 %v373
      %v636 = vunpack.c.l.b16 %v374
      %v637 = vunpack.c.l.b16 %v375
      %v638 = vunpack.c.l.b16 %v376
      %v639 = vunpack.c.l.b16 %v377
      %v640 = vunpack.c.l.b16 %v378
      %v641 = vunpack.c.l.b16 %v379
      %v642 = vunpack.c.l.b16 %v380
      %v643 = vunpack.c.l.b16 %v381
      %v644 = vunpack.c.l.b16 %v382
      %v645 = vunpack.c.l.b16 %v383
      %v646 = vunpack.c.l.b16 %v384
      %v647 = vunpack.c.l.b16 %v385
      %v648 = vunpack.c.l.b16 %v386
      %v649 = vunpack.c.l.b16 %v387
      %v650 = vunpack.c.l.b16 %v388
      %v651 = vunpack.c.l.b16 %v389
      %v652 = vunpack.c.l.b16 %v390
      %v653 = vunpack.c.l.b16 %v391
      %v654 = vunpack.c.l.b16 %v392
      %v655 = vunpack.c.l.b16 %v393
      %v656 = vunpack.c.l.b16 %v394
      %v657 = vunpack.c.l.b16 %v395
      %v658 = vunpack.c.l.b16 %v396
      %v659 = vunpack.c.l.b16 %v397
      %v660 = vunpack.c.l.b16 %v398
      %v661 = vunpack.c.l.b16 %v399
      %v662 = vunpack.c.l.b16 %v400
      %v663 = vunpack.c.l.b16 %v401
      %v664 = vunpack.c.l.b16 %v402
      %v665 = vunpack.c.l.b16 %v403
      %v666 = vunpack.c.l.b16 %v404
      %v667 = vunpack.c.l.b16 %v405
      %v668 = vunpack.c.l.b16 %v406
      %v669 = vunpack.c.l.b16 %v407
      %v670 = vunpack.c.l.b16 %v408
      %v671 = vunpack.c.l.b16 %v409
      %v672 = vunpack.c.l.b16 %v410
      %v673 = vunpack.c.l.b16 %v411
      %v674 = vunpack.c.l.b16 %v412
      %v675 = vunpack.c.l.b16 %v413
      %v676 = vunpack.c.l.b16 %v414
      %v677 = vunpack.c.l.b16 %v415
      %v678 = vunpack.c.l.b16 %v416
      %v679 = vunpack.c.l.b16 %v417
      %v680 = vunpack.c.l.b16 %v418
      %v681 = vunpack.c.l.b16 %v419
      %v682 = vunpack.c.l.b16 %v420
      %v683 = vunpack.c.l.b16 %v421
      %v684 = vunpack.c.l.b16 %v422
      %v685 = vunpack.c.l.b16 %v423
      %v686 = vunpack.c.l.b16 %v424
      %v687 = vunpack.c.l.b16 %v425
      %v688 = vunpack.c.l.b16 %v426
      %v689 = vunpack.c.l.b16 %v427
      %v690 = vunpack.c.l.b16 %v428
      %v691 = vunpack.c.l.b16 %v429
      %v692 = vunpack.c.l.b16 %v430
      %v693 = vunpack.c.l.b16 %v431
      %v694 = vunpack.c.l.b16 %v432
      %v695 = vunpack.c.l.b16 %v433
      %v696 = vunpack.c.l.b16 %v434
      %v697 = vunpack.c.l.b16 %v435
      %v698 = vunpack.c.l.b16 %v436
      %v699 = vunpack.c.l.b16 %v437
      %v700 = vunpack.c.l.b16 %v438
      %v701 = vunpack.c.l.b16 %v439
      %v702 = vunpack.c.l.b16 %v440
      %v703 = vunpack.c.l.b16 %v441
      %v704 = vunpack.c.l.b16 %v442
      %v705 = vunpack.c.l.b16 %v443
      %v706 = vunpack.c.l.b16 %v444
      %v707 = vunpack.c.l.b16 %v445
      %v708 = vunpack.c.l.b16 %v446
      %v709 = vunpack.c.l.b16 %v447
      %v710 = vunpack.c.l.b16 %v448
      %v711 = vunpack.c.l.b16 %v449
      %v712 = vunpack.c.l.b16 %v450
      %v713 = vunpack.c.l.b16 %v451
      %v714 = vunpack.c.l.b16 %v452
      %v715 = vunpack.c.l.b16 %v453
      %v716 = vunpack.c.l.b16 %v454
      %v717 = vunpack.c.l.b16 %v455
      %v718 = vunpack.c.l.b16 %v456
      %v719 = vunpack.c.l.b16 %v457
      %v720 = vunpack.c.l.b16 %v458
      %v721 = vunpack.c.l.b16 %v459
      %v722 = vunpack.c.l.b16 %v460
      %v723 = vunpack.c.l.b16 %v461
      %v724 = vunpack.c.l.b16 %v462
      %v725 = vunpack.c.l.b16 %v463
      %v726 = vunpack.c.l.b16 %v464
      %v727 = vunpack.c.l.b16 %v465
      %v728 = vunpack.c.l.b16 %v466
      %v729 = vunpack.c.l.b16 %v467
      %v730 = vunpack.c.l.b16 %v468
      %v731 = vunpack.c.l.b16 %v469
      %v732 = vunpack.c.l.b16 %v470
      %v733 = vunpack.c.l.b16 %v471
      %v734 = vunpack.c.l.b16 %v472
      %v735 = vunpack.c.l.b16 %v473
      %v736 = vunpack.c.l.b16 %v474
      %v737 = vunpack.c.l.b16 %v475
      %v738 = vunpack.c.l.b16 %v476
      %v739 = vunpack.c.l.b16 %v477
      %v740 = vunpack.c.l.b16 %v478
      %v741 = vunpack.c.l.b16 %v479
      %v742 = vunpack.c.l.b16 %v480
      %v743 = vpack.c.b16 %v616, %v615
      %v744 = vpack.c.b16 %v618, %v617
      %v745 = vpack.c.b16 %v620, %v619
      %v746 = vpack.c.b16 %v622, %v621
      %v747 = vpack.c.b16 %v624, %v623
      %v748 = vpack.c.b16 %v626, %v625
      %v749 = vpack.c.b16 %v628, %v627
      %v750 = vpack.c.b16 %v630, %v629
      %v751 = vpack.c.b16 %v632, %v631
      %v752 = vpack.c.b16 %v634, %v633
      %v753 = vpack.c.b16 %v636, %v635
      %v754 = vpack.c.b16 %v638, %v637
      %v755 = vpack.c.b16 %v640, %v639
      %v756 = vpack.c.b16 %v642, %v641
      %v757 = vpack.c.b16 %v644, %v643
      %v758 = vpack.c.b16 %v646, %v645
      %v759 = vpack.c.b16 %v648, %v647
      %v760 = vpack.c.b16 %v650, %v649
      %v761 = vpack.c.b16 %v652, %v651
      %v762 = vpack.c.b16 %v654, %v653
      %v763 = vpack.c.b16 %v656, %v655
      %v764 = vpack.c.b16 %v658, %v657
      %v765 = vpack.c.b16 %v660, %v659
      %v766 = vpack.c.b16 %v662, %v661
      %v767 = vpack.c.b16 %v664, %v663
      %v768 = vpack.c.b16 %v666, %v665
      %v769 = vpack.c.b16 %v668, %v667
      %v770 = vpack.c.b16 %v670, %v669
      %v771 = vpack.c.b16 %v672, %v671
      %v772 = vpack.c.b16 %v674, %v673
      %v773 = vpack.c.b16 %v676, %v675
      %v774 = vpack.c.b16 %v678, %v677
      %v775 = vpack.c.b16 %v680, %v679
      %v776 = vpack.c.b16 %v682, %v681
      %v777 = vpack.c.b16 %v684, %v683
      %v778 = vpack.c.b16 %v686, %v685
      %v779 = vpack.c.b16 %v688, %v687
      %v780 = vpack.c.b16 %v690, %v689
      %v781 = vpack.c.b16 %v692, %v691
      %v782 = vpack.c.b16 %v694, %v693
      %v783 = vpack.c.b16 %v696, %v695
      %v784 = vpack.c.b16 %v698, %v697
      %v785 = vpack.c.b16 %v700, %v699
      %v786 = vpack.c.b16 %v702, %v701
      %v787 = vpack.c.b16 %v704, %v703
      %v788 = vpack.c.b16 %v706, %v705
      %v789 = vpack.c.b16 %v708, %v707
      %v790 = vpack.c.b16 %v710, %v709
      %v791 = vpack.c.b16 %v712, %v711
      %v792 = vpack.c.b16 %v714, %v713
      %v793 = vpack.c.b16 %v716, %v715
      %v794 = vpack.c.b16 %v718, %v717
      %v795 = vpack.c.b16 %v720, %v719
      %v796 = vpack.c.b16 %v722, %v721
      %v797 = vpack.c.b16 %v724, %v723
      %v798 = vpack.c.b16 %v726, %v725
      %v799 = vpack.c.b16 %v728, %v727
      %v800 = vpack.c.b16 %v730, %v729
      %v801 = vpack.c.b16 %v732, %v731
      %v802 = vpack.c.b16 %v734, %v733
      %v803 = vpack.c.b16 %v736, %v735
      %v804 = vpack.c.b16 %v738, %v737
      %v805 = vpack.c.b16 %v740, %v739
      %v806 = vpack.c.b16 %v742, %v741
      %v887 = vunpack.c.l.b16 %v336
      %v888 = vunpack.c.l.b16 %v337
      %v889 = vunpack.c.l.b16 %v338
      %v890 = vunpack.c.l.b16 %v339
      %v891 = vunpack.c.l.b16 %v340
      %v892 = vunpack.c.l.b16 %v341
      %v893 = vunpack.c.l.b16 %v342
      %v894 = vunpack.c.l.b16 %v343
      %v895 = vunpack.c.l.b16 %v344
      %v896 = vunpack.c.l.b16 %v345
      %v897 = vunpack.c.l.b16 %v346
      %v898 = vunpack.c.l.b16 %v347
      %v899 = vunpack.c.l.b16 %v348
      %v900 = vunpack.c.l.b16 %v349
      %v901 = vunpack.c.l.b16 %v350
      %v902 = vunpack.c.l.b16 %v351
      %v903 = vpack.c.b16 %v888, %v887
      %v904 = vpack.c.b16 %v890, %v889
      %v905 = vpack.c.b16 %v892, %v891
      %v906 = vpack.c.b16 %v894, %v893
      %v907 = vpack.c.b16 %v896, %v895
      %v908 = vpack.c.b16 %v898, %v897
      %v909 = vpack.c.b16 %v900, %v899
      %v910 = vpack.c.b16 %v902, %v901
      %919 = vmatprep.subr.bf16.mxu0 0
      %920 = vmatpush1.bf16.msra.mxu0 %v903
      %921 = vmatprep.subr.bf16.mxu0 0
      %922 = vmatpush1.bf16.msra.mxu0 %v904
      %923 = vmatprep.subr.bf16.mxu0 0
      %924 = vmatpush1.bf16.msra.mxu0 %v905
      %925 = vmatprep.subr.bf16.mxu0 0
      %926 = vmatpush1.bf16.msra.mxu0 %v906
      %927 = vmatprep.subr.bf16.mxu0 0
      %928 = vmatpush1.bf16.msra.mxu0 %v907
      %929 = vmatprep.subr.bf16.mxu0 0
      %930 = vmatpush1.bf16.msra.mxu0 %v908
      %931 = vmatprep.subr.bf16.mxu0 0
      %932 = vmatpush1.bf16.msra.mxu0 %v909
      %933 = vmatprep.subr.bf16.mxu0 0
      %934 = vmatpush1.bf16.msra.mxu0 %v910
      %935 = vmatprep.subr.bf16.mxu0 0
      %936 = vmatpush1.bf16.msra.mxu0 0
      %937 = vmatprep.subr.bf16.mxu0 0
      %938 = vmatpush1.bf16.msra.mxu0 0
      %939 = vmatprep.subr.bf16.mxu0 0
      %940 = vmatpush1.bf16.msra.mxu0 0
      %941 = vmatprep.subr.bf16.mxu0 0
      %942 = vmatpush1.bf16.msra.mxu0 0
      %943 = vmatprep.subr.bf16.mxu0 0
      %944 = vmatpush1.bf16.msra.mxu0 0
      %945 = vmatprep.subr.bf16.mxu0 0
      %946 = vmatpush1.bf16.msra.mxu0 0
      %947 = vmatprep.subr.bf16.mxu0 0
      %948 = vmatpush1.bf16.msra.mxu0 0
      %949 = vmatprep.subr.bf16.mxu0 0
      %950 = vmatpush1.bf16.msra.mxu0 0
      %951 = vmatprep.mubr.bf16.mxu0 0
      %952 = vmatmul.mubr.bf16.gmra.mrb[0].mxu0 %v743
      %v953 = vpop.f32.mrb[0].mxu0
      %v954 = vadd.f32 %v485, %v953
      %v955 = vpop.f32.mrb[0].mxu0
      %v956 = vpop.f32.mrb[0].mxu0
      %v957 = vadd.f32 %v485, %v956
      %v958 = vpop.f32.mrb[0].mxu0
      %959 = vmatprep.mubr.bf16.mxu0 0
      %960 = vmatmul.mubr.bf16.gmra.mrb[0].mxu0 %v744
      %v961 = vpop.f32.mrb[0].mxu0
      %v962 = vadd.f32 %v485, %v961
      %v963 = vpop.f32.mrb[0].mxu0
      %v964 = vpop.f32.mrb[0].mxu0
      %v965 = vadd.f32 %v485, %v964
      %v966 = vpop.f32.mrb[0].mxu0
      %967 = vmatprep.mubr.bf16.mxu0 0
      %968 = vmatmul.mubr.bf16.gmra.mrb[0].mxu0 %v745
      %v969 = vpop.f32.mrb[0].mxu0
      %v970 = vadd.f32 %v485, %v969
      %v971 = vpop.f32.mrb[0].mxu0
      %v972 = vpop.f32.mrb[0].mxu0
      %v973 = vadd.f32 %v485, %v972
      %v974 = vpop.f32.mrb[0].mxu0
      %975 = vmatprep.mubr.bf16.mxu0 0
      %976 = vmatmul.mubr.bf16.gmra.mrb[0].mxu0 %v746
      %v977 = vpop.f32.mrb[0].mxu0
      %v978 = vadd.f32 %v485, %v977
      %v979 = vpop.f32.mrb[0].mxu0
      %v980 = vpop.f32.mrb[0].mxu0
      %v981 = vadd.f32 %v485, %v980
      %v982 = vpop.f32.mrb[0].mxu0
      %983 = vmatprep.mubr.bf16.mxu0 0
      %984 = vmatmul.mubr.bf16.gmra.mrb[0].mxu0 %v747
      %v985 = vpop.f32.mrb[0].mxu0
      %v986 = vadd.f32 %v485, %v985
      %v987 = vpop.f32.mrb[0].mxu0
      %v988 = vpop.f32.mrb[0].mxu0
      %v989 = vadd.f32 %v485, %v988
      %v990 = vpop.f32.mrb[0].mxu0
      %991 = vmatprep.mubr.bf16.mxu0 0
      %992 = vmatmul.mubr.bf16.gmra.mrb[0].mxu0 %v748
      %v993 = vpop.f32.mrb[0].mxu0
      %v994 = vadd.f32 %v485, %v993
      %v995 = vpop.f32.mrb[0].mxu0
      %v996 = vpop.f32.mrb[0].mxu0
      %v997 = vadd.f32 %v485, %v996
      %v998 = vpop.f32.mrb[0].mxu0
      %999 = vmatprep.mubr.bf16.mxu0 0
      %1000 = vmatmul.mubr.bf16.gmra.mrb[0].mxu0 %v749
      %v1001 = vpop.f32.mrb[0].mxu0
      %v1002 = vadd.f32 %v485, %v1001
      %v1003 = vpop.f32.mrb[0].mxu0
      %v1004 = vpop.f32.mrb[0].mxu0
      %v1005 = vadd.f32 %v485, %v1004
      %v1006 = vpop.f32.mrb[0].mxu0
      %1007 = vmatprep.mubr.bf16.mxu0 0
      %1008 = vmatmul.mubr.bf16.gmra.mrb[0].mxu0 %v750
      %v1009 = vpop.f32.mrb[0].mxu0
      %v1010 = vadd.f32 %v485, %v1009
      %v1011 = vpop.f32.mrb[0].mxu0
      %v1012 = vpop.f32.mrb[0].mxu0
      %v1013 = vadd.f32 %v485, %v1012
      %v1014 = vpop.f32.mrb[0].mxu0
      %1015 = vmatprep.mubr.bf16.mxu0 0
      %1016 = vmatmul.mubr.bf16.gmra.mrb[0].mxu0 %v751
      %v1017 = vpop.f32.mrb[0].mxu0
      %v1018 = vadd.f32 %v485, %v1017
      %v1019 = vpop.f32.mrb[0].mxu0
      %v1020 = vpop.f32.mrb[0].mxu0
      %v1021 = vadd.f32 %v485, %v1020
      %v1022 = vpop.f32.mrb[0].mxu0
      %1023 = vmatprep.mubr.bf16.mxu0 0
      %1024 = vmatmul.mubr.bf16.gmra.mrb[0].mxu0 %v752
      %v1025 = vpop.f32.mrb[0].mxu0
      %v1026 = vadd.f32 %v485, %v1025
      %v1027 = vpop.f32.mrb[0].mxu0
      %v1028 = vpop.f32.mrb[0].mxu0
      %v1029 = vadd.f32 %v485, %v1028
      %v1030 = vpop.f32.mrb[0].mxu0
      %1031 = vmatprep.mubr.bf16.mxu0 0
      %1032 = vmatmul.mubr.bf16.gmra.mrb[0].mxu0 %v753
      %v1033 = vpop.f32.mrb[0].mxu0
      %v1034 = vadd.f32 %v485, %v1033
      %v1035 = vpop.f32.mrb[0].mxu0
      %v1036 = vpop.f32.mrb[0].mxu0
      %v1037 = vadd.f32 %v485, %v1036
      %v1038 = vpop.f32.mrb[0].mxu0
      %1039 = vmatprep.mubr.bf16.mxu0 0
      %1040 = vmatmul.mubr.bf16.gmra.mrb[0].mxu0 %v754
      %v1041 = vpop.f32.mrb[0].mxu0
      %v1042 = vadd.f32 %v485, %v1041
      %v1043 = vpop.f32.mrb[0].mxu0
      %v1044 = vpop.f32.mrb[0].mxu0
      %v1045 = vadd.f32 %v485, %v1044
      %v1046 = vpop.f32.mrb[0].mxu0
      %1047 = vmatprep.mubr.bf16.mxu0 0
      %1048 = vmatmul.mubr.bf16.gmra.mrb[0].mxu0 %v755
      %v1049 = vpop.f32.mrb[0].mxu0
      %v1050 = vadd.f32 %v485, %v1049
      %v1051 = vpop.f32.mrb[0].mxu0
      %v1052 = vpop.f32.mrb[0].mxu0
      %v1053 = vadd.f32 %v485, %v1052
      %v1054 = vpop.f32.mrb[0].mxu0
      %1055 = vmatprep.mubr.bf16.mxu0 0
      %1056 = vmatmul.mubr.bf16.gmra.mrb[0].mxu0 %v756
      %v1057 = vpop.f32.mrb[0].mxu0
      %v1058 = vadd.f32 %v485, %v1057
      %v1059 = vpop.f32.mrb[0].mxu0
      %v1060 = vpop.f32.mrb[0].mxu0
      %v1061 = vadd.f32 %v485, %v1060
      %v1062 = vpop.f32.mrb[0].mxu0
      %1063 = vmatprep.mubr.bf16.mxu0 0
      %1064 = vmatmul.mubr.bf16.gmra.mrb[0].mxu0 %v757
      %v1065 = vpop.f32.mrb[0].mxu0
      %v1066 = vadd.f32 %v485, %v1065
      %v1067 = vpop.f32.mrb[0].mxu0
      %v1068 = vpop.f32.mrb[0].mxu0
      %v1069 = vadd.f32 %v485, %v1068
      %v1070 = vpop.f32.mrb[0].mxu0
      %1071 = vmatprep.mubr.bf16.mxu0 0
      %1072 = vmatmul.mubr.bf16.gmra.mrb[0].mxu0 %v758
      %v1073 = vpop.f32.mrb[0].mxu0
      %v1074 = vadd.f32 %v485, %v1073
      %v1075 = vpop.f32.mrb[0].mxu0
      %v1076 = vpop.f32.mrb[0].mxu0
      %v1077 = vadd.f32 %v485, %v1076
      %v1078 = vpop.f32.mrb[0].mxu0
      %1079 = vmatprep.mubr.bf16.mxu0 0
      %1080 = vmatmul.mubr.bf16.gmra.mrb[0].mxu0 %v759
      %v1081 = vpop.f32.mrb[0].mxu0
      %v1082 = vadd.f32 %v485, %v1081
      %v1083 = vpop.f32.mrb[0].mxu0
      %v1084 = vpop.f32.mrb[0].mxu0
      %v1085 = vadd.f32 %v485, %v1084
      %v1086 = vpop.f32.mrb[0].mxu0
      %1087 = vmatprep.mubr.bf16.mxu0 0
      %1088 = vmatmul.mubr.bf16.gmra.mrb[0].mxu0 %v760
      %v1089 = vpop.f32.mrb[0].mxu0
      %v1090 = vadd.f32 %v485, %v1089
      %v1091 = vpop.f32.mrb[0].mxu0
      %v1092 = vpop.f32.mrb[0].mxu0
      %v1093 = vadd.f32 %v485, %v1092
      %v1094 = vpop.f32.mrb[0].mxu0
      %1095 = vmatprep.mubr.bf16.mxu0 0
      %1096 = vmatmul.mubr.bf16.gmra.mrb[0].mxu0 %v761
      %v1097 = vpop.f32.mrb[0].mxu0
      %v1098 = vadd.f32 %v485, %v1097
      %v1099 = vpop.f32.mrb[0].mxu0
      %v1100 = vpop.f32.mrb[0].mxu0
      %v1101 = vadd.f32 %v485, %v1100
      %v1102 = vpop.f32.mrb[0].mxu0
      %1103 = vmatprep.mubr.bf16.mxu0 0
      %1104 = vmatmul.mubr.bf16.gmra.mrb[0].mxu0 %v762
      %v1105 = vpop.f32.mrb[0].mxu0
      %v1106 = vadd.f32 %v485, %v1105
      %v1107 = vpop.f32.mrb[0].mxu0
      %v1108 = vpop.f32.mrb[0].mxu0
      %v1109 = vadd.f32 %v485, %v1108
      %v1110 = vpop.f32.mrb[0].mxu0
      %1111 = vmatprep.mubr.bf16.mxu0 0
      %1112 = vmatmul.mubr.bf16.gmra.mrb[0].mxu0 %v763
      %v1113 = vpop.f32.mrb[0].mxu0
      %v1114 = vadd.f32 %v485, %v1113
      %v1115 = vpop.f32.mrb[0].mxu0
      %v1116 = vpop.f32.mrb[0].mxu0
      %v1117 = vadd.f32 %v485, %v1116
      %v1118 = vpop.f32.mrb[0].mxu0
      %1119 = vmatprep.mubr.bf16.mxu0 0
      %1120 = vmatmul.mubr.bf16.gmra.mrb[0].mxu0 %v764
      %v1121 = vpop.f32.mrb[0].mxu0
      %v1122 = vadd.f32 %v485, %v1121
      %v1123 = vpop.f32.mrb[0].mxu0
      %v1124 = vpop.f32.mrb[0].mxu0
      %v1125 = vadd.f32 %v485, %v1124
      %v1126 = vpop.f32.mrb[0].mxu0
      %1127 = vmatprep.mubr.bf16.mxu0 0
      %1128 = vmatmul.mubr.bf16.gmra.mrb[0].mxu0 %v765
      %v1129 = vpop.f32.mrb[0].mxu0
      %v1130 = vadd.f32 %v485, %v1129
      %v1131 = vpop.f32.mrb[0].mxu0
      %v1132 = vpop.f32.mrb[0].mxu0
      %v1133 = vadd.f32 %v485, %v1132
      %v1134 = vpop.f32.mrb[0].mxu0
      %1135 = vmatprep.mubr.bf16.mxu0 0
      %1136 = vmatmul.mubr.bf16.gmra.mrb[0].mxu0 %v766
      %v1137 = vpop.f32.mrb[0].mxu0
      %v1138 = vadd.f32 %v485, %v1137
      %v1139 = vpop.f32.mrb[0].mxu0
      %v1140 = vpop.f32.mrb[0].mxu0
      %v1141 = vadd.f32 %v485, %v1140
      %v1142 = vpop.f32.mrb[0].mxu0
      %1143 = vmatprep.mubr.bf16.mxu0 0
      %1144 = vmatmul.mubr.bf16.gmra.mrb[0].mxu0 %v767
      %v1145 = vpop.f32.mrb[0].mxu0
      %v1146 = vadd.f32 %v485, %v1145
      %v1147 = vpop.f32.mrb[0].mxu0
      %v1148 = vpop.f32.mrb[0].mxu0
      %v1149 = vadd.f32 %v485, %v1148
      %v1150 = vpop.f32.mrb[0].mxu0
      %1151 = vmatprep.mubr.bf16.mxu0 0
      %1152 = vmatmul.mubr.bf16.gmra.mrb[0].mxu0 %v768
      %v1153 = vpop.f32.mrb[0].mxu0
      %v1154 = vadd.f32 %v485, %v1153
      %v1155 = vpop.f32.mrb[0].mxu0
      %v1156 = vpop.f32.mrb[0].mxu0
      %v1157 = vadd.f32 %v485, %v1156
      %v1158 = vpop.f32.mrb[0].mxu0
      %1159 = vmatprep.mubr.bf16.mxu0 0
      %1160 = vmatmul.mubr.bf16.gmra.mrb[0].mxu0 %v769
      %v1161 = vpop.f32.mrb[0].mxu0
      %v1162 = vadd.f32 %v485, %v1161
      %v1163 = vpop.f32.mrb[0].mxu0
      %v1164 = vpop.f32.mrb[0].mxu0
      %v1165 = vadd.f32 %v485, %v1164
      %v1166 = vpop.f32.mrb[0].mxu0
      %1167 = vmatprep.mubr.bf16.mxu0 0
      %1168 = vmatmul.mubr.bf16.gmra.mrb[0].mxu0 %v770
      %v1169 = vpop.f32.mrb[0].mxu0
      %v1170 = vadd.f32 %v485, %v1169
      %v1171 = vpop.f32.mrb[0].mxu0
      %v1172 = vpop.f32.mrb[0].mxu0
      %v1173 = vadd.f32 %v485, %v1172
      %v1174 = vpop.f32.mrb[0].mxu0
      %1175 = vmatprep.mubr.bf16.mxu0 0
      %1176 = vmatmul.mubr.bf16.gmra.mrb[0].mxu0 %v771
      %v1177 = vpop.f32.mrb[0].mxu0
      %v1178 = vadd.f32 %v485, %v1177
      %v1179 = vpop.f32.mrb[0].mxu0
      %v1180 = vpop.f32.mrb[0].mxu0
      %v1181 = vadd.f32 %v485, %v1180
      %v1182 = vpop.f32.mrb[0].mxu0
      %1183 = vmatprep.mubr.bf16.mxu0 0
      %1184 = vmatmul.mubr.bf16.gmra.mrb[0].mxu0 %v772
      %v1185 = vpop.f32.mrb[0].mxu0
      %v1186 = vadd.f32 %v485, %v1185
      %v1187 = vpop.f32.mrb[0].mxu0
      %v1188 = vpop.f32.mrb[0].mxu0
      %v1189 = vadd.f32 %v485, %v1188
      %v1190 = vpop.f32.mrb[0].mxu0
      %1191 = vmatprep.mubr.bf16.mxu0 0
      %1192 = vmatmul.mubr.bf16.gmra.mrb[0].mxu0 %v773
      %v1193 = vpop.f32.mrb[0].mxu0
      %v1194 = vadd.f32 %v485, %v1193
      %v1195 = vpop.f32.mrb[0].mxu0
      %v1196 = vpop.f32.mrb[0].mxu0
      %v1197 = vadd.f32 %v485, %v1196
      %v1198 = vpop.f32.mrb[0].mxu0
      %1199 = vmatprep.mubr.bf16.mxu0 0
      %1200 = vmatmul.mubr.bf16.gmra.mrb[0].mxu0 %v774
      %v1201 = vpop.f32.mrb[0].mxu0
      %v1202 = vadd.f32 %v485, %v1201
      %v1203 = vpop.f32.mrb[0].mxu0
      %v1204 = vpop.f32.mrb[0].mxu0
      %v1205 = vadd.f32 %v485, %v1204
      %v1206 = vpop.f32.mrb[0].mxu0
      %1207 = vmatprep.mubr.bf16.mxu0 0
      %1208 = vmatmul.mubr.bf16.gmra.mrb[0].mxu0 %v775
      %v1209 = vpop.f32.mrb[0].mxu0
      %v1210 = vadd.f32 %v485, %v1209
      %v1211 = vpop.f32.mrb[0].mxu0
      %v1212 = vpop.f32.mrb[0].mxu0
      %v1213 = vadd.f32 %v485, %v1212
      %v1214 = vpop.f32.mrb[0].mxu0
      %1215 = vmatprep.mubr.bf16.mxu0 0
      %1216 = vmatmul.mubr.bf16.gmra.mrb[0].mxu0 %v776
      %v1217 = vpop.f32.mrb[0].mxu0
      %v1218 = vadd.f32 %v485, %v1217
      %v1219 = vpop.f32.mrb[0].mxu0
      %v1220 = vpop.f32.mrb[0].mxu0
      %v1221 = vadd.f32 %v485, %v1220
      %v1222 = vpop.f32.mrb[0].mxu0
      %1223 = vmatprep.mubr.bf16.mxu0 0
      %1224 = vmatmul.mubr.bf16.gmra.mrb[0].mxu0 %v777
      %v1225 = vpop.f32.mrb[0].mxu0
      %v1226 = vadd.f32 %v485, %v1225
      %v1227 = vpop.f32.mrb[0].mxu0
      %v1228 = vpop.f32.mrb[0].mxu0
      %v1229 = vadd.f32 %v485, %v1228
      %v1230 = vpop.f32.mrb[0].mxu0
      %1231 = vmatprep.mubr.bf16.mxu0 0
      %1232 = vmatmul.mubr.bf16.gmra.mrb[0].mxu0 %v778
      %v1233 = vpop.f32.mrb[0].mxu0
      %v1234 = vadd.f32 %v485, %v1233
      %v1235 = vpop.f32.mrb[0].mxu0
      %v1236 = vpop.f32.mrb[0].mxu0
      %v1237 = vadd.f32 %v485, %v1236
      %v1238 = vpop.f32.mrb[0].mxu0
      %1239 = vmatprep.mubr.bf16.mxu0 0
      %1240 = vmatmul.mubr.bf16.gmra.mrb[0].mxu0 %v779
      %v1241 = vpop.f32.mrb[0].mxu0
      %v1242 = vadd.f32 %v485, %v1241
      %v1243 = vpop.f32.mrb[0].mxu0
      %v1244 = vpop.f32.mrb[0].mxu0
      %v1245 = vadd.f32 %v485, %v1244
      %v1246 = vpop.f32.mrb[0].mxu0
      %1247 = vmatprep.mubr.bf16.mxu0 0
      %1248 = vmatmul.mubr.bf16.gmra.mrb[0].mxu0 %v780
      %v1249 = vpop.f32.mrb[0].mxu0
      %v1250 = vadd.f32 %v485, %v1249
      %v1251 = vpop.f32.mrb[0].mxu0
      %v1252 = vpop.f32.mrb[0].mxu0
      %v1253 = vadd.f32 %v485, %v1252
      %v1254 = vpop.f32.mrb[0].mxu0
      %1255 = vmatprep.mubr.bf16.mxu0 0
      %1256 = vmatmul.mubr.bf16.gmra.mrb[0].mxu0 %v781
      %v1257 = vpop.f32.mrb[0].mxu0
      %v1258 = vadd.f32 %v485, %v1257
      %v1259 = vpop.f32.mrb[0].mxu0
      %v1260 = vpop.f32.mrb[0].mxu0
      %v1261 = vadd.f32 %v485, %v1260
      %v1262 = vpop.f32.mrb[0].mxu0
      %1263 = vmatprep.mubr.bf16.mxu0 0
      %1264 = vmatmul.mubr.bf16.gmra.mrb[0].mxu0 %v782
      %v1265 = vpop.f32.mrb[0].mxu0
      %v1266 = vadd.f32 %v485, %v1265
      %v1267 = vpop.f32.mrb[0].mxu0
      %v1268 = vpop.f32.mrb[0].mxu0
      %v1269 = vadd.f32 %v485, %v1268
      %v1270 = vpop.f32.mrb[0].mxu0
      %1271 = vmatprep.mubr.bf16.mxu0 0
      %1272 = vmatmul.mubr.bf16.gmra.mrb[0].mxu0 %v783
      %v1273 = vpop.f32.mrb[0].mxu0
      %v1274 = vadd.f32 %v485, %v1273
      %v1275 = vpop.f32.mrb[0].mxu0
      %v1276 = vpop.f32.mrb[0].mxu0
      %v1277 = vadd.f32 %v485, %v1276
      %v1278 = vpop.f32.mrb[0].mxu0
      %1279 = vmatprep.mubr.bf16.mxu0 0
      %1280 = vmatmul.mubr.bf16.gmra.mrb[0].mxu0 %v784
      %v1281 = vpop.f32.mrb[0].mxu0
      %v1282 = vadd.f32 %v485, %v1281
      %v1283 = vpop.f32.mrb[0].mxu0
      %v1284 = vpop.f32.mrb[0].mxu0
      %v1285 = vadd.f32 %v485, %v1284
      %v1286 = vpop.f32.mrb[0].mxu0
      %1287 = vmatprep.mubr.bf16.mxu0 0
      %1288 = vmatmul.mubr.bf16.gmra.mrb[0].mxu0 %v785
      %v1289 = vpop.f32.mrb[0].mxu0
      %v1290 = vadd.f32 %v485, %v1289
      %v1291 = vpop.f32.mrb[0].mxu0
      %v1292 = vpop.f32.mrb[0].mxu0
      %v1293 = vadd.f32 %v485, %v1292
      %v1294 = vpop.f32.mrb[0].mxu0
      %1295 = vmatprep.mubr.bf16.mxu0 0
      %1296 = vmatmul.mubr.bf16.gmra.mrb[0].mxu0 %v786
      %v1297 = vpop.f32.mrb[0].mxu0
      %v1298 = vadd.f32 %v485, %v1297
      %v1299 = vpop.f32.mrb[0].mxu0
      %v1300 = vpop.f32.mrb[0].mxu0
      %v1301 = vadd.f32 %v485, %v1300
      %v1302 = vpop.f32.mrb[0].mxu0
      %1303 = vmatprep.mubr.bf16.mxu0 0
      %1304 = vmatmul.mubr.bf16.gmra.mrb[0].mxu0 %v787
      %v1305 = vpop.f32.mrb[0].mxu0
      %v1306 = vadd.f32 %v485, %v1305
      %v1307 = vpop.f32.mrb[0].mxu0
      %v1308 = vpop.f32.mrb[0].mxu0
      %v1309 = vadd.f32 %v485, %v1308
      %v1310 = vpop.f32.mrb[0].mxu0
      %1311 = vmatprep.mubr.bf16.mxu0 0
      %1312 = vmatmul.mubr.bf16.gmra.mrb[0].mxu0 %v788
      %v1313 = vpop.f32.mrb[0].mxu0
      %v1314 = vadd.f32 %v485, %v1313
      %v1315 = vpop.f32.mrb[0].mxu0
      %v1316 = vpop.f32.mrb[0].mxu0
      %v1317 = vadd.f32 %v485, %v1316
      %v1318 = vpop.f32.mrb[0].mxu0
      %1319 = vmatprep.mubr.bf16.mxu0 0
      %1320 = vmatmul.mubr.bf16.gmra.mrb[0].mxu0 %v789
      %v1321 = vpop.f32.mrb[0].mxu0
      %v1322 = vadd.f32 %v485, %v1321
      %v1323 = vpop.f32.mrb[0].mxu0
      %v1324 = vpop.f32.mrb[0].mxu0
      %v1325 = vadd.f32 %v485, %v1324
      %v1326 = vpop.f32.mrb[0].mxu0
      %1327 = vmatprep.mubr.bf16.mxu0 0
      %1328 = vmatmul.mubr.bf16.gmra.mrb[0].mxu0 %v790
      %v1329 = vpop.f32.mrb[0].mxu0
      %v1330 = vadd.f32 %v485, %v1329
      %v1331 = vpop.f32.mrb[0].mxu0
      %v1332 = vpop.f32.mrb[0].mxu0
      %v1333 = vadd.f32 %v485, %v1332
      %v1334 = vpop.f32.mrb[0].mxu0
      %1335 = vmatprep.mubr.bf16.mxu0 0
      %1336 = vmatmul.mubr.bf16.gmra.mrb[0].mxu0 %v791
      %v1337 = vpop.f32.mrb[0].mxu0
      %v1338 = vadd.f32 %v485, %v1337
      %v1339 = vpop.f32.mrb[0].mxu0
      %v1340 = vpop.f32.mrb[0].mxu0
      %v1341 = vadd.f32 %v485, %v1340
      %v1342 = vpop.f32.mrb[0].mxu0
      %1343 = vmatprep.mubr.bf16.mxu0 0
      %1344 = vmatmul.mubr.bf16.gmra.mrb[0].mxu0 %v792
      %v1345 = vpop.f32.mrb[0].mxu0
      %v1346 = vadd.f32 %v485, %v1345
      %v1347 = vpop.f32.mrb[0].mxu0
      %v1348 = vpop.f32.mrb[0].mxu0
      %v1349 = vadd.f32 %v485, %v1348
      %v1350 = vpop.f32.mrb[0].mxu0
      %1351 = vmatprep.mubr.bf16.mxu0 0
      %1352 = vmatmul.mubr.bf16.gmra.mrb[0].mxu0 %v793
      %v1353 = vpop.f32.mrb[0].mxu0
      %v1354 = vadd.f32 %v485, %v1353
      %v1355 = vpop.f32.mrb[0].mxu0
      %v1356 = vpop.f32.mrb[0].mxu0
      %v1357 = vadd.f32 %v485, %v1356
      %v1358 = vpop.f32.mrb[0].mxu0
      %1359 = vmatprep.mubr.bf16.mxu0 0
      %1360 = vmatmul.mubr.bf16.gmra.mrb[0].mxu0 %v794
      %v1361 = vpop.f32.mrb[0].mxu0
      %v1362 = vadd.f32 %v485, %v1361
      %v1363 = vpop.f32.mrb[0].mxu0
      %v1364 = vpop.f32.mrb[0].mxu0
      %v1365 = vadd.f32 %v485, %v1364
      %v1366 = vpop.f32.mrb[0].mxu0
      %1367 = vmatprep.mubr.bf16.mxu0 0
      %1368 = vmatmul.mubr.bf16.gmra.mrb[0].mxu0 %v795
      %v1369 = vpop.f32.mrb[0].mxu0
      %v1370 = vadd.f32 %v485, %v1369
      %v1371 = vpop.f32.mrb[0].mxu0
      %v1372 = vpop.f32.mrb[0].mxu0
      %v1373 = vadd.f32 %v485, %v1372
      %v1374 = vpop.f32.mrb[0].mxu0
      %1375 = vmatprep.mubr.bf16.mxu0 0
      %1376 = vmatmul.mubr.bf16.gmra.mrb[0].mxu0 %v796
      %v1377 = vpop.f32.mrb[0].mxu0
      %v1378 = vadd.f32 %v485, %v1377
      %v1379 = vpop.f32.mrb[0].mxu0
      %v1380 = vpop.f32.mrb[0].mxu0
      %v1381 = vadd.f32 %v485, %v1380
      %v1382 = vpop.f32.mrb[0].mxu0
      %1383 = vmatprep.mubr.bf16.mxu0 0
      %1384 = vmatmul.mubr.bf16.gmra.mrb[0].mxu0 %v797
      %v1385 = vpop.f32.mrb[0].mxu0
      %v1386 = vadd.f32 %v485, %v1385
      %v1387 = vpop.f32.mrb[0].mxu0
      %v1388 = vpop.f32.mrb[0].mxu0
      %v1389 = vadd.f32 %v485, %v1388
      %v1390 = vpop.f32.mrb[0].mxu0
      %1391 = vmatprep.mubr.bf16.mxu0 0
      %1392 = vmatmul.mubr.bf16.gmra.mrb[0].mxu0 %v798
      %v1393 = vpop.f32.mrb[0].mxu0
      %v1394 = vadd.f32 %v485, %v1393
      %v1395 = vpop.f32.mrb[0].mxu0
      %v1396 = vpop.f32.mrb[0].mxu0
      %v1397 = vadd.f32 %v485, %v1396
      %v1398 = vpop.f32.mrb[0].mxu0
      %1399 = vmatprep.mubr.bf16.mxu0 0
      %1400 = vmatmul.mubr.bf16.gmra.mrb[0].mxu0 %v799
      %v1401 = vpop.f32.mrb[0].mxu0
      %v1402 = vadd.f32 %v485, %v1401
      %v1403 = vpop.f32.mrb[0].mxu0
      %v1404 = vpop.f32.mrb[0].mxu0
      %v1405 = vadd.f32 %v485, %v1404
      %v1406 = vpop.f32.mrb[0].mxu0
      %1407 = vmatprep.mubr.bf16.mxu0 0
      %1408 = vmatmul.mubr.bf16.gmra.mrb[0].mxu0 %v800
      %v1409 = vpop.f32.mrb[0].mxu0
      %v1410 = vadd.f32 %v485, %v1409
      %v1411 = vpop.f32.mrb[0].mxu0
      %v1412 = vpop.f32.mrb[0].mxu0
      %v1413 = vadd.f32 %v485, %v1412
      %v1414 = vpop.f32.mrb[0].mxu0
      %1415 = vmatprep.mubr.bf16.mxu0 0
      %1416 = vmatmul.mubr.bf16.gmra.mrb[0].mxu0 %v801
      %v1417 = vpop.f32.mrb[0].mxu0
      %v1418 = vadd.f32 %v485, %v1417
      %v1419 = vpop.f32.mrb[0].mxu0
      %v1420 = vpop.f32.mrb[0].mxu0
      %v1421 = vadd.f32 %v485, %v1420
      %v1422 = vpop.f32.mrb[0].mxu0
      %1423 = vmatprep.mubr.bf16.mxu0 0
      %1424 = vmatmul.mubr.bf16.gmra.mrb[0].mxu0 %v802
      %v1425 = vpop.f32.mrb[0].mxu0
      %v1426 = vadd.f32 %v485, %v1425
      %v1427 = vpop.f32.mrb[0].mxu0
      %v1428 = vpop.f32.mrb[0].mxu0
      %v1429 = vadd.f32 %v485, %v1428
      %v1430 = vpop.f32.mrb[0].mxu0
      %1431 = vmatprep.mubr.bf16.mxu0 0
      %1432 = vmatmul.mubr.bf16.gmra.mrb[0].mxu0 %v803
      %v1433 = vpop.f32.mrb[0].mxu0
      %v1434 = vadd.f32 %v485, %v1433
      %v1435 = vpop.f32.mrb[0].mxu0
      %v1436 = vpop.f32.mrb[0].mxu0
      %v1437 = vadd.f32 %v485, %v1436
      %v1438 = vpop.f32.mrb[0].mxu0
      %1439 = vmatprep.mubr.bf16.mxu0 0
      %1440 = vmatmul.mubr.bf16.gmra.mrb[0].mxu0 %v804
      %v1441 = vpop.f32.mrb[0].mxu0
      %v1442 = vadd.f32 %v485, %v1441
      %v1443 = vpop.f32.mrb[0].mxu0
      %v1444 = vpop.f32.mrb[0].mxu0
      %v1445 = vadd.f32 %v485, %v1444
      %v1446 = vpop.f32.mrb[0].mxu0
      %1447 = vmatprep.mubr.bf16.mxu0 0
      %1448 = vmatmul.mubr.bf16.gmra.mrb[0].mxu0 %v805
      %v1449 = vpop.f32.mrb[0].mxu0
      %v1450 = vadd.f32 %v485, %v1449
      %v1451 = vpop.f32.mrb[0].mxu0
      %v1452 = vpop.f32.mrb[0].mxu0
      %v1453 = vadd.f32 %v485, %v1452
      %v1454 = vpop.f32.mrb[0].mxu0
      %1455 = vmatprep.mubr.bf16.mxu0 0
      %1456 = vmatmul.mubr.bf16.gmra.mrb[0].mxu0 %v806
      %v1457 = vpop.f32.mrb[0].mxu0
      %v1458 = vadd.f32 %v485, %v1457
      %v1459 = vpop.f32.mrb[0].mxu0
      %v1460 = vpop.f32.mrb[0].mxu0
      %v1461 = vadd.f32 %v485, %v1460
      %v1462 = vpop.f32.mrb[0].mxu0
      %1463 = vdwg.mxu0
      %v1464 = vmax.f32 %v954, 0.0
      %v1465 = vmax.f32 %v957, 0.0
      %v1466 = vmax.f32 %v962, 0.0
      %v1467 = vmax.f32 %v965, 0.0
      %v1468 = vmax.f32 %v970, 0.0
      %v1469 = vmax.f32 %v973, 0.0
      %v1470 = vmax.f32 %v978, 0.0
      %v1471 = vmax.f32 %v981, 0.0
      %v1472 = vmax.f32 %v986, 0.0
      %v1473 = vmax.f32 %v989, 0.0
      %v1474 = vmax.f32 %v994, 0.0
      %v1475 = vmax.f32 %v997, 0.0
      %v1476 = vmax.f32 %v1002, 0.0
      %v1477 = vmax.f32 %v1005, 0.0
      %v1478 = vmax.f32 %v1010, 0.0
      %v1479 = vmax.f32 %v1013, 0.0
      %v1480 = vmax.f32 %v1018, 0.0
      %v1481 = vmax.f32 %v1021, 0.0
      %v1482 = vmax.f32 %v1026, 0.0
      %v1483 = vmax.f32 %v1029, 0.0
      %v1484 = vmax.f32 %v1034, 0.0
      %v1485 = vmax.f32 %v1037, 0.0
      %v1486 = vmax.f32 %v1042, 0.0
      %v1487 = vmax.f32 %v1045, 0.0
      %v1488 = vmax.f32 %v1050, 0.0
      %v1489 = vmax.f32 %v1053, 0.0
      %v1490 = vmax.f32 %v1058, 0.0
      %v1491 = vmax.f32 %v1061, 0.0
      %v1492 = vmax.f32 %v1066, 0.0
      %v1493 = vmax.f32 %v1069, 0.0
      %v1494 = vmax.f32 %v1074, 0.0
      %v1495 = vmax.f32 %v1077, 0.0
      %v1496 = vmax.f32 %v1082, 0.0
      %v1497 = vmax.f32 %v1085, 0.0
      %v1498 = vmax.f32 %v1090, 0.0
      %v1499 = vmax.f32 %v1093, 0.0
      %v1500 = vmax.f32 %v1098, 0.0
      %v1501 = vmax.f32 %v1101, 0.0
      %v1502 = vmax.f32 %v1106, 0.0
      %v1503 = vmax.f32 %v1109, 0.0
      %v1504 = vmax.f32 %v1114, 0.0
      %v1505 = vmax.f32 %v1117, 0.0
      %v1506 = vmax.f32 %v1122, 0.0
      %v1507 = vmax.f32 %v1125, 0.0
      %v1508 = vmax.f32 %v1130, 0.0
      %v1509 = vmax.f32 %v1133, 0.0
      %v1510 = vmax.f32 %v1138, 0.0
      %v1511 = vmax.f32 %v1141, 0.0
      %v1512 = vmax.f32 %v1146, 0.0
      %v1513 = vmax.f32 %v1149, 0.0
      %v1514 = vmax.f32 %v1154, 0.0
      %v1515 = vmax.f32 %v1157, 0.0
      %v1516 = vmax.f32 %v1162, 0.0
      %v1517 = vmax.f32 %v1165, 0.0
      %v1518 = vmax.f32 %v1170, 0.0
      %v1519 = vmax.f32 %v1173, 0.0
      %v1520 = vmax.f32 %v1178, 0.0
      %v1521 = vmax.f32 %v1181, 0.0
      %v1522 = vmax.f32 %v1186, 0.0
      %v1523 = vmax.f32 %v1189, 0.0
      %v1524 = vmax.f32 %v1194, 0.0
      %v1525 = vmax.f32 %v1197, 0.0
      %v1526 = vmax.f32 %v1202, 0.0
      %v1527 = vmax.f32 %v1205, 0.0
      %v1528 = vmax.f32 %v1210, 0.0
      %v1529 = vmax.f32 %v1213, 0.0
      %v1530 = vmax.f32 %v1218, 0.0
      %v1531 = vmax.f32 %v1221, 0.0
      %v1532 = vmax.f32 %v1226, 0.0
      %v1533 = vmax.f32 %v1229, 0.0
      %v1534 = vmax.f32 %v1234, 0.0
      %v1535 = vmax.f32 %v1237, 0.0
      %v1536 = vmax.f32 %v1242, 0.0
      %v1537 = vmax.f32 %v1245, 0.0
      %v1538 = vmax.f32 %v1250, 0.0
      %v1539 = vmax.f32 %v1253, 0.0
      %v1540 = vmax.f32 %v1258, 0.0
      %v1541 = vmax.f32 %v1261, 0.0
      %v1542 = vmax.f32 %v1266, 0.0
      %v1543 = vmax.f32 %v1269, 0.0
      %v1544 = vmax.f32 %v1274, 0.0
      %v1545 = vmax.f32 %v1277, 0.0
      %v1546 = vmax.f32 %v1282, 0.0
      %v1547 = vmax.f32 %v1285, 0.0
      %v1548 = vmax.f32 %v1290, 0.0
      %v1549 = vmax.f32 %v1293, 0.0
      %v1550 = vmax.f32 %v1298, 0.0
      %v1551 = vmax.f32 %v1301, 0.0
      %v1552 = vmax.f32 %v1306, 0.0
      %v1553 = vmax.f32 %v1309, 0.0
      %v1554 = vmax.f32 %v1314, 0.0
      %v1555 = vmax.f32 %v1317, 0.0
      %v1556 = vmax.f32 %v1322, 0.0
      %v1557 = vmax.f32 %v1325, 0.0
      %v1558 = vmax.f32 %v1330, 0.0
      %v1559 = vmax.f32 %v1333, 0.0
      %v1560 = vmax.f32 %v1338, 0.0
      %v1561 = vmax.f32 %v1341, 0.0
      %v1562 = vmax.f32 %v1346, 0.0
      %v1563 = vmax.f32 %v1349, 0.0
      %v1564 = vmax.f32 %v1354, 0.0
      %v1565 = vmax.f32 %v1357, 0.0
      %v1566 = vmax.f32 %v1362, 0.0
      %v1567 = vmax.f32 %v1365, 0.0
      %v1568 = vmax.f32 %v1370, 0.0
      %v1569 = vmax.f32 %v1373, 0.0
      %v1570 = vmax.f32 %v1378, 0.0
      %v1571 = vmax.f32 %v1381, 0.0
      %v1572 = vmax.f32 %v1386, 0.0
      %v1573 = vmax.f32 %v1389, 0.0
      %v1574 = vmax.f32 %v1394, 0.0
      %v1575 = vmax.f32 %v1397, 0.0
      %v1576 = vmax.f32 %v1402, 0.0
      %v1577 = vmax.f32 %v1405, 0.0
      %v1578 = vmax.f32 %v1410, 0.0
      %v1579 = vmax.f32 %v1413, 0.0
      %v1580 = vmax.f32 %v1418, 0.0
      %v1581 = vmax.f32 %v1421, 0.0
      %v1582 = vmax.f32 %v1426, 0.0
      %v1583 = vmax.f32 %v1429, 0.0
      %v1584 = vmax.f32 %v1434, 0.0
      %v1585 = vmax.f32 %v1437, 0.0
      %v1586 = vmax.f32 %v1442, 0.0
      %v1587 = vmax.f32 %v1445, 0.0
      %v1588 = vmax.f32 %v1450, 0.0
      %v1589 = vmax.f32 %v1453, 0.0
      %v1590 = vmax.f32 %v1458, 0.0
      %v1591 = vmax.f32 %v1461, 0.0
      %v1592 = vadd.f32 %v1464, %v1465
      %v1593 = vadd.f32 %v1592, %v1466
      %v1594 = vadd.f32 %v1593, %v1467
      %v1595 = vadd.f32 %v1594, %v1468
      %v1596 = vadd.f32 %v1595, %v1469
      %v1597 = vadd.f32 %v1596, %v1470
      %v1598 = vadd.f32 %v1597, %v1471
      %v1599 = vrot.slane %v1598, 4
      %v1600 = vadd.f32 %v1598, %v1599
      %v1601 = vrot.slane %v1600, 2
      %v1602 = vadd.f32 %v1600, %v1601
      %v1603 = vrot.slane %v1602, 1
      %v1604 = vadd.f32 %v1602, %v1603
      %v1605 = vadd.f32 %v1472, %v1473
      %v1606 = vadd.f32 %v1605, %v1474
      %v1607 = vadd.f32 %v1606, %v1475
      %v1608 = vadd.f32 %v1607, %v1476
      %v1609 = vadd.f32 %v1608, %v1477
      %v1610 = vadd.f32 %v1609, %v1478
      %v1611 = vadd.f32 %v1610, %v1479
      %v1612 = vrot.slane %v1611, 4
      %v1613 = vadd.f32 %v1611, %v1612
      %v1614 = vrot.slane %v1613, 2
      %v1615 = vadd.f32 %v1613, %v1614
      %v1616 = vrot.slane %v1615, 1
      %v1617 = vadd.f32 %v1615, %v1616
      %v1618 = vadd.f32 %v1480, %v1481
      %v1619 = vadd.f32 %v1618, %v1482
      %v1620 = vadd.f32 %v1619, %v1483
      %v1621 = vadd.f32 %v1620, %v1484
      %v1622 = vadd.f32 %v1621, %v1485
      %v1623 = vadd.f32 %v1622, %v1486
      %v1624 = vadd.f32 %v1623, %v1487
      %v1625 = vrot.slane %v1624, 4
      %v1626 = vadd.f32 %v1624, %v1625
      %v1627 = vrot.slane %v1626, 2
      %v1628 = vadd.f32 %v1626, %v1627
      %v1629 = vrot.slane %v1628, 1
      %v1630 = vadd.f32 %v1628, %v1629
      %v1631 = vadd.f32 %v1488, %v1489
      %v1632 = vadd.f32 %v1631, %v1490
      %v1633 = vadd.f32 %v1632, %v1491
      %v1634 = vadd.f32 %v1633, %v1492
      %v1635 = vadd.f32 %v1634, %v1493
      %v1636 = vadd.f32 %v1635, %v1494
      %v1637 = vadd.f32 %v1636, %v1495
      %v1638 = vrot.slane %v1637, 4
      %v1639 = vadd.f32 %v1637, %v1638
      %v1640 = vrot.slane %v1639, 2
      %v1641 = vadd.f32 %v1639, %v1640
      %v1642 = vrot.slane %v1641, 1
      %v1643 = vadd.f32 %v1641, %v1642
      %v1644 = vadd.f32 %v1496, %v1497
      %v1645 = vadd.f32 %v1644, %v1498
      %v1646 = vadd.f32 %v1645, %v1499
      %v1647 = vadd.f32 %v1646, %v1500
      %v1648 = vadd.f32 %v1647, %v1501
      %v1649 = vadd.f32 %v1648, %v1502
      %v1650 = vadd.f32 %v1649, %v1503
      %v1651 = vrot.slane %v1650, 4
      %v1652 = vadd.f32 %v1650, %v1651
      %v1653 = vrot.slane %v1652, 2
      %v1654 = vadd.f32 %v1652, %v1653
      %v1655 = vrot.slane %v1654, 1
      %v1656 = vadd.f32 %v1654, %v1655
      %v1657 = vadd.f32 %v1504, %v1505
      %v1658 = vadd.f32 %v1657, %v1506
      %v1659 = vadd.f32 %v1658, %v1507
      %v1660 = vadd.f32 %v1659, %v1508
      %v1661 = vadd.f32 %v1660, %v1509
      %v1662 = vadd.f32 %v1661, %v1510
      %v1663 = vadd.f32 %v1662, %v1511
      %v1664 = vrot.slane %v1663, 4
      %v1665 = vadd.f32 %v1663, %v1664
      %v1666 = vrot.slane %v1665, 2
      %v1667 = vadd.f32 %v1665, %v1666
      %v1668 = vrot.slane %v1667, 1
      %v1669 = vadd.f32 %v1667, %v1668
      %v1670 = vadd.f32 %v1512, %v1513
      %v1671 = vadd.f32 %v1670, %v1514
      %v1672 = vadd.f32 %v1671, %v1515
      %v1673 = vadd.f32 %v1672, %v1516
      %v1674 = vadd.f32 %v1673, %v1517
      %v1675 = vadd.f32 %v1674, %v1518
      %v1676 = vadd.f32 %v1675, %v1519
      %v1677 = vrot.slane %v1676, 4
      %v1678 = vadd.f32 %v1676, %v1677
      %v1679 = vrot.slane %v1678, 2
      %v1680 = vadd.f32 %v1678, %v1679
      %v1681 = vrot.slane %v1680, 1
      %v1682 = vadd.f32 %v1680, %v1681
      %v1683 = vadd.f32 %v1520, %v1521
      %v1684 = vadd.f32 %v1683, %v1522
      %v1685 = vadd.f32 %v1684, %v1523
      %v1686 = vadd.f32 %v1685, %v1524
      %v1687 = vadd.f32 %v1686, %v1525
      %v1688 = vadd.f32 %v1687, %v1526
      %v1689 = vadd.f32 %v1688, %v1527
      %v1690 = vrot.slane %v1689, 4
      %v1691 = vadd.f32 %v1689, %v1690
      %v1692 = vrot.slane %v1691, 2
      %v1693 = vadd.f32 %v1691, %v1692
      %v1694 = vrot.slane %v1693, 1
      %v1695 = vadd.f32 %v1693, %v1694
      %v1696 = vadd.f32 %v1528, %v1529
      %v1697 = vadd.f32 %v1696, %v1530
      %v1698 = vadd.f32 %v1697, %v1531
      %v1699 = vadd.f32 %v1698, %v1532
      %v1700 = vadd.f32 %v1699, %v1533
      %v1701 = vadd.f32 %v1700, %v1534
      %v1702 = vadd.f32 %v1701, %v1535
      %v1703 = vrot.slane %v1702, 4
      %v1704 = vadd.f32 %v1702, %v1703
      %v1705 = vrot.slane %v1704, 2
      %v1706 = vadd.f32 %v1704, %v1705
      %v1707 = vrot.slane %v1706, 1
      %v1708 = vadd.f32 %v1706, %v1707
      %v1709 = vadd.f32 %v1536, %v1537
      %v1710 = vadd.f32 %v1709, %v1538
      %v1711 = vadd.f32 %v1710, %v1539
      %v1712 = vadd.f32 %v1711, %v1540
      %v1713 = vadd.f32 %v1712, %v1541
      %v1714 = vadd.f32 %v1713, %v1542
      %v1715 = vadd.f32 %v1714, %v1543
      %v1716 = vrot.slane %v1715, 4
      %v1717 = vadd.f32 %v1715, %v1716
      %v1718 = vrot.slane %v1717, 2
      %v1719 = vadd.f32 %v1717, %v1718
      %v1720 = vrot.slane %v1719, 1
      %v1721 = vadd.f32 %v1719, %v1720
      %v1722 = vadd.f32 %v1544, %v1545
      %v1723 = vadd.f32 %v1722, %v1546
      %v1724 = vadd.f32 %v1723, %v1547
      %v1725 = vadd.f32 %v1724, %v1548
      %v1726 = vadd.f32 %v1725, %v1549
      %v1727 = vadd.f32 %v1726, %v1550
      %v1728 = vadd.f32 %v1727, %v1551
      %v1729 = vrot.slane %v1728, 4
      %v1730 = vadd.f32 %v1728, %v1729
      %v1731 = vrot.slane %v1730, 2
      %v1732 = vadd.f32 %v1730, %v1731
      %v1733 = vrot.slane %v1732, 1
      %v1734 = vadd.f32 %v1732, %v1733
      %v1735 = vadd.f32 %v1552, %v1553
      %v1736 = vadd.f32 %v1735, %v1554
      %v1737 = vadd.f32 %v1736, %v1555
      %v1738 = vadd.f32 %v1737, %v1556
      %v1739 = vadd.f32 %v1738, %v1557
      %v1740 = vadd.f32 %v1739, %v1558
      %v1741 = vadd.f32 %v1740, %v1559
      %v1742 = vrot.slane %v1741, 4
      %v1743 = vadd.f32 %v1741, %v1742
      %v1744 = vrot.slane %v1743, 2
      %v1745 = vadd.f32 %v1743, %v1744
      %v1746 = vrot.slane %v1745, 1
      %v1747 = vadd.f32 %v1745, %v1746
      %v1748 = vadd.f32 %v1560, %v1561
      %v1749 = vadd.f32 %v1748, %v1562
      %v1750 = vadd.f32 %v1749, %v1563
      %v1751 = vadd.f32 %v1750, %v1564
      %v1752 = vadd.f32 %v1751, %v1565
      %v1753 = vadd.f32 %v1752, %v1566
      %v1754 = vadd.f32 %v1753, %v1567
      %v1755 = vrot.slane %v1754, 4
      %v1756 = vadd.f32 %v1754, %v1755
      %v1757 = vrot.slane %v1756, 2
      %v1758 = vadd.f32 %v1756, %v1757
      %v1759 = vrot.slane %v1758, 1
      %v1760 = vadd.f32 %v1758, %v1759
      %v1761 = vadd.f32 %v1568, %v1569
      %v1762 = vadd.f32 %v1761, %v1570
      %v1763 = vadd.f32 %v1762, %v1571
      %v1764 = vadd.f32 %v1763, %v1572
      %v1765 = vadd.f32 %v1764, %v1573
      %v1766 = vadd.f32 %v1765, %v1574
      %v1767 = vadd.f32 %v1766, %v1575
      %v1768 = vrot.slane %v1767, 4
      %v1769 = vadd.f32 %v1767, %v1768
      %v1770 = vrot.slane %v1769, 2
      %v1771 = vadd.f32 %v1769, %v1770
      %v1772 = vrot.slane %v1771, 1
      %v1773 = vadd.f32 %v1771, %v1772
      %v1774 = vadd.f32 %v1576, %v1577
      %v1775 = vadd.f32 %v1774, %v1578
      %v1776 = vadd.f32 %v1775, %v1579
      %v1777 = vadd.f32 %v1776, %v1580
      %v1778 = vadd.f32 %v1777, %v1581
      %v1779 = vadd.f32 %v1778, %v1582
      %v1780 = vadd.f32 %v1779, %v1583
      %v1781 = vrot.slane %v1780, 4
      %v1782 = vadd.f32 %v1780, %v1781
      %v1783 = vrot.slane %v1782, 2
      %v1784 = vadd.f32 %v1782, %v1783
      %v1785 = vrot.slane %v1784, 1
      %v1786 = vadd.f32 %v1784, %v1785
      %v1787 = vadd.f32 %v1584, %v1585
      %v1788 = vadd.f32 %v1787, %v1586
      %v1789 = vadd.f32 %v1788, %v1587
      %v1790 = vadd.f32 %v1789, %v1588
      %v1791 = vadd.f32 %v1790, %v1589
      %v1792 = vadd.f32 %v1791, %v1590
      %v1793 = vadd.f32 %v1792, %v1591
      %v1794 = vrot.slane %v1793, 4
      %v1795 = vadd.f32 %v1793, %v1794
      %v1796 = vrot.slane %v1795, 2
      %v1797 = vadd.f32 %v1795, %v1796
      %v1798 = vrot.slane %v1797, 1
      %v1799 = vadd.f32 %v1797, %v1798
      %v1800 = vadd.f32 %v1604, 0.0
      %v1801 = vadd.f32 %v1617, 0.0
      %v1802 = vadd.f32 %v1630, 0.0
      %v1803 = vadd.f32 %v1643, 0.0
      %v1804 = vadd.f32 %v1656, 0.0
      %v1805 = vadd.f32 %v1669, 0.0
      %v1806 = vadd.f32 %v1682, 0.0
      %v1807 = vadd.f32 %v1695, 0.0
      %v1808 = vadd.f32 %v1708, 0.0
      %v1809 = vadd.f32 %v1721, 0.0
      %v1810 = vadd.f32 %v1734, 0.0
      %v1811 = vadd.f32 %v1747, 0.0
      %v1812 = vadd.f32 %v1760, 0.0
      %v1813 = vadd.f32 %v1773, 0.0
      %v1814 = vadd.f32 %v1786, 0.0
      %v1815 = vadd.f32 %v1799, 0.0
      %v1816 = vld [vmem:[%s307 + $0x20] sm:$0xf]
      %v1817 = vld [vmem:[%s307 + $0x24] sm:$0xf]
      %v1818 = vld [vmem:[%s307 + $0x28] sm:$0xf]
      %v1819 = vld [vmem:[%s307 + $0x2c] sm:$0xf]
      %v1820 = vld [vmem:[%s307 + $0x30] sm:$0xf]
      %v1821 = vld [vmem:[%s307 + $0x34] sm:$0xf]
      %v1822 = vld [vmem:[%s307 + $0x38] sm:$0xf]
      %v1823 = vld [vmem:[%s307 + $0x3c] sm:$0xf]
      %v1824 = vld [vmem:[%s307 + $0xa0] sm:$0xf]
      %v1825 = vld [vmem:[%s307 + $0xa4] sm:$0xf]
      %v1826 = vld [vmem:[%s307 + $0xa8] sm:$0xf]
      %v1827 = vld [vmem:[%s307 + $0xac] sm:$0xf]
      %v1828 = vld [vmem:[%s307 + $0xb0] sm:$0xf]
      %v1829 = vld [vmem:[%s307 + $0xb4] sm:$0xf]
      %v1830 = vld [vmem:[%s307 + $0xb8] sm:$0xf]
      %v1831 = vld [vmem:[%s307 + $0xbc] sm:$0xf]
      %v1832 = vld [vmem:[%s307 + $0x120] sm:$0xf]
      %v1833 = vld [vmem:[%s307 + $0x124] sm:$0xf]
      %v1834 = vld [vmem:[%s307 + $0x128] sm:$0xf]
      %v1835 = vld [vmem:[%s307 + $0x12c] sm:$0xf]
      %v1836 = vld [vmem:[%s307 + $0x130] sm:$0xf]
      %v1837 = vld [vmem:[%s307 + $0x134] sm:$0xf]
      %v1838 = vld [vmem:[%s307 + $0x138] sm:$0xf]
      %v1839 = vld [vmem:[%s307 + $0x13c] sm:$0xf]
      %v1840 = vld [vmem:[%s307 + $0x1a0] sm:$0xf]
      %v1841 = vld [vmem:[%s307 + $0x1a4] sm:$0xf]
      %v1842 = vld [vmem:[%s307 + $0x1a8] sm:$0xf]
      %v1843 = vld [vmem:[%s307 + $0x1ac] sm:$0xf]
      %v1844 = vld [vmem:[%s307 + $0x1b0] sm:$0xf]
      %v1845 = vld [vmem:[%s307 + $0x1b4] sm:$0xf]
      %v1846 = vld [vmem:[%s307 + $0x1b8] sm:$0xf]
      %v1847 = vld [vmem:[%s307 + $0x1bc] sm:$0xf]
      %v1848 = vld [vmem:[%s307 + $0x220] sm:$0xf]
      %v1849 = vld [vmem:[%s307 + $0x224] sm:$0xf]
      %v1850 = vld [vmem:[%s307 + $0x228] sm:$0xf]
      %v1851 = vld [vmem:[%s307 + $0x22c] sm:$0xf]
      %v1852 = vld [vmem:[%s307 + $0x230] sm:$0xf]
      %v1853 = vld [vmem:[%s307 + $0x234] sm:$0xf]
      %v1854 = vld [vmem:[%s307 + $0x238] sm:$0xf]
      %v1855 = vld [vmem:[%s307 + $0x23c] sm:$0xf]
      %v1856 = vld [vmem:[%s307 + $0x2a0] sm:$0xf]
      %v1857 = vld [vmem:[%s307 + $0x2a4] sm:$0xf]
      %v1858 = vld [vmem:[%s307 + $0x2a8] sm:$0xf]
      %v1859 = vld [vmem:[%s307 + $0x2ac] sm:$0xf]
      %v1860 = vld [vmem:[%s307 + $0x2b0] sm:$0xf]
      %v1861 = vld [vmem:[%s307 + $0x2b4] sm:$0xf]
      %v1862 = vld [vmem:[%s307 + $0x2b8] sm:$0xf]
      %v1863 = vld [vmem:[%s307 + $0x2bc] sm:$0xf]
      %v1864 = vld [vmem:[%s307 + $0x320] sm:$0xf]
      %v1865 = vld [vmem:[%s307 + $0x324] sm:$0xf]
      %v1866 = vld [vmem:[%s307 + $0x328] sm:$0xf]
      %v1867 = vld [vmem:[%s307 + $0x32c] sm:$0xf]
      %v1868 = vld [vmem:[%s307 + $0x330] sm:$0xf]
      %v1869 = vld [vmem:[%s307 + $0x334] sm:$0xf]
      %v1870 = vld [vmem:[%s307 + $0x338] sm:$0xf]
      %v1871 = vld [vmem:[%s307 + $0x33c] sm:$0xf]
      %v1872 = vld [vmem:[%s307 + $0x3a0] sm:$0xf]
      %v1873 = vld [vmem:[%s307 + $0x3a4] sm:$0xf]
      %v1874 = vld [vmem:[%s307 + $0x3a8] sm:$0xf]
      %v1875 = vld [vmem:[%s307 + $0x3ac] sm:$0xf]
      %v1876 = vld [vmem:[%s307 + $0x3b0] sm:$0xf]
      %v1877 = vld [vmem:[%s307 + $0x3b4] sm:$0xf]
      %v1878 = vld [vmem:[%s307 + $0x3b8] sm:$0xf]
      %v1879 = vld [vmem:[%s307 + $0x3bc] sm:$0xf]
      %v1880 = vld [vmem:[%s307 + $0x420] sm:$0xf]
      %v1881 = vld [vmem:[%s307 + $0x424] sm:$0xf]
      %v1882 = vld [vmem:[%s307 + $0x428] sm:$0xf]
      %v1883 = vld [vmem:[%s307 + $0x42c] sm:$0xf]
      %v1884 = vld [vmem:[%s307 + $0x430] sm:$0xf]
      %v1885 = vld [vmem:[%s307 + $0x434] sm:$0xf]
      %v1886 = vld [vmem:[%s307 + $0x438] sm:$0xf]
      %v1887 = vld [vmem:[%s307 + $0x43c] sm:$0xf]
      %v1888 = vld [vmem:[%s307 + $0x4a0] sm:$0xf]
      %v1889 = vld [vmem:[%s307 + $0x4a4] sm:$0xf]
      %v1890 = vld [vmem:[%s307 + $0x4a8] sm:$0xf]
      %v1891 = vld [vmem:[%s307 + $0x4ac] sm:$0xf]
      %v1892 = vld [vmem:[%s307 + $0x4b0] sm:$0xf]
      %v1893 = vld [vmem:[%s307 + $0x4b4] sm:$0xf]
      %v1894 = vld [vmem:[%s307 + $0x4b8] sm:$0xf]
      %v1895 = vld [vmem:[%s307 + $0x4bc] sm:$0xf]
      %v1896 = vld [vmem:[%s307 + $0x520] sm:$0xf]
      %v1897 = vld [vmem:[%s307 + $0x524] sm:$0xf]
      %v1898 = vld [vmem:[%s307 + $0x528] sm:$0xf]
      %v1899 = vld [vmem:[%s307 + $0x52c] sm:$0xf]
      %v1900 = vld [vmem:[%s307 + $0x530] sm:$0xf]
      %v1901 = vld [vmem:[%s307 + $0x534] sm:$0xf]
      %v1902 = vld [vmem:[%s307 + $0x538] sm:$0xf]
      %v1903 = vld [vmem:[%s307 + $0x53c] sm:$0xf]
      %v1904 = vld [vmem:[%s307 + $0x5a0] sm:$0xf]
      %v1905 = vld [vmem:[%s307 + $0x5a4] sm:$0xf]
      %v1906 = vld [vmem:[%s307 + $0x5a8] sm:$0xf]
      %v1907 = vld [vmem:[%s307 + $0x5ac] sm:$0xf]
      %v1908 = vld [vmem:[%s307 + $0x5b0] sm:$0xf]
      %v1909 = vld [vmem:[%s307 + $0x5b4] sm:$0xf]
      %v1910 = vld [vmem:[%s307 + $0x5b8] sm:$0xf]
      %v1911 = vld [vmem:[%s307 + $0x5bc] sm:$0xf]
      %v1912 = vld [vmem:[%s307 + $0x620] sm:$0xf]
      %v1913 = vld [vmem:[%s307 + $0x624] sm:$0xf]
      %v1914 = vld [vmem:[%s307 + $0x628] sm:$0xf]
      %v1915 = vld [vmem:[%s307 + $0x62c] sm:$0xf]
      %v1916 = vld [vmem:[%s307 + $0x630] sm:$0xf]
      %v1917 = vld [vmem:[%s307 + $0x634] sm:$0xf]
      %v1918 = vld [vmem:[%s307 + $0x638] sm:$0xf]
      %v1919 = vld [vmem:[%s307 + $0x63c] sm:$0xf]
      %v1920 = vld [vmem:[%s307 + $0x6a0] sm:$0xf]
      %v1921 = vld [vmem:[%s307 + $0x6a4] sm:$0xf]
      %v1922 = vld [vmem:[%s307 + $0x6a8] sm:$0xf]
      %v1923 = vld [vmem:[%s307 + $0x6ac] sm:$0xf]
      %v1924 = vld [vmem:[%s307 + $0x6b0] sm:$0xf]
      %v1925 = vld [vmem:[%s307 + $0x6b4] sm:$0xf]
      %v1926 = vld [vmem:[%s307 + $0x6b8] sm:$0xf]
      %v1927 = vld [vmem:[%s307 + $0x6bc] sm:$0xf]
      %v1928 = vld [vmem:[%s307 + $0x720] sm:$0xf]
      %v1929 = vld [vmem:[%s307 + $0x724] sm:$0xf]
      %v1930 = vld [vmem:[%s307 + $0x728] sm:$0xf]
      %v1931 = vld [vmem:[%s307 + $0x72c] sm:$0xf]
      %v1932 = vld [vmem:[%s307 + $0x730] sm:$0xf]
      %v1933 = vld [vmem:[%s307 + $0x734] sm:$0xf]
      %v1934 = vld [vmem:[%s307 + $0x738] sm:$0xf]
      %v1935 = vld [vmem:[%s307 + $0x73c] sm:$0xf]
      %v1936 = vld [vmem:[%s307 + $0x7a0] sm:$0xf]
      %v1937 = vld [vmem:[%s307 + $0x7a4] sm:$0xf]
      %v1938 = vld [vmem:[%s307 + $0x7a8] sm:$0xf]
      %v1939 = vld [vmem:[%s307 + $0x7ac] sm:$0xf]
      %v1940 = vld [vmem:[%s307 + $0x7b0] sm:$0xf]
      %v1941 = vld [vmem:[%s307 + $0x7b4] sm:$0xf]
      %v1942 = vld [vmem:[%s307 + $0x7b8] sm:$0xf]
      %v1943 = vld [vmem:[%s307 + $0x7bc] sm:$0xf]
      %v2072 = vunpack.c.l.b16 %v1816
      %v2073 = vunpack.c.l.b16 %v1817
      %v2074 = vunpack.c.l.b16 %v1818
      %v2075 = vunpack.c.l.b16 %v1819
      %v2076 = vunpack.c.l.b16 %v1820
      %v2077 = vunpack.c.l.b16 %v1821
      %v2078 = vunpack.c.l.b16 %v1822
      %v2079 = vunpack.c.l.b16 %v1823
      %v2080 = vunpack.c.l.b16 %v1824
      %v2081 = vunpack.c.l.b16 %v1825
      %v2082 = vunpack.c.l.b16 %v1826
      %v2083 = vunpack.c.l.b16 %v1827
      %v2084 = vunpack.c.l.b16 %v1828
      %v2085 = vunpack.c.l.b16 %v1829
      %v2086 = vunpack.c.l.b16 %v1830
      %v2087 = vunpack.c.l.b16 %v1831
      %v2088 = vunpack.c.l.b16 %v1832
      %v2089 = vunpack.c.l.b16 %v1833
      %v2090 = vunpack.c.l.b16 %v1834
      %v2091 = vunpack.c.l.b16 %v1835
      %v2092 = vunpack.c.l.b16 %v1836
      %v2093 = vunpack.c.l.b16 %v1837
      %v2094 = vunpack.c.l.b16 %v1838
      %v2095 = vunpack.c.l.b16 %v1839
      %v2096 = vunpack.c.l.b16 %v1840
      %v2097 = vunpack.c.l.b16 %v1841
      %v2098 = vunpack.c.l.b16 %v1842
      %v2099 = vunpack.c.l.b16 %v1843
      %v2100 = vunpack.c.l.b16 %v1844
      %v2101 = vunpack.c.l.b16 %v1845
      %v2102 = vunpack.c.l.b16 %v1846
      %v2103 = vunpack.c.l.b16 %v1847
      %v2104 = vunpack.c.l.b16 %v1848
      %v2105 = vunpack.c.l.b16 %v1849
      %v2106 = vunpack.c.l.b16 %v1850
      %v2107 = vunpack.c.l.b16 %v1851
      %v2108 = vunpack.c.l.b16 %v1852
      %v2109 = vunpack.c.l.b16 %v1853
      %v2110 = vunpack.c.l.b16 %v1854
      %v2111 = vunpack.c.l.b16 %v1855
      %v2112 = vunpack.c.l.b16 %v1856
      %v2113 = vunpack.c.l.b16 %v1857
      %v2114 = vunpack.c.l.b16 %v1858
      %v2115 = vunpack.c.l.b16 %v1859
      %v2116 = vunpack.c.l.b16 %v1860
      %v2117 = vunpack.c.l.b16 %v1861
      %v2118 = vunpack.c.l.b16 %v1862
      %v2119 = vunpack.c.l.b16 %v1863
      %v2120 = vunpack.c.l.b16 %v1864
      %v2121 = vunpack.c.l.b16 %v1865
      %v2122 = vunpack.c.l.b16 %v1866
      %v2123 = vunpack.c.l.b16 %v1867
      %v2124 = vunpack.c.l.b16 %v1868
      %v2125 = vunpack.c.l.b16 %v1869
      %v2126 = vunpack.c.l.b16 %v1870
      %v2127 = vunpack.c.l.b16 %v1871
      %v2128 = vunpack.c.l.b16 %v1872
      %v2129 = vunpack.c.l.b16 %v1873
      %v2130 = vunpack.c.l.b16 %v1874
      %v2131 = vunpack.c.l.b16 %v1875
      %v2132 = vunpack.c.l.b16 %v1876
      %v2133 = vunpack.c.l.b16 %v1877
      %v2134 = vunpack.c.l.b16 %v1878
      %v2135 = vunpack.c.l.b16 %v1879
      %v2136 = vunpack.c.l.b16 %v1880
      %v2137 = vunpack.c.l.b16 %v1881
      %v2138 = vunpack.c.l.b16 %v1882
      %v2139 = vunpack.c.l.b16 %v1883
      %v2140 = vunpack.c.l.b16 %v1884
      %v2141 = vunpack.c.l.b16 %v1885
      %v2142 = vunpack.c.l.b16 %v1886
      %v2143 = vunpack.c.l.b16 %v1887
      %v2144 = vunpack.c.l.b16 %v1888
      %v2145 = vunpack.c.l.b16 %v1889
      %v2146 = vunpack.c.l.b16 %v1890
      %v2147 = vunpack.c.l.b16 %v1891
      %v2148 = vunpack.c.l.b16 %v1892
      %v2149 = vunpack.c.l.b16 %v1893
      %v2150 = vunpack.c.l.b16 %v1894
      %v2151 = vunpack.c.l.b16 %v1895
      %v2152 = vunpack.c.l.b16 %v1896
      %v2153 = vunpack.c.l.b16 %v1897
      %v2154 = vunpack.c.l.b16 %v1898
      %v2155 = vunpack.c.l.b16 %v1899
      %v2156 = vunpack.c.l.b16 %v1900
      %v2157 = vunpack.c.l.b16 %v1901
      %v2158 = vunpack.c.l.b16 %v1902
      %v2159 = vunpack.c.l.b16 %v1903
      %v2160 = vunpack.c.l.b16 %v1904
      %v2161 = vunpack.c.l.b16 %v1905
      %v2162 = vunpack.c.l.b16 %v1906
      %v2163 = vunpack.c.l.b16 %v1907
      %v2164 = vunpack.c.l.b16 %v1908
      %v2165 = vunpack.c.l.b16 %v1909
      %v2166 = vunpack.c.l.b16 %v1910
      %v2167 = vunpack.c.l.b16 %v1911
      %v2168 = vunpack.c.l.b16 %v1912
      %v2169 = vunpack.c.l.b16 %v1913
      %v2170 = vunpack.c.l.b16 %v1914
      %v2171 = vunpack.c.l.b16 %v1915
      %v2172 = vunpack.c.l.b16 %v1916
      %v2173 = vunpack.c.l.b16 %v1917
      %v2174 = vunpack.c.l.b16 %v1918
      %v2175 = vunpack.c.l.b16 %v1919
      %v2176 = vunpack.c.l.b16 %v1920
      %v2177 = vunpack.c.l.b16 %v1921
      %v2178 = vunpack.c.l.b16 %v1922
      %v2179 = vunpack.c.l.b16 %v1923
      %v2180 = vunpack.c.l.b16 %v1924
      %v2181 = vunpack.c.l.b16 %v1925
      %v2182 = vunpack.c.l.b16 %v1926
      %v2183 = vunpack.c.l.b16 %v1927
      %v2184 = vunpack.c.l.b16 %v1928
      %v2185 = vunpack.c.l.b16 %v1929
      %v2186 = vunpack.c.l.b16 %v1930
      %v2187 = vunpack.c.l.b16 %v1931
      %v2188 = vunpack.c.l.b16 %v1932
      %v2189 = vunpack.c.l.b16 %v1933
      %v2190 = vunpack.c.l.b16 %v1934
      %v2191 = vunpack.c.l.b16 %v1935
      %v2192 = vunpack.c.l.b16 %v1936
      %v2193 = vunpack.c.l.b16 %v1937
      %v2194 = vunpack.c.l.b16 %v1938
      %v2195 = vunpack.c.l.b16 %v1939
      %v2196 = vunpack.c.l.b16 %v1940
      %v2197 = vunpack.c.l.b16 %v1941
      %v2198 = vunpack.c.l.b16 %v1942
      %v2199 = vunpack.c.l.b16 %v1943
      %v2200 = vpack.c.b16 %v2073, %v2072
      %v2201 = vpack.c.b16 %v2075, %v2074
      %v2202 = vpack.c.b16 %v2077, %v2076
      %v2203 = vpack.c.b16 %v2079, %v2078
      %v2204 = vpack.c.b16 %v2081, %v2080
      %v2205 = vpack.c.b16 %v2083, %v2082
      %v2206 = vpack.c.b16 %v2085, %v2084
      %v2207 = vpack.c.b16 %v2087, %v2086
      %v2208 = vpack.c.b16 %v2089, %v2088
      %v2209 = vpack.c.b16 %v2091, %v2090
      %v2210 = vpack.c.b16 %v2093, %v2092
      %v2211 = vpack.c.b16 %v2095, %v2094
      %v2212 = vpack.c.b16 %v2097, %v2096
      %v2213 = vpack.c.b16 %v2099, %v2098
      %v2214 = vpack.c.b16 %v2101, %v2100
      %v2215 = vpack.c.b16 %v2103, %v2102
      %v2216 = vpack.c.b16 %v2105, %v2104
      %v2217 = vpack.c.b16 %v2107, %v2106
      %v2218 = vpack.c.b16 %v2109, %v2108
      %v2219 = vpack.c.b16 %v2111, %v2110
      %v2220 = vpack.c.b16 %v2113, %v2112
      %v2221 = vpack.c.b16 %v2115, %v2114
      %v2222 = vpack.c.b16 %v2117, %v2116
      %v2223 = vpack.c.b16 %v2119, %v2118
      %v2224 = vpack.c.b16 %v2121, %v2120
      %v2225 = vpack.c.b16 %v2123, %v2122
      %v2226 = vpack.c.b16 %v2125, %v2124
      %v2227 = vpack.c.b16 %v2127, %v2126
      %v2228 = vpack.c.b16 %v2129, %v2128
      %v2229 = vpack.c.b16 %v2131, %v2130
      %v2230 = vpack.c.b16 %v2133, %v2132
      %v2231 = vpack.c.b16 %v2135, %v2134
      %v2232 = vpack.c.b16 %v2137, %v2136
      %v2233 = vpack.c.b16 %v2139, %v2138
      %v2234 = vpack.c.b16 %v2141, %v2140
      %v2235 = vpack.c.b16 %v2143, %v2142
      %v2236 = vpack.c.b16 %v2145, %v2144
      %v2237 = vpack.c.b16 %v2147, %v2146
      %v2238 = vpack.c.b16 %v2149, %v2148
      %v2239 = vpack.c.b16 %v2151, %v2150
      %v2240 = vpack.c.b16 %v2153, %v2152
      %v2241 = vpack.c.b16 %v2155, %v2154
      %v2242 = vpack.c.b16 %v2157, %v2156
      %v2243 = vpack.c.b16 %v2159, %v2158
      %v2244 = vpack.c.b16 %v2161, %v2160
      %v2245 = vpack.c.b16 %v2163, %v2162
      %v2246 = vpack.c.b16 %v2165, %v2164
      %v2247 = vpack.c.b16 %v2167, %v2166
      %v2248 = vpack.c.b16 %v2169, %v2168
      %v2249 = vpack.c.b16 %v2171, %v2170
      %v2250 = vpack.c.b16 %v2173, %v2172
      %v2251 = vpack.c.b16 %v2175, %v2174
      %v2252 = vpack.c.b16 %v2177, %v2176
      %v2253 = vpack.c.b16 %v2179, %v2178
      %v2254 = vpack.c.b16 %v2181, %v2180
      %v2255 = vpack.c.b16 %v2183, %v2182
      %v2256 = vpack.c.b16 %v2185, %v2184
      %v2257 = vpack.c.b16 %v2187, %v2186
      %v2258 = vpack.c.b16 %v2189, %v2188
      %v2259 = vpack.c.b16 %v2191, %v2190
      %v2260 = vpack.c.b16 %v2193, %v2192
      %v2261 = vpack.c.b16 %v2195, %v2194
      %v2262 = vpack.c.b16 %v2197, %v2196
      %v2263 = vpack.c.b16 %v2199, %v2198
      %2328 = vmatprep.subr.bf16.mxu0 0
      %2329 = vmatpush1.bf16.msra.mxu0 %v903
      %2330 = vmatprep.subr.bf16.mxu0 0
      %2331 = vmatpush1.bf16.msra.mxu0 %v904
      %2332 = vmatprep.subr.bf16.mxu0 0
      %2333 = vmatpush1.bf16.msra.mxu0 %v905
      %2334 = vmatprep.subr.bf16.mxu0 0
      %2335 = vmatpush1.bf16.msra.mxu0 %v906
      %2336 = vmatprep.subr.bf16.mxu0 0
      %2337 = vmatpush1.bf16.msra.mxu0 %v907
      %2338 = vmatprep.subr.bf16.mxu0 0
      %2339 = vmatpush1.bf16.msra.mxu0 %v908
      %2340 = vmatprep.subr.bf16.mxu0 0
      %2341 = vmatpush1.bf16.msra.mxu0 %v909
      %2342 = vmatprep.subr.bf16.mxu0 0
      %2343 = vmatpush1.bf16.msra.mxu0 %v910
      %2344 = vmatprep.subr.bf16.mxu0 0
      %2345 = vmatpush1.bf16.msra.mxu0 0
      %2346 = vmatprep.subr.bf16.mxu0 0
      %2347 = vmatpush1.bf16.msra.mxu0 0
      %2348 = vmatprep.subr.bf16.mxu0 0
      %2349 = vmatpush1.bf16.msra.mxu0 0
      %2350 = vmatprep.subr.bf16.mxu0 0
      %2351 = vmatpush1.bf16.msra.mxu0 0
      %2352 = vmatprep.subr.bf16.mxu0 0
      %2353 = vmatpush1.bf16.msra.mxu0 0
      %2354 = vmatprep.subr.bf16.mxu0 0
      %2355 = vmatpush1.bf16.msra.mxu0 0
      %2356 = vmatprep.subr.bf16.mxu0 0
      %2357 = vmatpush1.bf16.msra.mxu0 0
      %2358 = vmatprep.subr.bf16.mxu0 0
      %2359 = vmatpush1.bf16.msra.mxu0 0
      %2360 = vmatprep.mubr.bf16.mxu0 0
      %2361 = vmatmul.mubr.bf16.gmra.mrb[0].mxu0 %v2200
      %v2362 = vpop.f32.mrb[0].mxu0
      %v2363 = vadd.f32 %v485, %v2362
      %v2364 = vpop.f32.mrb[0].mxu0
      %v2365 = vpop.f32.mrb[0].mxu0
      %v2366 = vadd.f32 %v485, %v2365
      %v2367 = vpop.f32.mrb[0].mxu0
      %2368 = vmatprep.mubr.bf16.mxu0 0
      %2369 = vmatmul.mubr.bf16.gmra.mrb[0].mxu0 %v2201
      %v2370 = vpop.f32.mrb[0].mxu0
      %v2371 = vadd.f32 %v485, %v2370
      %v2372 = vpop.f32.mrb[0].mxu0
      %v2373 = vpop.f32.mrb[0].mxu0
      %v2374 = vadd.f32 %v485, %v2373
      %v2375 = vpop.f32.mrb[0].mxu0
      %2376 = vmatprep.mubr.bf16.mxu0 0
      %2377 = vmatmul.mubr.bf16.gmra.mrb[0].mxu0 %v2202
      %v2378 = vpop.f32.mrb[0].mxu0
      %v2379 = vadd.f32 %v485, %v2378
      %v2380 = vpop.f32.mrb[0].mxu0
      %v2381 = vpop.f32.mrb[0].mxu0
      %v2382 = vadd.f32 %v485, %v2381
      %v2383 = vpop.f32.mrb[0].mxu0
      %2384 = vmatprep.mubr.bf16.mxu0 0
      %2385 = vmatmul.mubr.bf16.gmra.mrb[0].mxu0 %v2203
      %v2386 = vpop.f32.mrb[0].mxu0
      %v2387 = vadd.f32 %v485, %v2386
      %v2388 = vpop.f32.mrb[0].mxu0
      %v2389 = vpop.f32.mrb[0].mxu0
      %v2390 = vadd.f32 %v485, %v2389
      %v2391 = vpop.f32.mrb[0].mxu0
      %2392 = vmatprep.mubr.bf16.mxu0 0
      %2393 = vmatmul.mubr.bf16.gmra.mrb[0].mxu0 %v2204
      %v2394 = vpop.f32.mrb[0].mxu0
      %v2395 = vadd.f32 %v485, %v2394
      %v2396 = vpop.f32.mrb[0].mxu0
      %v2397 = vpop.f32.mrb[0].mxu0
      %v2398 = vadd.f32 %v485, %v2397
      %v2399 = vpop.f32.mrb[0].mxu0
      %2400 = vmatprep.mubr.bf16.mxu0 0
      %2401 = vmatmul.mubr.bf16.gmra.mrb[0].mxu0 %v2205
      %v2402 = vpop.f32.mrb[0].mxu0
      %v2403 = vadd.f32 %v485, %v2402
      %v2404 = vpop.f32.mrb[0].mxu0
      %v2405 = vpop.f32.mrb[0].mxu0
      %v2406 = vadd.f32 %v485, %v2405
      %v2407 = vpop.f32.mrb[0].mxu0
      %2408 = vmatprep.mubr.bf16.mxu0 0
      %2409 = vmatmul.mubr.bf16.gmra.mrb[0].mxu0 %v2206
      %v2410 = vpop.f32.mrb[0].mxu0
      %v2411 = vadd.f32 %v485, %v2410
      %v2412 = vpop.f32.mrb[0].mxu0
      %v2413 = vpop.f32.mrb[0].mxu0
      %v2414 = vadd.f32 %v485, %v2413
      %v2415 = vpop.f32.mrb[0].mxu0
      %2416 = vmatprep.mubr.bf16.mxu0 0
      %2417 = vmatmul.mubr.bf16.gmra.mrb[0].mxu0 %v2207
      %v2418 = vpop.f32.mrb[0].mxu0
      %v2419 = vadd.f32 %v485, %v2418
      %v2420 = vpop.f32.mrb[0].mxu0
      %v2421 = vpop.f32.mrb[0].mxu0
      %v2422 = vadd.f32 %v485, %v2421
      %v2423 = vpop.f32.mrb[0].mxu0
      %2424 = vmatprep.mubr.bf16.mxu0 0
      %2425 = vmatmul.mubr.bf16.gmra.mrb[0].mxu0 %v2208
      %v2426 = vpop.f32.mrb[0].mxu0
      %v2427 = vadd.f32 %v485, %v2426
      %v2428 = vpop.f32.mrb[0].mxu0
      %v2429 = vpop.f32.mrb[0].mxu0
      %v2430 = vadd.f32 %v485, %v2429
      %v2431 = vpop.f32.mrb[0].mxu0
      %2432 = vmatprep.mubr.bf16.mxu0 0
      %2433 = vmatmul.mubr.bf16.gmra.mrb[0].mxu0 %v2209
      %v2434 = vpop.f32.mrb[0].mxu0
      %v2435 = vadd.f32 %v485, %v2434
      %v2436 = vpop.f32.mrb[0].mxu0
      %v2437 = vpop.f32.mrb[0].mxu0
      %v2438 = vadd.f32 %v485, %v2437
      %v2439 = vpop.f32.mrb[0].mxu0
      %2440 = vmatprep.mubr.bf16.mxu0 0
      %2441 = vmatmul.mubr.bf16.gmra.mrb[0].mxu0 %v2210
      %v2442 = vpop.f32.mrb[0].mxu0
      %v2443 = vadd.f32 %v485, %v2442
      %v2444 = vpop.f32.mrb[0].mxu0
      %v2445 = vpop.f32.mrb[0].mxu0
      %v2446 = vadd.f32 %v485, %v2445
      %v2447 = vpop.f32.mrb[0].mxu0
      %2448 = vmatprep.mubr.bf16.mxu0 0
      %2449 = vmatmul.mubr.bf16.gmra.mrb[0].mxu0 %v2211
      %v2450 = vpop.f32.mrb[0].mxu0
      %v2451 = vadd.f32 %v485, %v2450
      %v2452 = vpop.f32.mrb[0].mxu0
      %v2453 = vpop.f32.mrb[0].mxu0
      %v2454 = vadd.f32 %v485, %v2453
      %v2455 = vpop.f32.mrb[0].mxu0
      %2456 = vmatprep.mubr.bf16.mxu0 0
      %2457 = vmatmul.mubr.bf16.gmra.mrb[0].mxu0 %v2212
      %v2458 = vpop.f32.mrb[0].mxu0
      %v2459 = vadd.f32 %v485, %v2458
      %v2460 = vpop.f32.mrb[0].mxu0
      %v2461 = vpop.f32.mrb[0].mxu0
      %v2462 = vadd.f32 %v485, %v2461
      %v2463 = vpop.f32.mrb[0].mxu0
      %2464 = vmatprep.mubr.bf16.mxu0 0
      %2465 = vmatmul.mubr.bf16.gmra.mrb[0].mxu0 %v2213
      %v2466 = vpop.f32.mrb[0].mxu0
      %v2467 = vadd.f32 %v485, %v2466
      %v2468 = vpop.f32.mrb[0].mxu0
      %v2469 = vpop.f32.mrb[0].mxu0
      %v2470 = vadd.f32 %v485, %v2469
      %v2471 = vpop.f32.mrb[0].mxu0
      %2472 = vmatprep.mubr.bf16.mxu0 0
      %2473 = vmatmul.mubr.bf16.gmra.mrb[0].mxu0 %v2214
      %v2474 = vpop.f32.mrb[0].mxu0
      %v2475 = vadd.f32 %v485, %v2474
      %v2476 = vpop.f32.mrb[0].mxu0
      %v2477 = vpop.f32.mrb[0].mxu0
      %v2478 = vadd.f32 %v485, %v2477
      %v2479 = vpop.f32.mrb[0].mxu0
      %2480 = vmatprep.mubr.bf16.mxu0 0
      %2481 = vmatmul.mubr.bf16.gmra.mrb[0].mxu0 %v2215
      %v2482 = vpop.f32.mrb[0].mxu0
      %v2483 = vadd.f32 %v485, %v2482
      %v2484 = vpop.f32.mrb[0].mxu0
      %v2485 = vpop.f32.mrb[0].mxu0
      %v2486 = vadd.f32 %v485, %v2485
      %v2487 = vpop.f32.mrb[0].mxu0
      %2488 = vmatprep.mubr.bf16.mxu0 0
      %2489 = vmatmul.mubr.bf16.gmra.mrb[0].mxu0 %v2216
      %v2490 = vpop.f32.mrb[0].mxu0
      %v2491 = vadd.f32 %v485, %v2490
      %v2492 = vpop.f32.mrb[0].mxu0
      %v2493 = vpop.f32.mrb[0].mxu0
      %v2494 = vadd.f32 %v485, %v2493
      %v2495 = vpop.f32.mrb[0].mxu0
      %2496 = vmatprep.mubr.bf16.mxu0 0
      %2497 = vmatmul.mubr.bf16.gmra.mrb[0].mxu0 %v2217
      %v2498 = vpop.f32.mrb[0].mxu0
      %v2499 = vadd.f32 %v485, %v2498
      %v2500 = vpop.f32.mrb[0].mxu0
      %v2501 = vpop.f32.mrb[0].mxu0
      %v2502 = vadd.f32 %v485, %v2501
      %v2503 = vpop.f32.mrb[0].mxu0
      %2504 = vmatprep.mubr.bf16.mxu0 0
      %2505 = vmatmul.mubr.bf16.gmra.mrb[0].mxu0 %v2218
      %v2506 = vpop.f32.mrb[0].mxu0
      %v2507 = vadd.f32 %v485, %v2506
      %v2508 = vpop.f32.mrb[0].mxu0
      %v2509 = vpop.f32.mrb[0].mxu0
      %v2510 = vadd.f32 %v485, %v2509
      %v2511 = vpop.f32.mrb[0].mxu0
      %2512 = vmatprep.mubr.bf16.mxu0 0
      %2513 = vmatmul.mubr.bf16.gmra.mrb[0].mxu0 %v2219
      %v2514 = vpop.f32.mrb[0].mxu0
      %v2515 = vadd.f32 %v485, %v2514
      %v2516 = vpop.f32.mrb[0].mxu0
      %v2517 = vpop.f32.mrb[0].mxu0
      %v2518 = vadd.f32 %v485, %v2517
      %v2519 = vpop.f32.mrb[0].mxu0
      %2520 = vmatprep.mubr.bf16.mxu0 0
      %2521 = vmatmul.mubr.bf16.gmra.mrb[0].mxu0 %v2220
      %v2522 = vpop.f32.mrb[0].mxu0
      %v2523 = vadd.f32 %v485, %v2522
      %v2524 = vpop.f32.mrb[0].mxu0
      %v2525 = vpop.f32.mrb[0].mxu0
      %v2526 = vadd.f32 %v485, %v2525
      %v2527 = vpop.f32.mrb[0].mxu0
      %2528 = vmatprep.mubr.bf16.mxu0 0
      %2529 = vmatmul.mubr.bf16.gmra.mrb[0].mxu0 %v2221
      %v2530 = vpop.f32.mrb[0].mxu0
      %v2531 = vadd.f32 %v485, %v2530
      %v2532 = vpop.f32.mrb[0].mxu0
      %v2533 = vpop.f32.mrb[0].mxu0
      %v2534 = vadd.f32 %v485, %v2533
      %v2535 = vpop.f32.mrb[0].mxu0
      %2536 = vmatprep.mubr.bf16.mxu0 0
      %2537 = vmatmul.mubr.bf16.gmra.mrb[0].mxu0 %v2222
      %v2538 = vpop.f32.mrb[0].mxu0
      %v2539 = vadd.f32 %v485, %v2538
      %v2540 = vpop.f32.mrb[0].mxu0
      %v2541 = vpop.f32.mrb[0].mxu0
      %v2542 = vadd.f32 %v485, %v2541
      %v2543 = vpop.f32.mrb[0].mxu0
      %2544 = vmatprep.mubr.bf16.mxu0 0
      %2545 = vmatmul.mubr.bf16.gmra.mrb[0].mxu0 %v2223
      %v2546 = vpop.f32.mrb[0].mxu0
      %v2547 = vadd.f32 %v485, %v2546
      %v2548 = vpop.f32.mrb[0].mxu0
      %v2549 = vpop.f32.mrb[0].mxu0
      %v2550 = vadd.f32 %v485, %v2549
      %v2551 = vpop.f32.mrb[0].mxu0
      %2552 = vmatprep.mubr.bf16.mxu0 0
      %2553 = vmatmul.mubr.bf16.gmra.mrb[0].mxu0 %v2224
      %v2554 = vpop.f32.mrb[0].mxu0
      %v2555 = vadd.f32 %v485, %v2554
      %v2556 = vpop.f32.mrb[0].mxu0
      %v2557 = vpop.f32.mrb[0].mxu0
      %v2558 = vadd.f32 %v485, %v2557
      %v2559 = vpop.f32.mrb[0].mxu0
      %2560 = vmatprep.mubr.bf16.mxu0 0
      %2561 = vmatmul.mubr.bf16.gmra.mrb[0].mxu0 %v2225
      %v2562 = vpop.f32.mrb[0].mxu0
      %v2563 = vadd.f32 %v485, %v2562
      %v2564 = vpop.f32.mrb[0].mxu0
      %v2565 = vpop.f32.mrb[0].mxu0
      %v2566 = vadd.f32 %v485, %v2565
      %v2567 = vpop.f32.mrb[0].mxu0
      %2568 = vmatprep.mubr.bf16.mxu0 0
      %2569 = vmatmul.mubr.bf16.gmra.mrb[0].mxu0 %v2226
      %v2570 = vpop.f32.mrb[0].mxu0
      %v2571 = vadd.f32 %v485, %v2570
      %v2572 = vpop.f32.mrb[0].mxu0
      %v2573 = vpop.f32.mrb[0].mxu0
      %v2574 = vadd.f32 %v485, %v2573
      %v2575 = vpop.f32.mrb[0].mxu0
      %2576 = vmatprep.mubr.bf16.mxu0 0
      %2577 = vmatmul.mubr.bf16.gmra.mrb[0].mxu0 %v2227
      %v2578 = vpop.f32.mrb[0].mxu0
      %v2579 = vadd.f32 %v485, %v2578
      %v2580 = vpop.f32.mrb[0].mxu0
      %v2581 = vpop.f32.mrb[0].mxu0
      %v2582 = vadd.f32 %v485, %v2581
      %v2583 = vpop.f32.mrb[0].mxu0
      %2584 = vmatprep.mubr.bf16.mxu0 0
      %2585 = vmatmul.mubr.bf16.gmra.mrb[0].mxu0 %v2228
      %v2586 = vpop.f32.mrb[0].mxu0
      %v2587 = vadd.f32 %v485, %v2586
      %v2588 = vpop.f32.mrb[0].mxu0
      %v2589 = vpop.f32.mrb[0].mxu0
      %v2590 = vadd.f32 %v485, %v2589
      %v2591 = vpop.f32.mrb[0].mxu0
      %2592 = vmatprep.mubr.bf16.mxu0 0
      %2593 = vmatmul.mubr.bf16.gmra.mrb[0].mxu0 %v2229
      %v2594 = vpop.f32.mrb[0].mxu0
      %v2595 = vadd.f32 %v485, %v2594
      %v2596 = vpop.f32.mrb[0].mxu0
      %v2597 = vpop.f32.mrb[0].mxu0
      %v2598 = vadd.f32 %v485, %v2597
      %v2599 = vpop.f32.mrb[0].mxu0
      %2600 = vmatprep.mubr.bf16.mxu0 0
      %2601 = vmatmul.mubr.bf16.gmra.mrb[0].mxu0 %v2230
      %v2602 = vpop.f32.mrb[0].mxu0
      %v2603 = vadd.f32 %v485, %v2602
      %v2604 = vpop.f32.mrb[0].mxu0
      %v2605 = vpop.f32.mrb[0].mxu0
      %v2606 = vadd.f32 %v485, %v2605
      %v2607 = vpop.f32.mrb[0].mxu0
      %2608 = vmatprep.mubr.bf16.mxu0 0
      %2609 = vmatmul.mubr.bf16.gmra.mrb[0].mxu0 %v2231
      %v2610 = vpop.f32.mrb[0].mxu0
      %v2611 = vadd.f32 %v485, %v2610
      %v2612 = vpop.f32.mrb[0].mxu0
      %v2613 = vpop.f32.mrb[0].mxu0
      %v2614 = vadd.f32 %v485, %v2613
      %v2615 = vpop.f32.mrb[0].mxu0
      %2616 = vmatprep.mubr.bf16.mxu0 0
      %2617 = vmatmul.mubr.bf16.gmra.mrb[0].mxu0 %v2232
      %v2618 = vpop.f32.mrb[0].mxu0
      %v2619 = vadd.f32 %v485, %v2618
      %v2620 = vpop.f32.mrb[0].mxu0
      %v2621 = vpop.f32.mrb[0].mxu0
      %v2622 = vadd.f32 %v485, %v2621
      %v2623 = vpop.f32.mrb[0].mxu0
      %2624 = vmatprep.mubr.bf16.mxu0 0
      %2625 = vmatmul.mubr.bf16.gmra.mrb[0].mxu0 %v2233
      %v2626 = vpop.f32.mrb[0].mxu0
      %v2627 = vadd.f32 %v485, %v2626
      %v2628 = vpop.f32.mrb[0].mxu0
      %v2629 = vpop.f32.mrb[0].mxu0
      %v2630 = vadd.f32 %v485, %v2629
      %v2631 = vpop.f32.mrb[0].mxu0
      %2632 = vmatprep.mubr.bf16.mxu0 0
      %2633 = vmatmul.mubr.bf16.gmra.mrb[0].mxu0 %v2234
      %v2634 = vpop.f32.mrb[0].mxu0
      %v2635 = vadd.f32 %v485, %v2634
      %v2636 = vpop.f32.mrb[0].mxu0
      %v2637 = vpop.f32.mrb[0].mxu0
      %v2638 = vadd.f32 %v485, %v2637
      %v2639 = vpop.f32.mrb[0].mxu0
      %2640 = vmatprep.mubr.bf16.mxu0 0
      %2641 = vmatmul.mubr.bf16.gmra.mrb[0].mxu0 %v2235
      %v2642 = vpop.f32.mrb[0].mxu0
      %v2643 = vadd.f32 %v485, %v2642
      %v2644 = vpop.f32.mrb[0].mxu0
      %v2645 = vpop.f32.mrb[0].mxu0
      %v2646 = vadd.f32 %v485, %v2645
      %v2647 = vpop.f32.mrb[0].mxu0
      %2648 = vmatprep.mubr.bf16.mxu0 0
      %2649 = vmatmul.mubr.bf16.gmra.mrb[0].mxu0 %v2236
      %v2650 = vpop.f32.mrb[0].mxu0
      %v2651 = vadd.f32 %v485, %v2650
      %v2652 = vpop.f32.mrb[0].mxu0
      %v2653 = vpop.f32.mrb[0].mxu0
      %v2654 = vadd.f32 %v485, %v2653
      %v2655 = vpop.f32.mrb[0].mxu0
      %2656 = vmatprep.mubr.bf16.mxu0 0
      %2657 = vmatmul.mubr.bf16.gmra.mrb[0].mxu0 %v2237
      %v2658 = vpop.f32.mrb[0].mxu0
      %v2659 = vadd.f32 %v485, %v2658
      %v2660 = vpop.f32.mrb[0].mxu0
      %v2661 = vpop.f32.mrb[0].mxu0
      %v2662 = vadd.f32 %v485, %v2661
      %v2663 = vpop.f32.mrb[0].mxu0
      %2664 = vmatprep.mubr.bf16.mxu0 0
      %2665 = vmatmul.mubr.bf16.gmra.mrb[0].mxu0 %v2238
      %v2666 = vpop.f32.mrb[0].mxu0
      %v2667 = vadd.f32 %v485, %v2666
      %v2668 = vpop.f32.mrb[0].mxu0
      %v2669 = vpop.f32.mrb[0].mxu0
      %v2670 = vadd.f32 %v485, %v2669
      %v2671 = vpop.f32.mrb[0].mxu0
      %2672 = vmatprep.mubr.bf16.mxu0 0
      %2673 = vmatmul.mubr.bf16.gmra.mrb[0].mxu0 %v2239
      %v2674 = vpop.f32.mrb[0].mxu0
      %v2675 = vadd.f32 %v485, %v2674
      %v2676 = vpop.f32.mrb[0].mxu0
      %v2677 = vpop.f32.mrb[0].mxu0
      %v2678 = vadd.f32 %v485, %v2677
      %v2679 = vpop.f32.mrb[0].mxu0
      %2680 = vmatprep.mubr.bf16.mxu0 0
      %2681 = vmatmul.mubr.bf16.gmra.mrb[0].mxu0 %v2240
      %v2682 = vpop.f32.mrb[0].mxu0
      %v2683 = vadd.f32 %v485, %v2682
      %v2684 = vpop.f32.mrb[0].mxu0
      %v2685 = vpop.f32.mrb[0].mxu0
      %v2686 = vadd.f32 %v485, %v2685
      %v2687 = vpop.f32.mrb[0].mxu0
      %2688 = vmatprep.mubr.bf16.mxu0 0
      %2689 = vmatmul.mubr.bf16.gmra.mrb[0].mxu0 %v2241
      %v2690 = vpop.f32.mrb[0].mxu0
      %v2691 = vadd.f32 %v485, %v2690
      %v2692 = vpop.f32.mrb[0].mxu0
      %v2693 = vpop.f32.mrb[0].mxu0
      %v2694 = vadd.f32 %v485, %v2693
      %v2695 = vpop.f32.mrb[0].mxu0
      %2696 = vmatprep.mubr.bf16.mxu0 0
      %2697 = vmatmul.mubr.bf16.gmra.mrb[0].mxu0 %v2242
      %v2698 = vpop.f32.mrb[0].mxu0
      %v2699 = vadd.f32 %v485, %v2698
      %v2700 = vpop.f32.mrb[0].mxu0
      %v2701 = vpop.f32.mrb[0].mxu0
      %v2702 = vadd.f32 %v485, %v2701
      %v2703 = vpop.f32.mrb[0].mxu0
      %2704 = vmatprep.mubr.bf16.mxu0 0
      %2705 = vmatmul.mubr.bf16.gmra.mrb[0].mxu0 %v2243
      %v2706 = vpop.f32.mrb[0].mxu0
      %v2707 = vadd.f32 %v485, %v2706
      %v2708 = vpop.f32.mrb[0].mxu0
      %v2709 = vpop.f32.mrb[0].mxu0
      %v2710 = vadd.f32 %v485, %v2709
      %v2711 = vpop.f32.mrb[0].mxu0
      %2712 = vmatprep.mubr.bf16.mxu0 0
      %2713 = vmatmul.mubr.bf16.gmra.mrb[0].mxu0 %v2244
      %v2714 = vpop.f32.mrb[0].mxu0
      %v2715 = vadd.f32 %v485, %v2714
      %v2716 = vpop.f32.mrb[0].mxu0
      %v2717 = vpop.f32.mrb[0].mxu0
      %v2718 = vadd.f32 %v485, %v2717
      %v2719 = vpop.f32.mrb[0].mxu0
      %2720 = vmatprep.mubr.bf16.mxu0 0
      %2721 = vmatmul.mubr.bf16.gmra.mrb[0].mxu0 %v2245
      %v2722 = vpop.f32.mrb[0].mxu0
      %v2723 = vadd.f32 %v485, %v2722
      %v2724 = vpop.f32.mrb[0].mxu0
      %v2725 = vpop.f32.mrb[0].mxu0
      %v2726 = vadd.f32 %v485, %v2725
      %v2727 = vpop.f32.mrb[0].mxu0
      %2728 = vmatprep.mubr.bf16.mxu0 0
      %2729 = vmatmul.mubr.bf16.gmra.mrb[0].mxu0 %v2246
      %v2730 = vpop.f32.mrb[0].mxu0
      %v2731 = vadd.f32 %v485, %v2730
      %v2732 = vpop.f32.mrb[0].mxu0
      %v2733 = vpop.f32.mrb[0].mxu0
      %v2734 = vadd.f32 %v485, %v2733
      %v2735 = vpop.f32.mrb[0].mxu0
      %2736 = vmatprep.mubr.bf16.mxu0 0
      %2737 = vmatmul.mubr.bf16.gmra.mrb[0].mxu0 %v2247
      %v2738 = vpop.f32.mrb[0].mxu0
      %v2739 = vadd.f32 %v485, %v2738
      %v2740 = vpop.f32.mrb[0].mxu0
      %v2741 = vpop.f32.mrb[0].mxu0
      %v2742 = vadd.f32 %v485, %v2741
      %v2743 = vpop.f32.mrb[0].mxu0
      %2744 = vmatprep.mubr.bf16.mxu0 0
      %2745 = vmatmul.mubr.bf16.gmra.mrb[0].mxu0 %v2248
      %v2746 = vpop.f32.mrb[0].mxu0
      %v2747 = vadd.f32 %v485, %v2746
      %v2748 = vpop.f32.mrb[0].mxu0
      %v2749 = vpop.f32.mrb[0].mxu0
      %v2750 = vadd.f32 %v485, %v2749
      %v2751 = vpop.f32.mrb[0].mxu0
      %2752 = vmatprep.mubr.bf16.mxu0 0
      %2753 = vmatmul.mubr.bf16.gmra.mrb[0].mxu0 %v2249
      %v2754 = vpop.f32.mrb[0].mxu0
      %v2755 = vadd.f32 %v485, %v2754
      %v2756 = vpop.f32.mrb[0].mxu0
      %v2757 = vpop.f32.mrb[0].mxu0
      %v2758 = vadd.f32 %v485, %v2757
      %v2759 = vpop.f32.mrb[0].mxu0
      %2760 = vmatprep.mubr.bf16.mxu0 0
      %2761 = vmatmul.mubr.bf16.gmra.mrb[0].mxu0 %v2250
      %v2762 = vpop.f32.mrb[0].mxu0
      %v2763 = vadd.f32 %v485, %v2762
      %v2764 = vpop.f32.mrb[0].mxu0
      %v2765 = vpop.f32.mrb[0].mxu0
      %v2766 = vadd.f32 %v485, %v2765
      %v2767 = vpop.f32.mrb[0].mxu0
      %2768 = vmatprep.mubr.bf16.mxu0 0
      %2769 = vmatmul.mubr.bf16.gmra.mrb[0].mxu0 %v2251
      %v2770 = vpop.f32.mrb[0].mxu0
      %v2771 = vadd.f32 %v485, %v2770
      %v2772 = vpop.f32.mrb[0].mxu0
      %v2773 = vpop.f32.mrb[0].mxu0
      %v2774 = vadd.f32 %v485, %v2773
      %v2775 = vpop.f32.mrb[0].mxu0
      %2776 = vmatprep.mubr.bf16.mxu0 0
      %2777 = vmatmul.mubr.bf16.gmra.mrb[0].mxu0 %v2252
      %v2778 = vpop.f32.mrb[0].mxu0
      %v2779 = vadd.f32 %v485, %v2778
      %v2780 = vpop.f32.mrb[0].mxu0
      %v2781 = vpop.f32.mrb[0].mxu0
      %v2782 = vadd.f32 %v485, %v2781
      %v2783 = vpop.f32.mrb[0].mxu0
      %2784 = vmatprep.mubr.bf16.mxu0 0
      %2785 = vmatmul.mubr.bf16.gmra.mrb[0].mxu0 %v2253
      %v2786 = vpop.f32.mrb[0].mxu0
      %v2787 = vadd.f32 %v485, %v2786
      %v2788 = vpop.f32.mrb[0].mxu0
      %v2789 = vpop.f32.mrb[0].mxu0
      %v2790 = vadd.f32 %v485, %v2789
      %v2791 = vpop.f32.mrb[0].mxu0
      %2792 = vmatprep.mubr.bf16.mxu0 0
      %2793 = vmatmul.mubr.bf16.gmra.mrb[0].mxu0 %v2254
      %v2794 = vpop.f32.mrb[0].mxu0
      %v2795 = vadd.f32 %v485, %v2794
      %v2796 = vpop.f32.mrb[0].mxu0
      %v2797 = vpop.f32.mrb[0].mxu0
      %v2798 = vadd.f32 %v485, %v2797
      %v2799 = vpop.f32.mrb[0].mxu0
      %2800 = vmatprep.mubr.bf16.mxu0 0
      %2801 = vmatmul.mubr.bf16.gmra.mrb[0].mxu0 %v2255
      %v2802 = vpop.f32.mrb[0].mxu0
      %v2803 = vadd.f32 %v485, %v2802
      %v2804 = vpop.f32.mrb[0].mxu0
      %v2805 = vpop.f32.mrb[0].mxu0
      %v2806 = vadd.f32 %v485, %v2805
      %v2807 = vpop.f32.mrb[0].mxu0
      %2808 = vmatprep.mubr.bf16.mxu0 0
      %2809 = vmatmul.mubr.bf16.gmra.mrb[0].mxu0 %v2256
      %v2810 = vpop.f32.mrb[0].mxu0
      %v2811 = vadd.f32 %v485, %v2810
      %v2812 = vpop.f32.mrb[0].mxu0
      %v2813 = vpop.f32.mrb[0].mxu0
      %v2814 = vadd.f32 %v485, %v2813
      %v2815 = vpop.f32.mrb[0].mxu0
      %2816 = vmatprep.mubr.bf16.mxu0 0
      %2817 = vmatmul.mubr.bf16.gmra.mrb[0].mxu0 %v2257
      %v2818 = vpop.f32.mrb[0].mxu0
      %v2819 = vadd.f32 %v485, %v2818
      %v2820 = vpop.f32.mrb[0].mxu0
      %v2821 = vpop.f32.mrb[0].mxu0
      %v2822 = vadd.f32 %v485, %v2821
      %v2823 = vpop.f32.mrb[0].mxu0
      %2824 = vmatprep.mubr.bf16.mxu0 0
      %2825 = vmatmul.mubr.bf16.gmra.mrb[0].mxu0 %v2258
      %v2826 = vpop.f32.mrb[0].mxu0
      %v2827 = vadd.f32 %v485, %v2826
      %v2828 = vpop.f32.mrb[0].mxu0
      %v2829 = vpop.f32.mrb[0].mxu0
      %v2830 = vadd.f32 %v485, %v2829
      %v2831 = vpop.f32.mrb[0].mxu0
      %2832 = vmatprep.mubr.bf16.mxu0 0
      %2833 = vmatmul.mubr.bf16.gmra.mrb[0].mxu0 %v2259
      %v2834 = vpop.f32.mrb[0].mxu0
      %v2835 = vadd.f32 %v485, %v2834
      %v2836 = vpop.f32.mrb[0].mxu0
      %v2837 = vpop.f32.mrb[0].mxu0
      %v2838 = vadd.f32 %v485, %v2837
      %v2839 = vpop.f32.mrb[0].mxu0
      %2840 = vmatprep.mubr.bf16.mxu0 0
      %2841 = vmatmul.mubr.bf16.gmra.mrb[0].mxu0 %v2260
      %v2842 = vpop.f32.mrb[0].mxu0
      %v2843 = vadd.f32 %v485, %v2842
      %v2844 = vpop.f32.mrb[0].mxu0
      %v2845 = vpop.f32.mrb[0].mxu0
      %v2846 = vadd.f32 %v485, %v2845
      %v2847 = vpop.f32.mrb[0].mxu0
      %2848 = vmatprep.mubr.bf16.mxu0 0
      %2849 = vmatmul.mubr.bf16.gmra.mrb[0].mxu0 %v2261
      %v2850 = vpop.f32.mrb[0].mxu0
      %v2851 = vadd.f32 %v485, %v2850
      %v2852 = vpop.f32.mrb[0].mxu0
      %v2853 = vpop.f32.mrb[0].mxu0
      %v2854 = vadd.f32 %v485, %v2853
      %v2855 = vpop.f32.mrb[0].mxu0
      %2856 = vmatprep.mubr.bf16.mxu0 0
      %2857 = vmatmul.mubr.bf16.gmra.mrb[0].mxu0 %v2262
      %v2858 = vpop.f32.mrb[0].mxu0
      %v2859 = vadd.f32 %v485, %v2858
      %v2860 = vpop.f32.mrb[0].mxu0
      %v2861 = vpop.f32.mrb[0].mxu0
      %v2862 = vadd.f32 %v485, %v2861
      %v2863 = vpop.f32.mrb[0].mxu0
      %2864 = vmatprep.mubr.bf16.mxu0 0
      %2865 = vmatmul.mubr.bf16.gmra.mrb[0].mxu0 %v2263
      %v2866 = vpop.f32.mrb[0].mxu0
      %v2867 = vadd.f32 %v485, %v2866
      %v2868 = vpop.f32.mrb[0].mxu0
      %v2869 = vpop.f32.mrb[0].mxu0
      %v2870 = vadd.f32 %v485, %v2869
      %v2871 = vpop.f32.mrb[0].mxu0
      %2872 = vdwg.mxu0
      %v2873 = vmax.f32 %v2363, 0.0
      %v2874 = vmax.f32 %v2366, 0.0
      %v2875 = vmax.f32 %v2371, 0.0
      %v2876 = vmax.f32 %v2374, 0.0
      %v2877 = vmax.f32 %v2379, 0.0
      %v2878 = vmax.f32 %v2382, 0.0
      %v2879 = vmax.f32 %v2387, 0.0
      %v2880 = vmax.f32 %v2390, 0.0
      %v2881 = vmax.f32 %v2395, 0.0
      %v2882 = vmax.f32 %v2398, 0.0
      %v2883 = vmax.f32 %v2403, 0.0
      %v2884 = vmax.f32 %v2406, 0.0
      %v2885 = vmax.f32 %v2411, 0.0
      %v2886 = vmax.f32 %v2414, 0.0
      %v2887 = vmax.f32 %v2419, 0.0
      %v2888 = vmax.f32 %v2422, 0.0
      %v2889 = vmax.f32 %v2427, 0.0
      %v2890 = vmax.f32 %v2430, 0.0
      %v2891 = vmax.f32 %v2435, 0.0
      %v2892 = vmax.f32 %v2438, 0.0
      %v2893 = vmax.f32 %v2443, 0.0
      %v2894 = vmax.f32 %v2446, 0.0
      %v2895 = vmax.f32 %v2451, 0.0
      %v2896 = vmax.f32 %v2454, 0.0
      %v2897 = vmax.f32 %v2459, 0.0
      %v2898 = vmax.f32 %v2462, 0.0
      %v2899 = vmax.f32 %v2467, 0.0
      %v2900 = vmax.f32 %v2470, 0.0
      %v2901 = vmax.f32 %v2475, 0.0
      %v2902 = vmax.f32 %v2478, 0.0
      %v2903 = vmax.f32 %v2483, 0.0
      %v2904 = vmax.f32 %v2486, 0.0
      %v2905 = vmax.f32 %v2491, 0.0
      %v2906 = vmax.f32 %v2494, 0.0
      %v2907 = vmax.f32 %v2499, 0.0
      %v2908 = vmax.f32 %v2502, 0.0
      %v2909 = vmax.f32 %v2507, 0.0
      %v2910 = vmax.f32 %v2510, 0.0
      %v2911 = vmax.f32 %v2515, 0.0
      %v2912 = vmax.f32 %v2518, 0.0
      %v2913 = vmax.f32 %v2523, 0.0
      %v2914 = vmax.f32 %v2526, 0.0
      %v2915 = vmax.f32 %v2531, 0.0
      %v2916 = vmax.f32 %v2534, 0.0
      %v2917 = vmax.f32 %v2539, 0.0
      %v2918 = vmax.f32 %v2542, 0.0
      %v2919 = vmax.f32 %v2547, 0.0
      %v2920 = vmax.f32 %v2550, 0.0
      %v2921 = vmax.f32 %v2555, 0.0
      %v2922 = vmax.f32 %v2558, 0.0
      %v2923 = vmax.f32 %v2563, 0.0
      %v2924 = vmax.f32 %v2566, 0.0
      %v2925 = vmax.f32 %v2571, 0.0
      %v2926 = vmax.f32 %v2574, 0.0
      %v2927 = vmax.f32 %v2579, 0.0
      %v2928 = vmax.f32 %v2582, 0.0
      %v2929 = vmax.f32 %v2587, 0.0
      %v2930 = vmax.f32 %v2590, 0.0
      %v2931 = vmax.f32 %v2595, 0.0
      %v2932 = vmax.f32 %v2598, 0.0
      %v2933 = vmax.f32 %v2603, 0.0
      %v2934 = vmax.f32 %v2606, 0.0
      %v2935 = vmax.f32 %v2611, 0.0
      %v2936 = vmax.f32 %v2614, 0.0
      %v2937 = vmax.f32 %v2619, 0.0
      %v2938 = vmax.f32 %v2622, 0.0
      %v2939 = vmax.f32 %v2627, 0.0
      %v2940 = vmax.f32 %v2630, 0.0
      %v2941 = vmax.f32 %v2635, 0.0
      %v2942 = vmax.f32 %v2638, 0.0
      %v2943 = vmax.f32 %v2643, 0.0
      %v2944 = vmax.f32 %v2646, 0.0
      %v2945 = vmax.f32 %v2651, 0.0
      %v2946 = vmax.f32 %v2654, 0.0
      %v2947 = vmax.f32 %v2659, 0.0
      %v2948 = vmax.f32 %v2662, 0.0
      %v2949 = vmax.f32 %v2667, 0.0
      %v2950 = vmax.f32 %v2670, 0.0
      %v2951 = vmax.f32 %v2675, 0.0
      %v2952 = vmax.f32 %v2678, 0.0
      %v2953 = vmax.f32 %v2683, 0.0
      %v2954 = vmax.f32 %v2686, 0.0
      %v2955 = vmax.f32 %v2691, 0.0
      %v2956 = vmax.f32 %v2694, 0.0
      %v2957 = vmax.f32 %v2699, 0.0
      %v2958 = vmax.f32 %v2702, 0.0
      %v2959 = vmax.f32 %v2707, 0.0
      %v2960 = vmax.f32 %v2710, 0.0
      %v2961 = vmax.f32 %v2715, 0.0
      %v2962 = vmax.f32 %v2718, 0.0
      %v2963 = vmax.f32 %v2723, 0.0
      %v2964 = vmax.f32 %v2726, 0.0
      %v2965 = vmax.f32 %v2731, 0.0
      %v2966 = vmax.f32 %v2734, 0.0
      %v2967 = vmax.f32 %v2739, 0.0
      %v2968 = vmax.f32 %v2742, 0.0
      %v2969 = vmax.f32 %v2747, 0.0
      %v2970 = vmax.f32 %v2750, 0.0
      %v2971 = vmax.f32 %v2755, 0.0
      %v2972 = vmax.f32 %v2758, 0.0
      %v2973 = vmax.f32 %v2763, 0.0
      %v2974 = vmax.f32 %v2766, 0.0
      %v2975 = vmax.f32 %v2771, 0.0
      %v2976 = vmax.f32 %v2774, 0.0
      %v2977 = vmax.f32 %v2779, 0.0
      %v2978 = vmax.f32 %v2782, 0.0
      %v2979 = vmax.f32 %v2787, 0.0
      %v2980 = vmax.f32 %v2790, 0.0
      %v2981 = vmax.f32 %v2795, 0.0
      %v2982 = vmax.f32 %v2798, 0.0
      %v2983 = vmax.f32 %v2803, 0.0
      %v2984 = vmax.f32 %v2806, 0.0
      %v2985 = vmax.f32 %v2811, 0.0
      %v2986 = vmax.f32 %v2814, 0.0
      %v2987 = vmax.f32 %v2819, 0.0
      %v2988 = vmax.f32 %v2822, 0.0
      %v2989 = vmax.f32 %v2827, 0.0
      %v2990 = vmax.f32 %v2830, 0.0
      %v2991 = vmax.f32 %v2835, 0.0
      %v2992 = vmax.f32 %v2838, 0.0
      %v2993 = vmax.f32 %v2843, 0.0
      %v2994 = vmax.f32 %v2846, 0.0
      %v2995 = vmax.f32 %v2851, 0.0
      %v2996 = vmax.f32 %v2854, 0.0
      %v2997 = vmax.f32 %v2859, 0.0
      %v2998 = vmax.f32 %v2862, 0.0
      %v2999 = vmax.f32 %v2867, 0.0
      %v3000 = vmax.f32 %v2870, 0.0
      %v3001 = vadd.f32 %v2873, %v2874
      %v3002 = vadd.f32 %v3001, %v2875
      %v3003 = vadd.f32 %v3002, %v2876
      %v3004 = vadd.f32 %v3003, %v2877
      %v3005 = vadd.f32 %v3004, %v2878
      %v3006 = vadd.f32 %v3005, %v2879
      %v3007 = vadd.f32 %v3006, %v2880
      %v3008 = vrot.slane %v3007, 4
      %v3009 = vadd.f32 %v3007, %v3008
      %v3010 = vrot.slane %v3009, 2
      %v3011 = vadd.f32 %v3009, %v3010
      %v3012 = vrot.slane %v3011, 1
      %v3013 = vadd.f32 %v3011, %v3012
      %v3014 = vadd.f32 %v2881, %v2882
      %v3015 = vadd.f32 %v3014, %v2883
      %v3016 = vadd.f32 %v3015, %v2884
      %v3017 = vadd.f32 %v3016, %v2885
      %v3018 = vadd.f32 %v3017, %v2886
      %v3019 = vadd.f32 %v3018, %v2887
      %v3020 = vadd.f32 %v3019, %v2888
      %v3021 = vrot.slane %v3020, 4
      %v3022 = vadd.f32 %v3020, %v3021
      %v3023 = vrot.slane %v3022, 2
      %v3024 = vadd.f32 %v3022, %v3023
      %v3025 = vrot.slane %v3024, 1
      %v3026 = vadd.f32 %v3024, %v3025
      %v3027 = vadd.f32 %v2889, %v2890
      %v3028 = vadd.f32 %v3027, %v2891
      %v3029 = vadd.f32 %v3028, %v2892
      %v3030 = vadd.f32 %v3029, %v2893
      %v3031 = vadd.f32 %v3030, %v2894
      %v3032 = vadd.f32 %v3031, %v2895
      %v3033 = vadd.f32 %v3032, %v2896
      %v3034 = vrot.slane %v3033, 4
      %v3035 = vadd.f32 %v3033, %v3034
      %v3036 = vrot.slane %v3035, 2
      %v3037 = vadd.f32 %v3035, %v3036
      %v3038 = vrot.slane %v3037, 1
      %v3039 = vadd.f32 %v3037, %v3038
      %v3040 = vadd.f32 %v2897, %v2898
      %v3041 = vadd.f32 %v3040, %v2899
      %v3042 = vadd.f32 %v3041, %v2900
      %v3043 = vadd.f32 %v3042, %v2901
      %v3044 = vadd.f32 %v3043, %v2902
      %v3045 = vadd.f32 %v3044, %v2903
      %v3046 = vadd.f32 %v3045, %v2904
      %v3047 = vrot.slane %v3046, 4
      %v3048 = vadd.f32 %v3046, %v3047
      %v3049 = vrot.slane %v3048, 2
      %v3050 = vadd.f32 %v3048, %v3049
      %v3051 = vrot.slane %v3050, 1
      %v3052 = vadd.f32 %v3050, %v3051
      %v3053 = vadd.f32 %v2905, %v2906
      %v3054 = vadd.f32 %v3053, %v2907
      %v3055 = vadd.f32 %v3054, %v2908
      %v3056 = vadd.f32 %v3055, %v2909
      %v3057 = vadd.f32 %v3056, %v2910
      %v3058 = vadd.f32 %v3057, %v2911
      %v3059 = vadd.f32 %v3058, %v2912
      %v3060 = vrot.slane %v3059, 4
      %v3061 = vadd.f32 %v3059, %v3060
      %v3062 = vrot.slane %v3061, 2
      %v3063 = vadd.f32 %v3061, %v3062
      %v3064 = vrot.slane %v3063, 1
      %v3065 = vadd.f32 %v3063, %v3064
      %v3066 = vadd.f32 %v2913, %v2914
      %v3067 = vadd.f32 %v3066, %v2915
      %v3068 = vadd.f32 %v3067, %v2916
      %v3069 = vadd.f32 %v3068, %v2917
      %v3070 = vadd.f32 %v3069, %v2918
      %v3071 = vadd.f32 %v3070, %v2919
      %v3072 = vadd.f32 %v3071, %v2920
      %v3073 = vrot.slane %v3072, 4
      %v3074 = vadd.f32 %v3072, %v3073
      %v3075 = vrot.slane %v3074, 2
      %v3076 = vadd.f32 %v3074, %v3075
      %v3077 = vrot.slane %v3076, 1
      %v3078 = vadd.f32 %v3076, %v3077
      %v3079 = vadd.f32 %v2921, %v2922
      %v3080 = vadd.f32 %v3079, %v2923
      %v3081 = vadd.f32 %v3080, %v2924
      %v3082 = vadd.f32 %v3081, %v2925
      %v3083 = vadd.f32 %v3082, %v2926
      %v3084 = vadd.f32 %v3083, %v2927
      %v3085 = vadd.f32 %v3084, %v2928
      %v3086 = vrot.slane %v3085, 4
      %v3087 = vadd.f32 %v3085, %v3086
      %v3088 = vrot.slane %v3087, 2
      %v3089 = vadd.f32 %v3087, %v3088
      %v3090 = vrot.slane %v3089, 1
      %v3091 = vadd.f32 %v3089, %v3090
      %v3092 = vadd.f32 %v2929, %v2930
      %v3093 = vadd.f32 %v3092, %v2931
      %v3094 = vadd.f32 %v3093, %v2932
      %v3095 = vadd.f32 %v3094, %v2933
      %v3096 = vadd.f32 %v3095, %v2934
      %v3097 = vadd.f32 %v3096, %v2935
      %v3098 = vadd.f32 %v3097, %v2936
      %v3099 = vrot.slane %v3098, 4
      %v3100 = vadd.f32 %v3098, %v3099
      %v3101 = vrot.slane %v3100, 2
      %v3102 = vadd.f32 %v3100, %v3101
      %v3103 = vrot.slane %v3102, 1
      %v3104 = vadd.f32 %v3102, %v3103
      %v3105 = vadd.f32 %v2937, %v2938
      %v3106 = vadd.f32 %v3105, %v2939
      %v3107 = vadd.f32 %v3106, %v2940
      %v3108 = vadd.f32 %v3107, %v2941
      %v3109 = vadd.f32 %v3108, %v2942
      %v3110 = vadd.f32 %v3109, %v2943
      %v3111 = vadd.f32 %v3110, %v2944
      %v3112 = vrot.slane %v3111, 4
      %v3113 = vadd.f32 %v3111, %v3112
      %v3114 = vrot.slane %v3113, 2
      %v3115 = vadd.f32 %v3113, %v3114
      %v3116 = vrot.slane %v3115, 1
      %v3117 = vadd.f32 %v3115, %v3116
      %v3118 = vadd.f32 %v2945, %v2946
      %v3119 = vadd.f32 %v3118, %v2947
      %v3120 = vadd.f32 %v3119, %v2948
      %v3121 = vadd.f32 %v3120, %v2949
      %v3122 = vadd.f32 %v3121, %v2950
      %v3123 = vadd.f32 %v3122, %v2951
      %v3124 = vadd.f32 %v3123, %v2952
      %v3125 = vrot.slane %v3124, 4
      %v3126 = vadd.f32 %v3124, %v3125
      %v3127 = vrot.slane %v3126, 2
      %v3128 = vadd.f32 %v3126, %v3127
      %v3129 = vrot.slane %v3128, 1
      %v3130 = vadd.f32 %v3128, %v3129
      %v3131 = vadd.f32 %v2953, %v2954
      %v3132 = vadd.f32 %v3131, %v2955
      %v3133 = vadd.f32 %v3132, %v2956
      %v3134 = vadd.f32 %v3133, %v2957
      %v3135 = vadd.f32 %v3134, %v2958
      %v3136 = vadd.f32 %v3135, %v2959
      %v3137 = vadd.f32 %v3136, %v2960
      %v3138 = vrot.slane %v3137, 4
      %v3139 = vadd.f32 %v3137, %v3138
      %v3140 = vrot.slane %v3139, 2
      %v3141 = vadd.f32 %v3139, %v3140
      %v3142 = vrot.slane %v3141, 1
      %v3143 = vadd.f32 %v3141, %v3142
      %v3144 = vadd.f32 %v2961, %v2962
      %v3145 = vadd.f32 %v3144, %v2963
      %v3146 = vadd.f32 %v3145, %v2964
      %v3147 = vadd.f32 %v3146, %v2965
      %v3148 = vadd.f32 %v3147, %v2966
      %v3149 = vadd.f32 %v3148, %v2967
      %v3150 = vadd.f32 %v3149, %v2968
      %v3151 = vrot.slane %v3150, 4
      %v3152 = vadd.f32 %v3150, %v3151
      %v3153 = vrot.slane %v3152, 2
      %v3154 = vadd.f32 %v3152, %v3153
      %v3155 = vrot.slane %v3154, 1
      %v3156 = vadd.f32 %v3154, %v3155
      %v3157 = vadd.f32 %v2969, %v2970
      %v3158 = vadd.f32 %v3157, %v2971
      %v3159 = vadd.f32 %v3158, %v2972
      %v3160 = vadd.f32 %v3159, %v2973
      %v3161 = vadd.f32 %v3160, %v2974
      %v3162 = vadd.f32 %v3161, %v2975
      %v3163 = vadd.f32 %v3162, %v2976
      %v3164 = vrot.slane %v3163, 4
      %v3165 = vadd.f32 %v3163, %v3164
      %v3166 = vrot.slane %v3165, 2
      %v3167 = vadd.f32 %v3165, %v3166
      %v3168 = vrot.slane %v3167, 1
      %v3169 = vadd.f32 %v3167, %v3168
      %v3170 = vadd.f32 %v2977, %v2978
      %v3171 = vadd.f32 %v3170, %v2979
      %v3172 = vadd.f32 %v3171, %v2980
      %v3173 = vadd.f32 %v3172, %v2981
      %v3174 = vadd.f32 %v3173, %v2982
      %v3175 = vadd.f32 %v3174, %v2983
      %v3176 = vadd.f32 %v3175, %v2984
      %v3177 = vrot.slane %v3176, 4
      %v3178 = vadd.f32 %v3176, %v3177
      %v3179 = vrot.slane %v3178, 2
      %v3180 = vadd.f32 %v3178, %v3179
      %v3181 = vrot.slane %v3180, 1
      %v3182 = vadd.f32 %v3180, %v3181
      %v3183 = vadd.f32 %v2985, %v2986
      %v3184 = vadd.f32 %v3183, %v2987
      %v3185 = vadd.f32 %v3184, %v2988
      %v3186 = vadd.f32 %v3185, %v2989
      %v3187 = vadd.f32 %v3186, %v2990
      %v3188 = vadd.f32 %v3187, %v2991
      %v3189 = vadd.f32 %v3188, %v2992
      %v3190 = vrot.slane %v3189, 4
      %v3191 = vadd.f32 %v3189, %v3190
      %v3192 = vrot.slane %v3191, 2
      %v3193 = vadd.f32 %v3191, %v3192
      %v3194 = vrot.slane %v3193, 1
      %v3195 = vadd.f32 %v3193, %v3194
      %v3196 = vadd.f32 %v2993, %v2994
      %v3197 = vadd.f32 %v3196, %v2995
      %v3198 = vadd.f32 %v3197, %v2996
      %v3199 = vadd.f32 %v3198, %v2997
      %v3200 = vadd.f32 %v3199, %v2998
      %v3201 = vadd.f32 %v3200, %v2999
      %v3202 = vadd.f32 %v3201, %v3000
      %v3203 = vrot.slane %v3202, 4
      %v3204 = vadd.f32 %v3202, %v3203
      %v3205 = vrot.slane %v3204, 2
      %v3206 = vadd.f32 %v3204, %v3205
      %v3207 = vrot.slane %v3206, 1
      %v3208 = vadd.f32 %v3206, %v3207
      %v3209 = vadd.f32 %v1800, %v3013
      %v3210 = vadd.f32 %v1801, %v3026
      %v3211 = vadd.f32 %v1802, %v3039
      %v3212 = vadd.f32 %v1803, %v3052
      %v3213 = vadd.f32 %v1804, %v3065
      %v3214 = vadd.f32 %v1805, %v3078
      %v3215 = vadd.f32 %v1806, %v3091
      %v3216 = vadd.f32 %v1807, %v3104
      %v3217 = vadd.f32 %v1808, %v3117
      %v3218 = vadd.f32 %v1809, %v3130
      %v3219 = vadd.f32 %v1810, %v3143
      %v3220 = vadd.f32 %v1811, %v3156
      %v3221 = vadd.f32 %v1812, %v3169
      %v3222 = vadd.f32 %v1813, %v3182
      %v3223 = vadd.f32 %v1814, %v3195
      %v3224 = vadd.f32 %v1815, %v3208
      %v3225 = vld [vmem:[%s307 + $0x40] sm:$0xf]
      %v3226 = vld [vmem:[%s307 + $0x44] sm:$0xf]
      %v3227 = vld [vmem:[%s307 + $0x48] sm:$0xf]
      %v3228 = vld [vmem:[%s307 + $0x4c] sm:$0xf]
      %v3229 = vld [vmem:[%s307 + $0x50] sm:$0xf]
      %v3230 = vld [vmem:[%s307 + $0x54] sm:$0xf]
      %v3231 = vld [vmem:[%s307 + $0x58] sm:$0xf]
      %v3232 = vld [vmem:[%s307 + $0x5c] sm:$0xf]
      %v3233 = vld [vmem:[%s307 + $0xc0] sm:$0xf]
      %v3234 = vld [vmem:[%s307 + $0xc4] sm:$0xf]
      %v3235 = vld [vmem:[%s307 + $0xc8] sm:$0xf]
      %v3236 = vld [vmem:[%s307 + $0xcc] sm:$0xf]
      %v3237 = vld [vmem:[%s307 + $0xd0] sm:$0xf]
      %v3238 = vld [vmem:[%s307 + $0xd4] sm:$0xf]
      %v3239 = vld [vmem:[%s307 + $0xd8] sm:$0xf]
      %v3240 = vld [vmem:[%s307 + $0xdc] sm:$0xf]
      %v3241 = vld [vmem:[%s307 + $0x140] sm:$0xf]
      %v3242 = vld [vmem:[%s307 + $0x144] sm:$0xf]
      %v3243 = vld [vmem:[%s307 + $0x148] sm:$0xf]
      %v3244 = vld [vmem:[%s307 + $0x14c] sm:$0xf]
      %v3245 = vld [vmem:[%s307 + $0x150] sm:$0xf]
      %v3246 = vld [vmem:[%s307 + $0x154] sm:$0xf]
      %v3247 = vld [vmem:[%s307 + $0x158] sm:$0xf]
      %v3248 = vld [vmem:[%s307 + $0x15c] sm:$0xf]
      %v3249 = vld [vmem:[%s307 + $0x1c0] sm:$0xf]
      %v3250 = vld [vmem:[%s307 + $0x1c4] sm:$0xf]
      %v3251 = vld [vmem:[%s307 + $0x1c8] sm:$0xf]
      %v3252 = vld [vmem:[%s307 + $0x1cc] sm:$0xf]
      %v3253 = vld [vmem:[%s307 + $0x1d0] sm:$0xf]
      %v3254 = vld [vmem:[%s307 + $0x1d4] sm:$0xf]
      %v3255 = vld [vmem:[%s307 + $0x1d8] sm:$0xf]
      %v3256 = vld [vmem:[%s307 + $0x1dc] sm:$0xf]
      %v3257 = vld [vmem:[%s307 + $0x240] sm:$0xf]
      %v3258 = vld [vmem:[%s307 + $0x244] sm:$0xf]
      %v3259 = vld [vmem:[%s307 + $0x248] sm:$0xf]
      %v3260 = vld [vmem:[%s307 + $0x24c] sm:$0xf]
      %v3261 = vld [vmem:[%s307 + $0x250] sm:$0xf]
      %v3262 = vld [vmem:[%s307 + $0x254] sm:$0xf]
      %v3263 = vld [vmem:[%s307 + $0x258] sm:$0xf]
      %v3264 = vld [vmem:[%s307 + $0x25c] sm:$0xf]
      %v3265 = vld [vmem:[%s307 + $0x2c0] sm:$0xf]
      %v3266 = vld [vmem:[%s307 + $0x2c4] sm:$0xf]
      %v3267 = vld [vmem:[%s307 + $0x2c8] sm:$0xf]
      %v3268 = vld [vmem:[%s307 + $0x2cc] sm:$0xf]
      %v3269 = vld [vmem:[%s307 + $0x2d0] sm:$0xf]
      %v3270 = vld [vmem:[%s307 + $0x2d4] sm:$0xf]
      %v3271 = vld [vmem:[%s307 + $0x2d8] sm:$0xf]
      %v3272 = vld [vmem:[%s307 + $0x2dc] sm:$0xf]
      %v3273 = vld [vmem:[%s307 + $0x340] sm:$0xf]
      %v3274 = vld [vmem:[%s307 + $0x344] sm:$0xf]
      %v3275 = vld [vmem:[%s307 + $0x348] sm:$0xf]
      %v3276 = vld [vmem:[%s307 + $0x34c] sm:$0xf]
      %v3277 = vld [vmem:[%s307 + $0x350] sm:$0xf]
      %v3278 = vld [vmem:[%s307 + $0x354] sm:$0xf]
      %v3279 = vld [vmem:[%s307 + $0x358] sm:$0xf]
      %v3280 = vld [vmem:[%s307 + $0x35c] sm:$0xf]
      %v3281 = vld [vmem:[%s307 + $0x3c0] sm:$0xf]
      %v3282 = vld [vmem:[%s307 + $0x3c4] sm:$0xf]
      %v3283 = vld [vmem:[%s307 + $0x3c8] sm:$0xf]
      %v3284 = vld [vmem:[%s307 + $0x3cc] sm:$0xf]
      %v3285 = vld [vmem:[%s307 + $0x3d0] sm:$0xf]
      %v3286 = vld [vmem:[%s307 + $0x3d4] sm:$0xf]
      %v3287 = vld [vmem:[%s307 + $0x3d8] sm:$0xf]
      %v3288 = vld [vmem:[%s307 + $0x3dc] sm:$0xf]
      %v3289 = vld [vmem:[%s307 + $0x440] sm:$0xf]
      %v3290 = vld [vmem:[%s307 + $0x444] sm:$0xf]
      %v3291 = vld [vmem:[%s307 + $0x448] sm:$0xf]
      %v3292 = vld [vmem:[%s307 + $0x44c] sm:$0xf]
      %v3293 = vld [vmem:[%s307 + $0x450] sm:$0xf]
      %v3294 = vld [vmem:[%s307 + $0x454] sm:$0xf]
      %v3295 = vld [vmem:[%s307 + $0x458] sm:$0xf]
      %v3296 = vld [vmem:[%s307 + $0x45c] sm:$0xf]
      %v3297 = vld [vmem:[%s307 + $0x4c0] sm:$0xf]
      %v3298 = vld [vmem:[%s307 + $0x4c4] sm:$0xf]
      %v3299 = vld [vmem:[%s307 + $0x4c8] sm:$0xf]
      %v3300 = vld [vmem:[%s307 + $0x4cc] sm:$0xf]
      %v3301 = vld [vmem:[%s307 + $0x4d0] sm:$0xf]
      %v3302 = vld [vmem:[%s307 + $0x4d4] sm:$0xf]
      %v3303 = vld [vmem:[%s307 + $0x4d8] sm:$0xf]
      %v3304 = vld [vmem:[%s307 + $0x4dc] sm:$0xf]
      %v3305 = vld [vmem:[%s307 + $0x540] sm:$0xf]
      %v3306 = vld [vmem:[%s307 + $0x544] sm:$0xf]
      %v3307 = vld [vmem:[%s307 + $0x548] sm:$0xf]
      %v3308 = vld [vmem:[%s307 + $0x54c] sm:$0xf]
      %v3309 = vld [vmem:[%s307 + $0x550] sm:$0xf]
      %v3310 = vld [vmem:[%s307 + $0x554] sm:$0xf]
      %v3311 = vld [vmem:[%s307 + $0x558] sm:$0xf]
      %v3312 = vld [vmem:[%s307 + $0x55c] sm:$0xf]
      %v3313 = vld [vmem:[%s307 + $0x5c0] sm:$0xf]
      %v3314 = vld [vmem:[%s307 + $0x5c4] sm:$0xf]
      %v3315 = vld [vmem:[%s307 + $0x5c8] sm:$0xf]
      %v3316 = vld [vmem:[%s307 + $0x5cc] sm:$0xf]
      %v3317 = vld [vmem:[%s307 + $0x5d0] sm:$0xf]
      %v3318 = vld [vmem:[%s307 + $0x5d4] sm:$0xf]
      %v3319 = vld [vmem:[%s307 + $0x5d8] sm:$0xf]
      %v3320 = vld [vmem:[%s307 + $0x5dc] sm:$0xf]
      %v3321 = vld [vmem:[%s307 + $0x640] sm:$0xf]
      %v3322 = vld [vmem:[%s307 + $0x644] sm:$0xf]
      %v3323 = vld [vmem:[%s307 + $0x648] sm:$0xf]
      %v3324 = vld [vmem:[%s307 + $0x64c] sm:$0xf]
      %v3325 = vld [vmem:[%s307 + $0x650] sm:$0xf]
      %v3326 = vld [vmem:[%s307 + $0x654] sm:$0xf]
      %v3327 = vld [vmem:[%s307 + $0x658] sm:$0xf]
      %v3328 = vld [vmem:[%s307 + $0x65c] sm:$0xf]
      %v3329 = vld [vmem:[%s307 + $0x6c0] sm:$0xf]
      %v3330 = vld [vmem:[%s307 + $0x6c4] sm:$0xf]
      %v3331 = vld [vmem:[%s307 + $0x6c8] sm:$0xf]
      %v3332 = vld [vmem:[%s307 + $0x6cc] sm:$0xf]
      %v3333 = vld [vmem:[%s307 + $0x6d0] sm:$0xf]
      %v3334 = vld [vmem:[%s307 + $0x6d4] sm:$0xf]
      %v3335 = vld [vmem:[%s307 + $0x6d8] sm:$0xf]
      %v3336 = vld [vmem:[%s307 + $0x6dc] sm:$0xf]
      %v3337 = vld [vmem:[%s307 + $0x740] sm:$0xf]
      %v3338 = vld [vmem:[%s307 + $0x744] sm:$0xf]
      %v3339 = vld [vmem:[%s307 + $0x748] sm:$0xf]
      %v3340 = vld [vmem:[%s307 + $0x74c] sm:$0xf]
      %v3341 = vld [vmem:[%s307 + $0x750] sm:$0xf]
      %v3342 = vld [vmem:[%s307 + $0x754] sm:$0xf]
      %v3343 = vld [vmem:[%s307 + $0x758] sm:$0xf]
      %v3344 = vld [vmem:[%s307 + $0x75c] sm:$0xf]
      %v3345 = vld [vmem:[%s307 + $0x7c0] sm:$0xf]
      %v3346 = vld [vmem:[%s307 + $0x7c4] sm:$0xf]
      %v3347 = vld [vmem:[%s307 + $0x7c8] sm:$0xf]
      %v3348 = vld [vmem:[%s307 + $0x7cc] sm:$0xf]
      %v3349 = vld [vmem:[%s307 + $0x7d0] sm:$0xf]
      %v3350 = vld [vmem:[%s307 + $0x7d4] sm:$0xf]
      %v3351 = vld [vmem:[%s307 + $0x7d8] sm:$0xf]
      %v3352 = vld [vmem:[%s307 + $0x7dc] sm:$0xf]
      %v3481 = vunpack.c.l.b16 %v3225
      %v3482 = vunpack.c.l.b16 %v3226
      %v3483 = vunpack.c.l.b16 %v3227
      %v3484 = vunpack.c.l.b16 %v3228
      %v3485 = vunpack.c.l.b16 %v3229
      %v3486 = vunpack.c.l.b16 %v3230
      %v3487 = vunpack.c.l.b16 %v3231
      %v3488 = vunpack.c.l.b16 %v3232
      %v3489 = vunpack.c.l.b16 %v3233
      %v3490 = vunpack.c.l.b16 %v3234
      %v3491 = vunpack.c.l.b16 %v3235
      %v3492 = vunpack.c.l.b16 %v3236
      %v3493 = vunpack.c.l.b16 %v3237
      %v3494 = vunpack.c.l.b16 %v3238
      %v3495 = vunpack.c.l.b16 %v3239
      %v3496 = vunpack.c.l.b16 %v3240
      %v3497 = vunpack.c.l.b16 %v3241
      %v3498 = vunpack.c.l.b16 %v3242
      %v3499 = vunpack.c.l.b16 %v3243
      %v3500 = vunpack.c.l.b16 %v3244
      %v3501 = vunpack.c.l.b16 %v3245
      %v3502 = vunpack.c.l.b16 %v3246
      %v3503 = vunpack.c.l.b16 %v3247
      %v3504 = vunpack.c.l.b16 %v3248
      %v3505 = vunpack.c.l.b16 %v3249
      %v3506 = vunpack.c.l.b16 %v3250
      %v3507 = vunpack.c.l.b16 %v3251
      %v3508 = vunpack.c.l.b16 %v3252
      %v3509 = vunpack.c.l.b16 %v3253
      %v3510 = vunpack.c.l.b16 %v3254
      %v3511 = vunpack.c.l.b16 %v3255
      %v3512 = vunpack.c.l.b16 %v3256
      %v3513 = vunpack.c.l.b16 %v3257
      %v3514 = vunpack.c.l.b16 %v3258
      %v3515 = vunpack.c.l.b16 %v3259
      %v3516 = vunpack.c.l.b16 %v3260
      %v3517 = vunpack.c.l.b16 %v3261
      %v3518 = vunpack.c.l.b16 %v3262
      %v3519 = vunpack.c.l.b16 %v3263
      %v3520 = vunpack.c.l.b16 %v3264
      %v3521 = vunpack.c.l.b16 %v3265
      %v3522 = vunpack.c.l.b16 %v3266
      %v3523 = vunpack.c.l.b16 %v3267
      %v3524 = vunpack.c.l.b16 %v3268
      %v3525 = vunpack.c.l.b16 %v3269
      %v3526 = vunpack.c.l.b16 %v3270
      %v3527 = vunpack.c.l.b16 %v3271
      %v3528 = vunpack.c.l.b16 %v3272
      %v3529 = vunpack.c.l.b16 %v3273
      %v3530 = vunpack.c.l.b16 %v3274
      %v3531 = vunpack.c.l.b16 %v3275
      %v3532 = vunpack.c.l.b16 %v3276
      %v3533 = vunpack.c.l.b16 %v3277
      %v3534 = vunpack.c.l.b16 %v3278
      %v3535 = vunpack.c.l.b16 %v3279
      %v3536 = vunpack.c.l.b16 %v3280
      %v3537 = vunpack.c.l.b16 %v3281
      %v3538 = vunpack.c.l.b16 %v3282
      %v3539 = vunpack.c.l.b16 %v3283
      %v3540 = vunpack.c.l.b16 %v3284
      %v3541 = vunpack.c.l.b16 %v3285
      %v3542 = vunpack.c.l.b16 %v3286
      %v3543 = vunpack.c.l.b16 %v3287
      %v3544 = vunpack.c.l.b16 %v3288
      %v3545 = vunpack.c.l.b16 %v3289
      %v3546 = vunpack.c.l.b16 %v3290
      %v3547 = vunpack.c.l.b16 %v3291
      %v3548 = vunpack.c.l.b16 %v3292
      %v3549 = vunpack.c.l.b16 %v3293
      %v3550 = vunpack.c.l.b16 %v3294
      %v3551 = vunpack.c.l.b16 %v3295
      %v3552 = vunpack.c.l.b16 %v3296
      %v3553 = vunpack.c.l.b16 %v3297
      %v3554 = vunpack.c.l.b16 %v3298
      %v3555 = vunpack.c.l.b16 %v3299
      %v3556 = vunpack.c.l.b16 %v3300
      %v3557 = vunpack.c.l.b16 %v3301
      %v3558 = vunpack.c.l.b16 %v3302
      %v3559 = vunpack.c.l.b16 %v3303
      %v3560 = vunpack.c.l.b16 %v3304
      %v3561 = vunpack.c.l.b16 %v3305
      %v3562 = vunpack.c.l.b16 %v3306
      %v3563 = vunpack.c.l.b16 %v3307
      %v3564 = vunpack.c.l.b16 %v3308
      %v3565 = vunpack.c.l.b16 %v3309
      %v3566 = vunpack.c.l.b16 %v3310
      %v3567 = vunpack.c.l.b16 %v3311
      %v3568 = vunpack.c.l.b16 %v3312
      %v3569 = vunpack.c.l.b16 %v3313
      %v3570 = vunpack.c.l.b16 %v3314
      %v3571 = vunpack.c.l.b16 %v3315
      %v3572 = vunpack.c.l.b16 %v3316
      %v3573 = vunpack.c.l.b16 %v3317
      %v3574 = vunpack.c.l.b16 %v3318
      %v3575 = vunpack.c.l.b16 %v3319
      %v3576 = vunpack.c.l.b16 %v3320
      %v3577 = vunpack.c.l.b16 %v3321
      %v3578 = vunpack.c.l.b16 %v3322
      %v3579 = vunpack.c.l.b16 %v3323
      %v3580 = vunpack.c.l.b16 %v3324
      %v3581 = vunpack.c.l.b16 %v3325
      %v3582 = vunpack.c.l.b16 %v3326
      %v3583 = vunpack.c.l.b16 %v3327
      %v3584 = vunpack.c.l.b16 %v3328
      %v3585 = vunpack.c.l.b16 %v3329
      %v3586 = vunpack.c.l.b16 %v3330
      %v3587 = vunpack.c.l.b16 %v3331
      %v3588 = vunpack.c.l.b16 %v3332
      %v3589 = vunpack.c.l.b16 %v3333
      %v3590 = vunpack.c.l.b16 %v3334
      %v3591 = vunpack.c.l.b16 %v3335
      %v3592 = vunpack.c.l.b16 %v3336
      %v3593 = vunpack.c.l.b16 %v3337
      %v3594 = vunpack.c.l.b16 %v3338
      %v3595 = vunpack.c.l.b16 %v3339
      %v3596 = vunpack.c.l.b16 %v3340
      %v3597 = vunpack.c.l.b16 %v3341
      %v3598 = vunpack.c.l.b16 %v3342
      %v3599 = vunpack.c.l.b16 %v3343
      %v3600 = vunpack.c.l.b16 %v3344
      %v3601 = vunpack.c.l.b16 %v3345
      %v3602 = vunpack.c.l.b16 %v3346
      %v3603 = vunpack.c.l.b16 %v3347
      %v3604 = vunpack.c.l.b16 %v3348
      %v3605 = vunpack.c.l.b16 %v3349
      %v3606 = vunpack.c.l.b16 %v3350
      %v3607 = vunpack.c.l.b16 %v3351
      %v3608 = vunpack.c.l.b16 %v3352
      %v3609 = vpack.c.b16 %v3482, %v3481
      %v3610 = vpack.c.b16 %v3484, %v3483
      %v3611 = vpack.c.b16 %v3486, %v3485
      %v3612 = vpack.c.b16 %v3488, %v3487
      %v3613 = vpack.c.b16 %v3490, %v3489
      %v3614 = vpack.c.b16 %v3492, %v3491
      %v3615 = vpack.c.b16 %v3494, %v3493
      %v3616 = vpack.c.b16 %v3496, %v3495
      %v3617 = vpack.c.b16 %v3498, %v3497
      %v3618 = vpack.c.b16 %v3500, %v3499
      %v3619 = vpack.c.b16 %v3502, %v3501
      %v3620 = vpack.c.b16 %v3504, %v3503
      %v3621 = vpack.c.b16 %v3506, %v3505
      %v3622 = vpack.c.b16 %v3508, %v3507
      %v3623 = vpack.c.b16 %v3510, %v3509
      %v3624 = vpack.c.b16 %v3512, %v3511
      %v3625 = vpack.c.b16 %v3514, %v3513
      %v3626 = vpack.c.b16 %v3516, %v3515
      %v3627 = vpack.c.b16 %v3518, %v3517
      %v3628 = vpack.c.b16 %v3520, %v3519
      %v3629 = vpack.c.b16 %v3522, %v3521
      %v3630 = vpack.c.b16 %v3524, %v3523
      %v3631 = vpack.c.b16 %v3526, %v3525
      %v3632 = vpack.c.b16 %v3528, %v3527
      %v3633 = vpack.c.b16 %v3530, %v3529
      %v3634 = vpack.c.b16 %v3532, %v3531
      %v3635 = vpack.c.b16 %v3534, %v3533
      %v3636 = vpack.c.b16 %v3536, %v3535
      %v3637 = vpack.c.b16 %v3538, %v3537
      %v3638 = vpack.c.b16 %v3540, %v3539
      %v3639 = vpack.c.b16 %v3542, %v3541
      %v3640 = vpack.c.b16 %v3544, %v3543
      %v3641 = vpack.c.b16 %v3546, %v3545
      %v3642 = vpack.c.b16 %v3548, %v3547
      %v3643 = vpack.c.b16 %v3550, %v3549
      %v3644 = vpack.c.b16 %v3552, %v3551
      %v3645 = vpack.c.b16 %v3554, %v3553
      %v3646 = vpack.c.b16 %v3556, %v3555
      %v3647 = vpack.c.b16 %v3558, %v3557
      %v3648 = vpack.c.b16 %v3560, %v3559
      %v3649 = vpack.c.b16 %v3562, %v3561
      %v3650 = vpack.c.b16 %v3564, %v3563
      %v3651 = vpack.c.b16 %v3566, %v3565
      %v3652 = vpack.c.b16 %v3568, %v3567
      %v3653 = vpack.c.b16 %v3570, %v3569
      %v3654 = vpack.c.b16 %v3572, %v3571
      %v3655 = vpack.c.b16 %v3574, %v3573
      %v3656 = vpack.c.b16 %v3576, %v3575
      %v3657 = vpack.c.b16 %v3578, %v3577
      %v3658 = vpack.c.b16 %v3580, %v3579
      %v3659 = vpack.c.b16 %v3582, %v3581
      %v3660 = vpack.c.b16 %v3584, %v3583
      %v3661 = vpack.c.b16 %v3586, %v3585
      %v3662 = vpack.c.b16 %v3588, %v3587
      %v3663 = vpack.c.b16 %v3590, %v3589
      %v3664 = vpack.c.b16 %v3592, %v3591
      %v3665 = vpack.c.b16 %v3594, %v3593
      %v3666 = vpack.c.b16 %v3596, %v3595
      %v3667 = vpack.c.b16 %v3598, %v3597
      %v3668 = vpack.c.b16 %v3600, %v3599
      %v3669 = vpack.c.b16 %v3602, %v3601
      %v3670 = vpack.c.b16 %v3604, %v3603
      %v3671 = vpack.c.b16 %v3606, %v3605
      %v3672 = vpack.c.b16 %v3608, %v3607
      %3737 = vmatprep.subr.bf16.mxu0 0
      %3738 = vmatpush1.bf16.msra.mxu0 %v903
      %3739 = vmatprep.subr.bf16.mxu0 0
      %3740 = vmatpush1.bf16.msra.mxu0 %v904
      %3741 = vmatprep.subr.bf16.mxu0 0
      %3742 = vmatpush1.bf16.msra.mxu0 %v905
      %3743 = vmatprep.subr.bf16.mxu0 0
      %3744 = vmatpush1.bf16.msra.mxu0 %v906
      %3745 = vmatprep.subr.bf16.mxu0 0
      %3746 = vmatpush1.bf16.msra.mxu0 %v907
      %3747 = vmatprep.subr.bf16.mxu0 0
      %3748 = vmatpush1.bf16.msra.mxu0 %v908
      %3749 = vmatprep.subr.bf16.mxu0 0
      %3750 = vmatpush1.bf16.msra.mxu0 %v909
      %3751 = vmatprep.subr.bf16.mxu0 0
      %3752 = vmatpush1.bf16.msra.mxu0 %v910
      %3753 = vmatprep.subr.bf16.mxu0 0
      %3754 = vmatpush1.bf16.msra.mxu0 0
      %3755 = vmatprep.subr.bf16.mxu0 0
      %3756 = vmatpush1.bf16.msra.mxu0 0
      %3757 = vmatprep.subr.bf16.mxu0 0
      %3758 = vmatpush1.bf16.msra.mxu0 0
      %3759 = vmatprep.subr.bf16.mxu0 0
      %3760 = vmatpush1.bf16.msra.mxu0 0
      %3761 = vmatprep.subr.bf16.mxu0 0
      %3762 = vmatpush1.bf16.msra.mxu0 0
      %3763 = vmatprep.subr.bf16.mxu0 0
      %3764 = vmatpush1.bf16.msra.mxu0 0
      %3765 = vmatprep.subr.bf16.mxu0 0
      %3766 = vmatpush1.bf16.msra.mxu0 0
      %3767 = vmatprep.subr.bf16.mxu0 0
      %3768 = vmatpush1.bf16.msra.mxu0 0
      %3769 = vmatprep.mubr.bf16.mxu0 0
      %3770 = vmatmul.mubr.bf16.gmra.mrb[0].mxu0 %v3609
      %v3771 = vpop.f32.mrb[0].mxu0
      %v3772 = vadd.f32 %v485, %v3771
      %v3773 = vpop.f32.mrb[0].mxu0
      %v3774 = vpop.f32.mrb[0].mxu0
      %v3775 = vadd.f32 %v485, %v3774
      %v3776 = vpop.f32.mrb[0].mxu0
      %3777 = vmatprep.mubr.bf16.mxu0 0
      %3778 = vmatmul.mubr.bf16.gmra.mrb[0].mxu0 %v3610
      %v3779 = vpop.f32.mrb[0].mxu0
      %v3780 = vadd.f32 %v485, %v3779
      %v3781 = vpop.f32.mrb[0].mxu0
      %v3782 = vpop.f32.mrb[0].mxu0
      %v3783 = vadd.f32 %v485, %v3782
      %v3784 = vpop.f32.mrb[0].mxu0
      %3785 = vmatprep.mubr.bf16.mxu0 0
      %3786 = vmatmul.mubr.bf16.gmra.mrb[0].mxu0 %v3611
      %v3787 = vpop.f32.mrb[0].mxu0
      %v3788 = vadd.f32 %v485, %v3787
      %v3789 = vpop.f32.mrb[0].mxu0
      %v3790 = vpop.f32.mrb[0].mxu0
      %v3791 = vadd.f32 %v485, %v3790
      %v3792 = vpop.f32.mrb[0].mxu0
      %3793 = vmatprep.mubr.bf16.mxu0 0
      %3794 = vmatmul.mubr.bf16.gmra.mrb[0].mxu0 %v3612
      %v3795 = vpop.f32.mrb[0].mxu0
      %v3796 = vadd.f32 %v485, %v3795
      %v3797 = vpop.f32.mrb[0].mxu0
      %v3798 = vpop.f32.mrb[0].mxu0
      %v3799 = vadd.f32 %v485, %v3798
      %v3800 = vpop.f32.mrb[0].mxu0
      %3801 = vmatprep.mubr.bf16.mxu0 0
      %3802 = vmatmul.mubr.bf16.gmra.mrb[0].mxu0 %v3613
      %v3803 = vpop.f32.mrb[0].mxu0
      %v3804 = vadd.f32 %v485, %v3803
      %v3805 = vpop.f32.mrb[0].mxu0
      %v3806 = vpop.f32.mrb[0].mxu0
      %v3807 = vadd.f32 %v485, %v3806
      %v3808 = vpop.f32.mrb[0].mxu0
      %3809 = vmatprep.mubr.bf16.mxu0 0
      %3810 = vmatmul.mubr.bf16.gmra.mrb[0].mxu0 %v3614
      %v3811 = vpop.f32.mrb[0].mxu0
      %v3812 = vadd.f32 %v485, %v3811
      %v3813 = vpop.f32.mrb[0].mxu0
      %v3814 = vpop.f32.mrb[0].mxu0
      %v3815 = vadd.f32 %v485, %v3814
      %v3816 = vpop.f32.mrb[0].mxu0
      %3817 = vmatprep.mubr.bf16.mxu0 0
      %3818 = vmatmul.mubr.bf16.gmra.mrb[0].mxu0 %v3615
      %v3819 = vpop.f32.mrb[0].mxu0
      %v3820 = vadd.f32 %v485, %v3819
      %v3821 = vpop.f32.mrb[0].mxu0
      %v3822 = vpop.f32.mrb[0].mxu0
      %v3823 = vadd.f32 %v485, %v3822
      %v3824 = vpop.f32.mrb[0].mxu0
      %3825 = vmatprep.mubr.bf16.mxu0 0
      %3826 = vmatmul.mubr.bf16.gmra.mrb[0].mxu0 %v3616
      %v3827 = vpop.f32.mrb[0].mxu0
      %v3828 = vadd.f32 %v485, %v3827
      %v3829 = vpop.f32.mrb[0].mxu0
      %v3830 = vpop.f32.mrb[0].mxu0
      %v3831 = vadd.f32 %v485, %v3830
      %v3832 = vpop.f32.mrb[0].mxu0
      %3833 = vmatprep.mubr.bf16.mxu0 0
      %3834 = vmatmul.mubr.bf16.gmra.mrb[0].mxu0 %v3617
      %v3835 = vpop.f32.mrb[0].mxu0
      %v3836 = vadd.f32 %v485, %v3835
      %v3837 = vpop.f32.mrb[0].mxu0
      %v3838 = vpop.f32.mrb[0].mxu0
      %v3839 = vadd.f32 %v485, %v3838
      %v3840 = vpop.f32.mrb[0].mxu0
      %3841 = vmatprep.mubr.bf16.mxu0 0
      %3842 = vmatmul.mubr.bf16.gmra.mrb[0].mxu0 %v3618
      %v3843 = vpop.f32.mrb[0].mxu0
      %v3844 = vadd.f32 %v485, %v3843
      %v3845 = vpop.f32.mrb[0].mxu0
      %v3846 = vpop.f32.mrb[0].mxu0
      %v3847 = vadd.f32 %v485, %v3846
      %v3848 = vpop.f32.mrb[0].mxu0
      %3849 = vmatprep.mubr.bf16.mxu0 0
      %3850 = vmatmul.mubr.bf16.gmra.mrb[0].mxu0 %v3619
      %v3851 = vpop.f32.mrb[0].mxu0
      %v3852 = vadd.f32 %v485, %v3851
      %v3853 = vpop.f32.mrb[0].mxu0
      %v3854 = vpop.f32.mrb[0].mxu0
      %v3855 = vadd.f32 %v485, %v3854
      %v3856 = vpop.f32.mrb[0].mxu0
      %3857 = vmatprep.mubr.bf16.mxu0 0
      %3858 = vmatmul.mubr.bf16.gmra.mrb[0].mxu0 %v3620
      %v3859 = vpop.f32.mrb[0].mxu0
      %v3860 = vadd.f32 %v485, %v3859
      %v3861 = vpop.f32.mrb[0].mxu0
      %v3862 = vpop.f32.mrb[0].mxu0
      %v3863 = vadd.f32 %v485, %v3862
      %v3864 = vpop.f32.mrb[0].mxu0
      %3865 = vmatprep.mubr.bf16.mxu0 0
      %3866 = vmatmul.mubr.bf16.gmra.mrb[0].mxu0 %v3621
      %v3867 = vpop.f32.mrb[0].mxu0
      %v3868 = vadd.f32 %v485, %v3867
      %v3869 = vpop.f32.mrb[0].mxu0
      %v3870 = vpop.f32.mrb[0].mxu0
      %v3871 = vadd.f32 %v485, %v3870
      %v3872 = vpop.f32.mrb[0].mxu0
      %3873 = vmatprep.mubr.bf16.mxu0 0
      %3874 = vmatmul.mubr.bf16.gmra.mrb[0].mxu0 %v3622
      %v3875 = vpop.f32.mrb[0].mxu0
      %v3876 = vadd.f32 %v485, %v3875
      %v3877 = vpop.f32.mrb[0].mxu0
      %v3878 = vpop.f32.mrb[0].mxu0
      %v3879 = vadd.f32 %v485, %v3878
      %v3880 = vpop.f32.mrb[0].mxu0
      %3881 = vmatprep.mubr.bf16.mxu0 0
      %3882 = vmatmul.mubr.bf16.gmra.mrb[0].mxu0 %v3623
      %v3883 = vpop.f32.mrb[0].mxu0
      %v3884 = vadd.f32 %v485, %v3883
      %v3885 = vpop.f32.mrb[0].mxu0
      %v3886 = vpop.f32.mrb[0].mxu0
      %v3887 = vadd.f32 %v485, %v3886
      %v3888 = vpop.f32.mrb[0].mxu0
      %3889 = vmatprep.mubr.bf16.mxu0 0
      %3890 = vmatmul.mubr.bf16.gmra.mrb[0].mxu0 %v3624
      %v3891 = vpop.f32.mrb[0].mxu0
      %v3892 = vadd.f32 %v485, %v3891
      %v3893 = vpop.f32.mrb[0].mxu0
      %v3894 = vpop.f32.mrb[0].mxu0
      %v3895 = vadd.f32 %v485, %v3894
      %v3896 = vpop.f32.mrb[0].mxu0
      %3897 = vmatprep.mubr.bf16.mxu0 0
      %3898 = vmatmul.mubr.bf16.gmra.mrb[0].mxu0 %v3625
      %v3899 = vpop.f32.mrb[0].mxu0
      %v3900 = vadd.f32 %v485, %v3899
      %v3901 = vpop.f32.mrb[0].mxu0
      %v3902 = vpop.f32.mrb[0].mxu0
      %v3903 = vadd.f32 %v485, %v3902
      %v3904 = vpop.f32.mrb[0].mxu0
      %3905 = vmatprep.mubr.bf16.mxu0 0
      %3906 = vmatmul.mubr.bf16.gmra.mrb[0].mxu0 %v3626
      %v3907 = vpop.f32.mrb[0].mxu0
      %v3908 = vadd.f32 %v485, %v3907
      %v3909 = vpop.f32.mrb[0].mxu0
      %v3910 = vpop.f32.mrb[0].mxu0
      %v3911 = vadd.f32 %v485, %v3910
      %v3912 = vpop.f32.mrb[0].mxu0
      %3913 = vmatprep.mubr.bf16.mxu0 0
      %3914 = vmatmul.mubr.bf16.gmra.mrb[0].mxu0 %v3627
      %v3915 = vpop.f32.mrb[0].mxu0
      %v3916 = vadd.f32 %v485, %v3915
      %v3917 = vpop.f32.mrb[0].mxu0
      %v3918 = vpop.f32.mrb[0].mxu0
      %v3919 = vadd.f32 %v485, %v3918
      %v3920 = vpop.f32.mrb[0].mxu0
      %3921 = vmatprep.mubr.bf16.mxu0 0
      %3922 = vmatmul.mubr.bf16.gmra.mrb[0].mxu0 %v3628
      %v3923 = vpop.f32.mrb[0].mxu0
      %v3924 = vadd.f32 %v485, %v3923
      %v3925 = vpop.f32.mrb[0].mxu0
      %v3926 = vpop.f32.mrb[0].mxu0
      %v3927 = vadd.f32 %v485, %v3926
      %v3928 = vpop.f32.mrb[0].mxu0
      %3929 = vmatprep.mubr.bf16.mxu0 0
      %3930 = vmatmul.mubr.bf16.gmra.mrb[0].mxu0 %v3629
      %v3931 = vpop.f32.mrb[0].mxu0
      %v3932 = vadd.f32 %v485, %v3931
      %v3933 = vpop.f32.mrb[0].mxu0
      %v3934 = vpop.f32.mrb[0].mxu0
      %v3935 = vadd.f32 %v485, %v3934
      %v3936 = vpop.f32.mrb[0].mxu0
      %3937 = vmatprep.mubr.bf16.mxu0 0
      %3938 = vmatmul.mubr.bf16.gmra.mrb[0].mxu0 %v3630
      %v3939 = vpop.f32.mrb[0].mxu0
      %v3940 = vadd.f32 %v485, %v3939
      %v3941 = vpop.f32.mrb[0].mxu0
      %v3942 = vpop.f32.mrb[0].mxu0
      %v3943 = vadd.f32 %v485, %v3942
      %v3944 = vpop.f32.mrb[0].mxu0
      %3945 = vmatprep.mubr.bf16.mxu0 0
      %3946 = vmatmul.mubr.bf16.gmra.mrb[0].mxu0 %v3631
      %v3947 = vpop.f32.mrb[0].mxu0
      %v3948 = vadd.f32 %v485, %v3947
      %v3949 = vpop.f32.mrb[0].mxu0
      %v3950 = vpop.f32.mrb[0].mxu0
      %v3951 = vadd.f32 %v485, %v3950
      %v3952 = vpop.f32.mrb[0].mxu0
      %3953 = vmatprep.mubr.bf16.mxu0 0
      %3954 = vmatmul.mubr.bf16.gmra.mrb[0].mxu0 %v3632
      %v3955 = vpop.f32.mrb[0].mxu0
      %v3956 = vadd.f32 %v485, %v3955
      %v3957 = vpop.f32.mrb[0].mxu0
      %v3958 = vpop.f32.mrb[0].mxu0
      %v3959 = vadd.f32 %v485, %v3958
      %v3960 = vpop.f32.mrb[0].mxu0
      %3961 = vmatprep.mubr.bf16.mxu0 0
      %3962 = vmatmul.mubr.bf16.gmra.mrb[0].mxu0 %v3633
      %v3963 = vpop.f32.mrb[0].mxu0
      %v3964 = vadd.f32 %v485, %v3963
      %v3965 = vpop.f32.mrb[0].mxu0
      %v3966 = vpop.f32.mrb[0].mxu0
      %v3967 = vadd.f32 %v485, %v3966
      %v3968 = vpop.f32.mrb[0].mxu0
      %3969 = vmatprep.mubr.bf16.mxu0 0
      %3970 = vmatmul.mubr.bf16.gmra.mrb[0].mxu0 %v3634
      %v3971 = vpop.f32.mrb[0].mxu0
      %v3972 = vadd.f32 %v485, %v3971
      %v3973 = vpop.f32.mrb[0].mxu0
      %v3974 = vpop.f32.mrb[0].mxu0
      %v3975 = vadd.f32 %v485, %v3974
      %v3976 = vpop.f32.mrb[0].mxu0
      %3977 = vmatprep.mubr.bf16.mxu0 0
      %3978 = vmatmul.mubr.bf16.gmra.mrb[0].mxu0 %v3635
      %v3979 = vpop.f32.mrb[0].mxu0
      %v3980 = vadd.f32 %v485, %v3979
      %v3981 = vpop.f32.mrb[0].mxu0
      %v3982 = vpop.f32.mrb[0].mxu0
      %v3983 = vadd.f32 %v485, %v3982
      %v3984 = vpop.f32.mrb[0].mxu0
      %3985 = vmatprep.mubr.bf16.mxu0 0
      %3986 = vmatmul.mubr.bf16.gmra.mrb[0].mxu0 %v3636
      %v3987 = vpop.f32.mrb[0].mxu0
      %v3988 = vadd.f32 %v485, %v3987
      %v3989 = vpop.f32.mrb[0].mxu0
      %v3990 = vpop.f32.mrb[0].mxu0
      %v3991 = vadd.f32 %v485, %v3990
      %v3992 = vpop.f32.mrb[0].mxu0
      %3993 = vmatprep.mubr.bf16.mxu0 0
      %3994 = vmatmul.mubr.bf16.gmra.mrb[0].mxu0 %v3637
      %v3995 = vpop.f32.mrb[0].mxu0
      %v3996 = vadd.f32 %v485, %v3995
      %v3997 = vpop.f32.mrb[0].mxu0
      %v3998 = vpop.f32.mrb[0].mxu0
      %v3999 = vadd.f32 %v485, %v3998
      %v4000 = vpop.f32.mrb[0].mxu0
      %4001 = vmatprep.mubr.bf16.mxu0 0
      %4002 = vmatmul.mubr.bf16.gmra.mrb[0].mxu0 %v3638
      %v4003 = vpop.f32.mrb[0].mxu0
      %v4004 = vadd.f32 %v485, %v4003
      %v4005 = vpop.f32.mrb[0].mxu0
      %v4006 = vpop.f32.mrb[0].mxu0
      %v4007 = vadd.f32 %v485, %v4006
      %v4008 = vpop.f32.mrb[0].mxu0
      %4009 = vmatprep.mubr.bf16.mxu0 0
      %4010 = vmatmul.mubr.bf16.gmra.mrb[0].mxu0 %v3639
      %v4011 = vpop.f32.mrb[0].mxu0
      %v4012 = vadd.f32 %v485, %v4011
      %v4013 = vpop.f32.mrb[0].mxu0
      %v4014 = vpop.f32.mrb[0].mxu0
      %v4015 = vadd.f32 %v485, %v4014
      %v4016 = vpop.f32.mrb[0].mxu0
      %4017 = vmatprep.mubr.bf16.mxu0 0
      %4018 = vmatmul.mubr.bf16.gmra.mrb[0].mxu0 %v3640
      %v4019 = vpop.f32.mrb[0].mxu0
      %v4020 = vadd.f32 %v485, %v4019
      %v4021 = vpop.f32.mrb[0].mxu0
      %v4022 = vpop.f32.mrb[0].mxu0
      %v4023 = vadd.f32 %v485, %v4022
      %v4024 = vpop.f32.mrb[0].mxu0
      %4025 = vmatprep.mubr.bf16.mxu0 0
      %4026 = vmatmul.mubr.bf16.gmra.mrb[0].mxu0 %v3641
      %v4027 = vpop.f32.mrb[0].mxu0
      %v4028 = vadd.f32 %v485, %v4027
      %v4029 = vpop.f32.mrb[0].mxu0
      %v4030 = vpop.f32.mrb[0].mxu0
      %v4031 = vadd.f32 %v485, %v4030
      %v4032 = vpop.f32.mrb[0].mxu0
      %4033 = vmatprep.mubr.bf16.mxu0 0
      %4034 = vmatmul.mubr.bf16.gmra.mrb[0].mxu0 %v3642
      %v4035 = vpop.f32.mrb[0].mxu0
      %v4036 = vadd.f32 %v485, %v4035
      %v4037 = vpop.f32.mrb[0].mxu0
      %v4038 = vpop.f32.mrb[0].mxu0
      %v4039 = vadd.f32 %v485, %v4038
      %v4040 = vpop.f32.mrb[0].mxu0
      %4041 = vmatprep.mubr.bf16.mxu0 0
      %4042 = vmatmul.mubr.bf16.gmra.mrb[0].mxu0 %v3643
      %v4043 = vpop.f32.mrb[0].mxu0
      %v4044 = vadd.f32 %v485, %v4043
      %v4045 = vpop.f32.mrb[0].mxu0
      %v4046 = vpop.f32.mrb[0].mxu0
      %v4047 = vadd.f32 %v485, %v4046
      %v4048 = vpop.f32.mrb[0].mxu0
      %4049 = vmatprep.mubr.bf16.mxu0 0
      %4050 = vmatmul.mubr.bf16.gmra.mrb[0].mxu0 %v3644
      %v4051 = vpop.f32.mrb[0].mxu0
      %v4052 = vadd.f32 %v485, %v4051
      %v4053 = vpop.f32.mrb[0].mxu0
      %v4054 = vpop.f32.mrb[0].mxu0
      %v4055 = vadd.f32 %v485, %v4054
      %v4056 = vpop.f32.mrb[0].mxu0
      %4057 = vmatprep.mubr.bf16.mxu0 0
      %4058 = vmatmul.mubr.bf16.gmra.mrb[0].mxu0 %v3645
      %v4059 = vpop.f32.mrb[0].mxu0
      %v4060 = vadd.f32 %v485, %v4059
      %v4061 = vpop.f32.mrb[0].mxu0
      %v4062 = vpop.f32.mrb[0].mxu0
      %v4063 = vadd.f32 %v485, %v4062
      %v4064 = vpop.f32.mrb[0].mxu0
      %4065 = vmatprep.mubr.bf16.mxu0 0
      %4066 = vmatmul.mubr.bf16.gmra.mrb[0].mxu0 %v3646
      %v4067 = vpop.f32.mrb[0].mxu0
      %v4068 = vadd.f32 %v485, %v4067
      %v4069 = vpop.f32.mrb[0].mxu0
      %v4070 = vpop.f32.mrb[0].mxu0
      %v4071 = vadd.f32 %v485, %v4070
      %v4072 = vpop.f32.mrb[0].mxu0
      %4073 = vmatprep.mubr.bf16.mxu0 0
      %4074 = vmatmul.mubr.bf16.gmra.mrb[0].mxu0 %v3647
      %v4075 = vpop.f32.mrb[0].mxu0
      %v4076 = vadd.f32 %v485, %v4075
      %v4077 = vpop.f32.mrb[0].mxu0
      %v4078 = vpop.f32.mrb[0].mxu0
      %v4079 = vadd.f32 %v485, %v4078
      %v4080 = vpop.f32.mrb[0].mxu0
      %4081 = vmatprep.mubr.bf16.mxu0 0
      %4082 = vmatmul.mubr.bf16.gmra.mrb[0].mxu0 %v3648
      %v4083 = vpop.f32.mrb[0].mxu0
      %v4084 = vadd.f32 %v485, %v4083
      %v4085 = vpop.f32.mrb[0].mxu0
      %v4086 = vpop.f32.mrb[0].mxu0
      %v4087 = vadd.f32 %v485, %v4086
      %v4088 = vpop.f32.mrb[0].mxu0
      %4089 = vmatprep.mubr.bf16.mxu0 0
      %4090 = vmatmul.mubr.bf16.gmra.mrb[0].mxu0 %v3649
      %v4091 = vpop.f32.mrb[0].mxu0
      %v4092 = vadd.f32 %v485, %v4091
      %v4093 = vpop.f32.mrb[0].mxu0
      %v4094 = vpop.f32.mrb[0].mxu0
      %v4095 = vadd.f32 %v485, %v4094
      %v4096 = vpop.f32.mrb[0].mxu0
      %4097 = vmatprep.mubr.bf16.mxu0 0
      %4098 = vmatmul.mubr.bf16.gmra.mrb[0].mxu0 %v3650
      %v4099 = vpop.f32.mrb[0].mxu0
      %v4100 = vadd.f32 %v485, %v4099
      %v4101 = vpop.f32.mrb[0].mxu0
      %v4102 = vpop.f32.mrb[0].mxu0
      %v4103 = vadd.f32 %v485, %v4102
      %v4104 = vpop.f32.mrb[0].mxu0
      %4105 = vmatprep.mubr.bf16.mxu0 0
      %4106 = vmatmul.mubr.bf16.gmra.mrb[0].mxu0 %v3651
      %v4107 = vpop.f32.mrb[0].mxu0
      %v4108 = vadd.f32 %v485, %v4107
      %v4109 = vpop.f32.mrb[0].mxu0
      %v4110 = vpop.f32.mrb[0].mxu0
      %v4111 = vadd.f32 %v485, %v4110
      %v4112 = vpop.f32.mrb[0].mxu0
      %4113 = vmatprep.mubr.bf16.mxu0 0
      %4114 = vmatmul.mubr.bf16.gmra.mrb[0].mxu0 %v3652
      %v4115 = vpop.f32.mrb[0].mxu0
      %v4116 = vadd.f32 %v485, %v4115
      %v4117 = vpop.f32.mrb[0].mxu0
      %v4118 = vpop.f32.mrb[0].mxu0
      %v4119 = vadd.f32 %v485, %v4118
      %v4120 = vpop.f32.mrb[0].mxu0
      %4121 = vmatprep.mubr.bf16.mxu0 0
      %4122 = vmatmul.mubr.bf16.gmra.mrb[0].mxu0 %v3653
      %v4123 = vpop.f32.mrb[0].mxu0
      %v4124 = vadd.f32 %v485, %v4123
      %v4125 = vpop.f32.mrb[0].mxu0
      %v4126 = vpop.f32.mrb[0].mxu0
      %v4127 = vadd.f32 %v485, %v4126
      %v4128 = vpop.f32.mrb[0].mxu0
      %4129 = vmatprep.mubr.bf16.mxu0 0
      %4130 = vmatmul.mubr.bf16.gmra.mrb[0].mxu0 %v3654
      %v4131 = vpop.f32.mrb[0].mxu0
      %v4132 = vadd.f32 %v485, %v4131
      %v4133 = vpop.f32.mrb[0].mxu0
      %v4134 = vpop.f32.mrb[0].mxu0
      %v4135 = vadd.f32 %v485, %v4134
      %v4136 = vpop.f32.mrb[0].mxu0
      %4137 = vmatprep.mubr.bf16.mxu0 0
      %4138 = vmatmul.mubr.bf16.gmra.mrb[0].mxu0 %v3655
      %v4139 = vpop.f32.mrb[0].mxu0
      %v4140 = vadd.f32 %v485, %v4139
      %v4141 = vpop.f32.mrb[0].mxu0
      %v4142 = vpop.f32.mrb[0].mxu0
      %v4143 = vadd.f32 %v485, %v4142
      %v4144 = vpop.f32.mrb[0].mxu0
      %4145 = vmatprep.mubr.bf16.mxu0 0
      %4146 = vmatmul.mubr.bf16.gmra.mrb[0].mxu0 %v3656
      %v4147 = vpop.f32.mrb[0].mxu0
      %v4148 = vadd.f32 %v485, %v4147
      %v4149 = vpop.f32.mrb[0].mxu0
      %v4150 = vpop.f32.mrb[0].mxu0
      %v4151 = vadd.f32 %v485, %v4150
      %v4152 = vpop.f32.mrb[0].mxu0
      %4153 = vmatprep.mubr.bf16.mxu0 0
      %4154 = vmatmul.mubr.bf16.gmra.mrb[0].mxu0 %v3657
      %v4155 = vpop.f32.mrb[0].mxu0
      %v4156 = vadd.f32 %v485, %v4155
      %v4157 = vpop.f32.mrb[0].mxu0
      %v4158 = vpop.f32.mrb[0].mxu0
      %v4159 = vadd.f32 %v485, %v4158
      %v4160 = vpop.f32.mrb[0].mxu0
      %4161 = vmatprep.mubr.bf16.mxu0 0
      %4162 = vmatmul.mubr.bf16.gmra.mrb[0].mxu0 %v3658
      %v4163 = vpop.f32.mrb[0].mxu0
      %v4164 = vadd.f32 %v485, %v4163
      %v4165 = vpop.f32.mrb[0].mxu0
      %v4166 = vpop.f32.mrb[0].mxu0
      %v4167 = vadd.f32 %v485, %v4166
      %v4168 = vpop.f32.mrb[0].mxu0
      %4169 = vmatprep.mubr.bf16.mxu0 0
      %4170 = vmatmul.mubr.bf16.gmra.mrb[0].mxu0 %v3659
      %v4171 = vpop.f32.mrb[0].mxu0
      %v4172 = vadd.f32 %v485, %v4171
      %v4173 = vpop.f32.mrb[0].mxu0
      %v4174 = vpop.f32.mrb[0].mxu0
      %v4175 = vadd.f32 %v485, %v4174
      %v4176 = vpop.f32.mrb[0].mxu0
      %4177 = vmatprep.mubr.bf16.mxu0 0
      %4178 = vmatmul.mubr.bf16.gmra.mrb[0].mxu0 %v3660
      %v4179 = vpop.f32.mrb[0].mxu0
      %v4180 = vadd.f32 %v485, %v4179
      %v4181 = vpop.f32.mrb[0].mxu0
      %v4182 = vpop.f32.mrb[0].mxu0
      %v4183 = vadd.f32 %v485, %v4182
      %v4184 = vpop.f32.mrb[0].mxu0
      %4185 = vmatprep.mubr.bf16.mxu0 0
      %4186 = vmatmul.mubr.bf16.gmra.mrb[0].mxu0 %v3661
      %v4187 = vpop.f32.mrb[0].mxu0
      %v4188 = vadd.f32 %v485, %v4187
      %v4189 = vpop.f32.mrb[0].mxu0
      %v4190 = vpop.f32.mrb[0].mxu0
      %v4191 = vadd.f32 %v485, %v4190
      %v4192 = vpop.f32.mrb[0].mxu0
      %4193 = vmatprep.mubr.bf16.mxu0 0
      %4194 = vmatmul.mubr.bf16.gmra.mrb[0].mxu0 %v3662
      %v4195 = vpop.f32.mrb[0].mxu0
      %v4196 = vadd.f32 %v485, %v4195
      %v4197 = vpop.f32.mrb[0].mxu0
      %v4198 = vpop.f32.mrb[0].mxu0
      %v4199 = vadd.f32 %v485, %v4198
      %v4200 = vpop.f32.mrb[0].mxu0
      %4201 = vmatprep.mubr.bf16.mxu0 0
      %4202 = vmatmul.mubr.bf16.gmra.mrb[0].mxu0 %v3663
      %v4203 = vpop.f32.mrb[0].mxu0
      %v4204 = vadd.f32 %v485, %v4203
      %v4205 = vpop.f32.mrb[0].mxu0
      %v4206 = vpop.f32.mrb[0].mxu0
      %v4207 = vadd.f32 %v485, %v4206
      %v4208 = vpop.f32.mrb[0].mxu0
      %4209 = vmatprep.mubr.bf16.mxu0 0
      %4210 = vmatmul.mubr.bf16.gmra.mrb[0].mxu0 %v3664
      %v4211 = vpop.f32.mrb[0].mxu0
      %v4212 = vadd.f32 %v485, %v4211
      %v4213 = vpop.f32.mrb[0].mxu0
      %v4214 = vpop.f32.mrb[0].mxu0
      %v4215 = vadd.f32 %v485, %v4214
      %v4216 = vpop.f32.mrb[0].mxu0
      %4217 = vmatprep.mubr.bf16.mxu0 0
      %4218 = vmatmul.mubr.bf16.gmra.mrb[0].mxu0 %v3665
      %v4219 = vpop.f32.mrb[0].mxu0
      %v4220 = vadd.f32 %v485, %v4219
      %v4221 = vpop.f32.mrb[0].mxu0
      %v4222 = vpop.f32.mrb[0].mxu0
      %v4223 = vadd.f32 %v485, %v4222
      %v4224 = vpop.f32.mrb[0].mxu0
      %4225 = vmatprep.mubr.bf16.mxu0 0
      %4226 = vmatmul.mubr.bf16.gmra.mrb[0].mxu0 %v3666
      %v4227 = vpop.f32.mrb[0].mxu0
      %v4228 = vadd.f32 %v485, %v4227
      %v4229 = vpop.f32.mrb[0].mxu0
      %v4230 = vpop.f32.mrb[0].mxu0
      %v4231 = vadd.f32 %v485, %v4230
      %v4232 = vpop.f32.mrb[0].mxu0
      %4233 = vmatprep.mubr.bf16.mxu0 0
      %4234 = vmatmul.mubr.bf16.gmra.mrb[0].mxu0 %v3667
      %v4235 = vpop.f32.mrb[0].mxu0
      %v4236 = vadd.f32 %v485, %v4235
      %v4237 = vpop.f32.mrb[0].mxu0
      %v4238 = vpop.f32.mrb[0].mxu0
      %v4239 = vadd.f32 %v485, %v4238
      %v4240 = vpop.f32.mrb[0].mxu0
      %4241 = vmatprep.mubr.bf16.mxu0 0
      %4242 = vmatmul.mubr.bf16.gmra.mrb[0].mxu0 %v3668
      %v4243 = vpop.f32.mrb[0].mxu0
      %v4244 = vadd.f32 %v485, %v4243
      %v4245 = vpop.f32.mrb[0].mxu0
      %v4246 = vpop.f32.mrb[0].mxu0
      %v4247 = vadd.f32 %v485, %v4246
      %v4248 = vpop.f32.mrb[0].mxu0
      %4249 = vmatprep.mubr.bf16.mxu0 0
      %4250 = vmatmul.mubr.bf16.gmra.mrb[0].mxu0 %v3669
      %v4251 = vpop.f32.mrb[0].mxu0
      %v4252 = vadd.f32 %v485, %v4251
      %v4253 = vpop.f32.mrb[0].mxu0
      %v4254 = vpop.f32.mrb[0].mxu0
      %v4255 = vadd.f32 %v485, %v4254
      %v4256 = vpop.f32.mrb[0].mxu0
      %4257 = vmatprep.mubr.bf16.mxu0 0
      %4258 = vmatmul.mubr.bf16.gmra.mrb[0].mxu0 %v3670
      %v4259 = vpop.f32.mrb[0].mxu0
      %v4260 = vadd.f32 %v485, %v4259
      %v4261 = vpop.f32.mrb[0].mxu0
      %v4262 = vpop.f32.mrb[0].mxu0
      %v4263 = vadd.f32 %v485, %v4262
      %v4264 = vpop.f32.mrb[0].mxu0
      %4265 = vmatprep.mubr.bf16.mxu0 0
      %4266 = vmatmul.mubr.bf16.gmra.mrb[0].mxu0 %v3671
      %v4267 = vpop.f32.mrb[0].mxu0
      %v4268 = vadd.f32 %v485, %v4267
      %v4269 = vpop.f32.mrb[0].mxu0
      %v4270 = vpop.f32.mrb[0].mxu0
      %v4271 = vadd.f32 %v485, %v4270
      %v4272 = vpop.f32.mrb[0].mxu0
      %4273 = vmatprep.mubr.bf16.mxu0 0
      %4274 = vmatmul.mubr.bf16.gmra.mrb[0].mxu0 %v3672
      %v4275 = vpop.f32.mrb[0].mxu0
      %v4276 = vadd.f32 %v485, %v4275
      %v4277 = vpop.f32.mrb[0].mxu0
      %v4278 = vpop.f32.mrb[0].mxu0
      %v4279 = vadd.f32 %v485, %v4278
      %v4280 = vpop.f32.mrb[0].mxu0
      %4281 = vdwg.mxu0
      %v4282 = vmax.f32 %v3772, 0.0
      %v4283 = vmax.f32 %v3775, 0.0
      %v4284 = vmax.f32 %v3780, 0.0
      %v4285 = vmax.f32 %v3783, 0.0
      %v4286 = vmax.f32 %v3788, 0.0
      %v4287 = vmax.f32 %v3791, 0.0
      %v4288 = vmax.f32 %v3796, 0.0
      %v4289 = vmax.f32 %v3799, 0.0
      %v4290 = vmax.f32 %v3804, 0.0
      %v4291 = vmax.f32 %v3807, 0.0
      %v4292 = vmax.f32 %v3812, 0.0
      %v4293 = vmax.f32 %v3815, 0.0
      %v4294 = vmax.f32 %v3820, 0.0
      %v4295 = vmax.f32 %v3823, 0.0
      %v4296 = vmax.f32 %v3828, 0.0
      %v4297 = vmax.f32 %v3831, 0.0
      %v4298 = vmax.f32 %v3836, 0.0
      %v4299 = vmax.f32 %v3839, 0.0
      %v4300 = vmax.f32 %v3844, 0.0
      %v4301 = vmax.f32 %v3847, 0.0
      %v4302 = vmax.f32 %v3852, 0.0
      %v4303 = vmax.f32 %v3855, 0.0
      %v4304 = vmax.f32 %v3860, 0.0
      %v4305 = vmax.f32 %v3863, 0.0
      %v4306 = vmax.f32 %v3868, 0.0
      %v4307 = vmax.f32 %v3871, 0.0
      %v4308 = vmax.f32 %v3876, 0.0
      %v4309 = vmax.f32 %v3879, 0.0
      %v4310 = vmax.f32 %v3884, 0.0
      %v4311 = vmax.f32 %v3887, 0.0
      %v4312 = vmax.f32 %v3892, 0.0
      %v4313 = vmax.f32 %v3895, 0.0
      %v4314 = vmax.f32 %v3900, 0.0
      %v4315 = vmax.f32 %v3903, 0.0
      %v4316 = vmax.f32 %v3908, 0.0
      %v4317 = vmax.f32 %v3911, 0.0
      %v4318 = vmax.f32 %v3916, 0.0
      %v4319 = vmax.f32 %v3919, 0.0
      %v4320 = vmax.f32 %v3924, 0.0
      %v4321 = vmax.f32 %v3927, 0.0
      %v4322 = vmax.f32 %v3932, 0.0
      %v4323 = vmax.f32 %v3935, 0.0
      %v4324 = vmax.f32 %v3940, 0.0
      %v4325 = vmax.f32 %v3943, 0.0
      %v4326 = vmax.f32 %v3948, 0.0
      %v4327 = vmax.f32 %v3951, 0.0
      %v4328 = vmax.f32 %v3956, 0.0
      %v4329 = vmax.f32 %v3959, 0.0
      %v4330 = vmax.f32 %v3964, 0.0
      %v4331 = vmax.f32 %v3967, 0.0
      %v4332 = vmax.f32 %v3972, 0.0
      %v4333 = vmax.f32 %v3975, 0.0
      %v4334 = vmax.f32 %v3980, 0.0
      %v4335 = vmax.f32 %v3983, 0.0
      %v4336 = vmax.f32 %v3988, 0.0
      %v4337 = vmax.f32 %v3991, 0.0
      %v4338 = vmax.f32 %v3996, 0.0
      %v4339 = vmax.f32 %v3999, 0.0
      %v4340 = vmax.f32 %v4004, 0.0
      %v4341 = vmax.f32 %v4007, 0.0
      %v4342 = vmax.f32 %v4012, 0.0
      %v4343 = vmax.f32 %v4015, 0.0
      %v4344 = vmax.f32 %v4020, 0.0
      %v4345 = vmax.f32 %v4023, 0.0
      %v4346 = vmax.f32 %v4028, 0.0
      %v4347 = vmax.f32 %v4031, 0.0
      %v4348 = vmax.f32 %v4036, 0.0
      %v4349 = vmax.f32 %v4039, 0.0
      %v4350 = vmax.f32 %v4044, 0.0
      %v4351 = vmax.f32 %v4047, 0.0
      %v4352 = vmax.f32 %v4052, 0.0
      %v4353 = vmax.f32 %v4055, 0.0
      %v4354 = vmax.f32 %v4060, 0.0
      %v4355 = vmax.f32 %v4063, 0.0
      %v4356 = vmax.f32 %v4068, 0.0
      %v4357 = vmax.f32 %v4071, 0.0
      %v4358 = vmax.f32 %v4076, 0.0
      %v4359 = vmax.f32 %v4079, 0.0
      %v4360 = vmax.f32 %v4084, 0.0
      %v4361 = vmax.f32 %v4087, 0.0
      %v4362 = vmax.f32 %v4092, 0.0
      %v4363 = vmax.f32 %v4095, 0.0
      %v4364 = vmax.f32 %v4100, 0.0
      %v4365 = vmax.f32 %v4103, 0.0
      %v4366 = vmax.f32 %v4108, 0.0
      %v4367 = vmax.f32 %v4111, 0.0
      %v4368 = vmax.f32 %v4116, 0.0
      %v4369 = vmax.f32 %v4119, 0.0
      %v4370 = vmax.f32 %v4124, 0.0
      %v4371 = vmax.f32 %v4127, 0.0
      %v4372 = vmax.f32 %v4132, 0.0
      %v4373 = vmax.f32 %v4135, 0.0
      %v4374 = vmax.f32 %v4140, 0.0
      %v4375 = vmax.f32 %v4143, 0.0
      %v4376 = vmax.f32 %v4148, 0.0
      %v4377 = vmax.f32 %v4151, 0.0
      %v4378 = vmax.f32 %v4156, 0.0
      %v4379 = vmax.f32 %v4159, 0.0
      %v4380 = vmax.f32 %v4164, 0.0
      %v4381 = vmax.f32 %v4167, 0.0
      %v4382 = vmax.f32 %v4172, 0.0
      %v4383 = vmax.f32 %v4175, 0.0
      %v4384 = vmax.f32 %v4180, 0.0
      %v4385 = vmax.f32 %v4183, 0.0
      %v4386 = vmax.f32 %v4188, 0.0
      %v4387 = vmax.f32 %v4191, 0.0
      %v4388 = vmax.f32 %v4196, 0.0
      %v4389 = vmax.f32 %v4199, 0.0
      %v4390 = vmax.f32 %v4204, 0.0
      %v4391 = vmax.f32 %v4207, 0.0
      %v4392 = vmax.f32 %v4212, 0.0
      %v4393 = vmax.f32 %v4215, 0.0
      %v4394 = vmax.f32 %v4220, 0.0
      %v4395 = vmax.f32 %v4223, 0.0
      %v4396 = vmax.f32 %v4228, 0.0
      %v4397 = vmax.f32 %v4231, 0.0
      %v4398 = vmax.f32 %v4236, 0.0
      %v4399 = vmax.f32 %v4239, 0.0
      %v4400 = vmax.f32 %v4244, 0.0
      %v4401 = vmax.f32 %v4247, 0.0
      %v4402 = vmax.f32 %v4252, 0.0
      %v4403 = vmax.f32 %v4255, 0.0
      %v4404 = vmax.f32 %v4260, 0.0
      %v4405 = vmax.f32 %v4263, 0.0
      %v4406 = vmax.f32 %v4268, 0.0
      %v4407 = vmax.f32 %v4271, 0.0
      %v4408 = vmax.f32 %v4276, 0.0
      %v4409 = vmax.f32 %v4279, 0.0
      %v4410 = vadd.f32 %v4282, %v4283
      %v4411 = vadd.f32 %v4410, %v4284
      %v4412 = vadd.f32 %v4411, %v4285
      %v4413 = vadd.f32 %v4412, %v4286
      %v4414 = vadd.f32 %v4413, %v4287
      %v4415 = vadd.f32 %v4414, %v4288
      %v4416 = vadd.f32 %v4415, %v4289
      %v4417 = vrot.slane %v4416, 4
      %v4418 = vadd.f32 %v4416, %v4417
      %v4419 = vrot.slane %v4418, 2
      %v4420 = vadd.f32 %v4418, %v4419
      %v4421 = vrot.slane %v4420, 1
      %v4422 = vadd.f32 %v4420, %v4421
      %v4423 = vadd.f32 %v4290, %v4291
      %v4424 = vadd.f32 %v4423, %v4292
      %v4425 = vadd.f32 %v4424, %v4293
      %v4426 = vadd.f32 %v4425, %v4294
      %v4427 = vadd.f32 %v4426, %v4295
      %v4428 = vadd.f32 %v4427, %v4296
      %v4429 = vadd.f32 %v4428, %v4297
      %v4430 = vrot.slane %v4429, 4
      %v4431 = vadd.f32 %v4429, %v4430
      %v4432 = vrot.slane %v4431, 2
      %v4433 = vadd.f32 %v4431, %v4432
      %v4434 = vrot.slane %v4433, 1
      %v4435 = vadd.f32 %v4433, %v4434
      %v4436 = vadd.f32 %v4298, %v4299
      %v4437 = vadd.f32 %v4436, %v4300
      %v4438 = vadd.f32 %v4437, %v4301
      %v4439 = vadd.f32 %v4438, %v4302
      %v4440 = vadd.f32 %v4439, %v4303
      %v4441 = vadd.f32 %v4440, %v4304
      %v4442 = vadd.f32 %v4441, %v4305
      %v4443 = vrot.slane %v4442, 4
      %v4444 = vadd.f32 %v4442, %v4443
      %v4445 = vrot.slane %v4444, 2
      %v4446 = vadd.f32 %v4444, %v4445
      %v4447 = vrot.slane %v4446, 1
      %v4448 = vadd.f32 %v4446, %v4447
      %v4449 = vadd.f32 %v4306, %v4307
      %v4450 = vadd.f32 %v4449, %v4308
      %v4451 = vadd.f32 %v4450, %v4309
      %v4452 = vadd.f32 %v4451, %v4310
      %v4453 = vadd.f32 %v4452, %v4311
      %v4454 = vadd.f32 %v4453, %v4312
      %v4455 = vadd.f32 %v4454, %v4313
      %v4456 = vrot.slane %v4455, 4
      %v4457 = vadd.f32 %v4455, %v4456
      %v4458 = vrot.slane %v4457, 2
      %v4459 = vadd.f32 %v4457, %v4458
      %v4460 = vrot.slane %v4459, 1
      %v4461 = vadd.f32 %v4459, %v4460
      %v4462 = vadd.f32 %v4314, %v4315
      %v4463 = vadd.f32 %v4462, %v4316
      %v4464 = vadd.f32 %v4463, %v4317
      %v4465 = vadd.f32 %v4464, %v4318
      %v4466 = vadd.f32 %v4465, %v4319
      %v4467 = vadd.f32 %v4466, %v4320
      %v4468 = vadd.f32 %v4467, %v4321
      %v4469 = vrot.slane %v4468, 4
      %v4470 = vadd.f32 %v4468, %v4469
      %v4471 = vrot.slane %v4470, 2
      %v4472 = vadd.f32 %v4470, %v4471
      %v4473 = vrot.slane %v4472, 1
      %v4474 = vadd.f32 %v4472, %v4473
      %v4475 = vadd.f32 %v4322, %v4323
      %v4476 = vadd.f32 %v4475, %v4324
      %v4477 = vadd.f32 %v4476, %v4325
      %v4478 = vadd.f32 %v4477, %v4326
      %v4479 = vadd.f32 %v4478, %v4327
      %v4480 = vadd.f32 %v4479, %v4328
      %v4481 = vadd.f32 %v4480, %v4329
      %v4482 = vrot.slane %v4481, 4
      %v4483 = vadd.f32 %v4481, %v4482
      %v4484 = vrot.slane %v4483, 2
      %v4485 = vadd.f32 %v4483, %v4484
      %v4486 = vrot.slane %v4485, 1
      %v4487 = vadd.f32 %v4485, %v4486
      %v4488 = vadd.f32 %v4330, %v4331
      %v4489 = vadd.f32 %v4488, %v4332
      %v4490 = vadd.f32 %v4489, %v4333
      %v4491 = vadd.f32 %v4490, %v4334
      %v4492 = vadd.f32 %v4491, %v4335
      %v4493 = vadd.f32 %v4492, %v4336
      %v4494 = vadd.f32 %v4493, %v4337
      %v4495 = vrot.slane %v4494, 4
      %v4496 = vadd.f32 %v4494, %v4495
      %v4497 = vrot.slane %v4496, 2
      %v4498 = vadd.f32 %v4496, %v4497
      %v4499 = vrot.slane %v4498, 1
      %v4500 = vadd.f32 %v4498, %v4499
      %v4501 = vadd.f32 %v4338, %v4339
      %v4502 = vadd.f32 %v4501, %v4340
      %v4503 = vadd.f32 %v4502, %v4341
      %v4504 = vadd.f32 %v4503, %v4342
      %v4505 = vadd.f32 %v4504, %v4343
      %v4506 = vadd.f32 %v4505, %v4344
      %v4507 = vadd.f32 %v4506, %v4345
      %v4508 = vrot.slane %v4507, 4
      %v4509 = vadd.f32 %v4507, %v4508
      %v4510 = vrot.slane %v4509, 2
      %v4511 = vadd.f32 %v4509, %v4510
      %v4512 = vrot.slane %v4511, 1
      %v4513 = vadd.f32 %v4511, %v4512
      %v4514 = vadd.f32 %v4346, %v4347
      %v4515 = vadd.f32 %v4514, %v4348
      %v4516 = vadd.f32 %v4515, %v4349
      %v4517 = vadd.f32 %v4516, %v4350
      %v4518 = vadd.f32 %v4517, %v4351
      %v4519 = vadd.f32 %v4518, %v4352
      %v4520 = vadd.f32 %v4519, %v4353
      %v4521 = vrot.slane %v4520, 4
      %v4522 = vadd.f32 %v4520, %v4521
      %v4523 = vrot.slane %v4522, 2
      %v4524 = vadd.f32 %v4522, %v4523
      %v4525 = vrot.slane %v4524, 1
      %v4526 = vadd.f32 %v4524, %v4525
      %v4527 = vadd.f32 %v4354, %v4355
      %v4528 = vadd.f32 %v4527, %v4356
      %v4529 = vadd.f32 %v4528, %v4357
      %v4530 = vadd.f32 %v4529, %v4358
      %v4531 = vadd.f32 %v4530, %v4359
      %v4532 = vadd.f32 %v4531, %v4360
      %v4533 = vadd.f32 %v4532, %v4361
      %v4534 = vrot.slane %v4533, 4
      %v4535 = vadd.f32 %v4533, %v4534
      %v4536 = vrot.slane %v4535, 2
      %v4537 = vadd.f32 %v4535, %v4536
      %v4538 = vrot.slane %v4537, 1
      %v4539 = vadd.f32 %v4537, %v4538
      %v4540 = vadd.f32 %v4362, %v4363
      %v4541 = vadd.f32 %v4540, %v4364
      %v4542 = vadd.f32 %v4541, %v4365
      %v4543 = vadd.f32 %v4542, %v4366
      %v4544 = vadd.f32 %v4543, %v4367
      %v4545 = vadd.f32 %v4544, %v4368
      %v4546 = vadd.f32 %v4545, %v4369
      %v4547 = vrot.slane %v4546, 4
      %v4548 = vadd.f32 %v4546, %v4547
      %v4549 = vrot.slane %v4548, 2
      %v4550 = vadd.f32 %v4548, %v4549
      %v4551 = vrot.slane %v4550, 1
      %v4552 = vadd.f32 %v4550, %v4551
      %v4553 = vadd.f32 %v4370, %v4371
      %v4554 = vadd.f32 %v4553, %v4372
      %v4555 = vadd.f32 %v4554, %v4373
      %v4556 = vadd.f32 %v4555, %v4374
      %v4557 = vadd.f32 %v4556, %v4375
      %v4558 = vadd.f32 %v4557, %v4376
      %v4559 = vadd.f32 %v4558, %v4377
      %v4560 = vrot.slane %v4559, 4
      %v4561 = vadd.f32 %v4559, %v4560
      %v4562 = vrot.slane %v4561, 2
      %v4563 = vadd.f32 %v4561, %v4562
      %v4564 = vrot.slane %v4563, 1
      %v4565 = vadd.f32 %v4563, %v4564
      %v4566 = vadd.f32 %v4378, %v4379
      %v4567 = vadd.f32 %v4566, %v4380
      %v4568 = vadd.f32 %v4567, %v4381
      %v4569 = vadd.f32 %v4568, %v4382
      %v4570 = vadd.f32 %v4569, %v4383
      %v4571 = vadd.f32 %v4570, %v4384
      %v4572 = vadd.f32 %v4571, %v4385
      %v4573 = vrot.slane %v4572, 4
      %v4574 = vadd.f32 %v4572, %v4573
      %v4575 = vrot.slane %v4574, 2
      %v4576 = vadd.f32 %v4574, %v4575
      %v4577 = vrot.slane %v4576, 1
      %v4578 = vadd.f32 %v4576, %v4577
      %v4579 = vadd.f32 %v4386, %v4387
      %v4580 = vadd.f32 %v4579, %v4388
      %v4581 = vadd.f32 %v4580, %v4389
      %v4582 = vadd.f32 %v4581, %v4390
      %v4583 = vadd.f32 %v4582, %v4391
      %v4584 = vadd.f32 %v4583, %v4392
      %v4585 = vadd.f32 %v4584, %v4393
      %v4586 = vrot.slane %v4585, 4
      %v4587 = vadd.f32 %v4585, %v4586
      %v4588 = vrot.slane %v4587, 2
      %v4589 = vadd.f32 %v4587, %v4588
      %v4590 = vrot.slane %v4589, 1
      %v4591 = vadd.f32 %v4589, %v4590
      %v4592 = vadd.f32 %v4394, %v4395
      %v4593 = vadd.f32 %v4592, %v4396
      %v4594 = vadd.f32 %v4593, %v4397
      %v4595 = vadd.f32 %v4594, %v4398
      %v4596 = vadd.f32 %v4595, %v4399
      %v4597 = vadd.f32 %v4596, %v4400
      %v4598 = vadd.f32 %v4597, %v4401
      %v4599 = vrot.slane %v4598, 4
      %v4600 = vadd.f32 %v4598, %v4599
      %v4601 = vrot.slane %v4600, 2
      %v4602 = vadd.f32 %v4600, %v4601
      %v4603 = vrot.slane %v4602, 1
      %v4604 = vadd.f32 %v4602, %v4603
      %v4605 = vadd.f32 %v4402, %v4403
      %v4606 = vadd.f32 %v4605, %v4404
      %v4607 = vadd.f32 %v4606, %v4405
      %v4608 = vadd.f32 %v4607, %v4406
      %v4609 = vadd.f32 %v4608, %v4407
      %v4610 = vadd.f32 %v4609, %v4408
      %v4611 = vadd.f32 %v4610, %v4409
      %v4612 = vrot.slane %v4611, 4
      %v4613 = vadd.f32 %v4611, %v4612
      %v4614 = vrot.slane %v4613, 2
      %v4615 = vadd.f32 %v4613, %v4614
      %v4616 = vrot.slane %v4615, 1
      %v4617 = vadd.f32 %v4615, %v4616
      %v4618 = vadd.f32 %v3209, %v4422
      %v4619 = vadd.f32 %v3210, %v4435
      %v4620 = vadd.f32 %v3211, %v4448
      %v4621 = vadd.f32 %v3212, %v4461
      %v4622 = vadd.f32 %v3213, %v4474
      %v4623 = vadd.f32 %v3214, %v4487
      %v4624 = vadd.f32 %v3215, %v4500
      %v4625 = vadd.f32 %v3216, %v4513
      %v4626 = vadd.f32 %v3217, %v4526
      %v4627 = vadd.f32 %v3218, %v4539
      %v4628 = vadd.f32 %v3219, %v4552
      %v4629 = vadd.f32 %v3220, %v4565
      %v4630 = vadd.f32 %v3221, %v4578
      %v4631 = vadd.f32 %v3222, %v4591
      %v4632 = vadd.f32 %v3223, %v4604
      %v4633 = vadd.f32 %v3224, %v4617
      %v4634 = vld [vmem:[%s307 + $0x60] sm:$0xf]
      %v4635 = vld [vmem:[%s307 + $0x64] sm:$0xf]
      %v4636 = vld [vmem:[%s307 + $0x68] sm:$0xf]
      %v4637 = vld [vmem:[%s307 + $0x6c] sm:$0xf]
      %v4638 = vld [vmem:[%s307 + $0x70] sm:$0xf]
      %v4639 = vld [vmem:[%s307 + $0x74] sm:$0xf]
      %v4640 = vld [vmem:[%s307 + $0x78] sm:$0xf]
      %v4641 = vld [vmem:[%s307 + $0x7c] sm:$0xf]
      %v4642 = vld [vmem:[%s307 + $0xe0] sm:$0xf]
      %v4643 = vld [vmem:[%s307 + $0xe4] sm:$0xf]
      %v4644 = vld [vmem:[%s307 + $0xe8] sm:$0xf]
      %v4645 = vld [vmem:[%s307 + $0xec] sm:$0xf]
      %v4646 = vld [vmem:[%s307 + $0xf0] sm:$0xf]
      %v4647 = vld [vmem:[%s307 + $0xf4] sm:$0xf]
      %v4648 = vld [vmem:[%s307 + $0xf8] sm:$0xf]
      %v4649 = vld [vmem:[%s307 + $0xfc] sm:$0xf]
      %v4650 = vld [vmem:[%s307 + $0x160] sm:$0xf]
      %v4651 = vld [vmem:[%s307 + $0x164] sm:$0xf]
      %v4652 = vld [vmem:[%s307 + $0x168] sm:$0xf]
      %v4653 = vld [vmem:[%s307 + $0x16c] sm:$0xf]
      %v4654 = vld [vmem:[%s307 + $0x170] sm:$0xf]
      %v4655 = vld [vmem:[%s307 + $0x174] sm:$0xf]
      %v4656 = vld [vmem:[%s307 + $0x178] sm:$0xf]
      %v4657 = vld [vmem:[%s307 + $0x17c] sm:$0xf]
      %v4658 = vld [vmem:[%s307 + $0x1e0] sm:$0xf]
      %v4659 = vld [vmem:[%s307 + $0x1e4] sm:$0xf]
      %v4660 = vld [vmem:[%s307 + $0x1e8] sm:$0xf]
      %v4661 = vld [vmem:[%s307 + $0x1ec] sm:$0xf]
      %v4662 = vld [vmem:[%s307 + $0x1f0] sm:$0xf]
      %v4663 = vld [vmem:[%s307 + $0x1f4] sm:$0xf]
      %v4664 = vld [vmem:[%s307 + $0x1f8] sm:$0xf]
      %v4665 = vld [vmem:[%s307 + $0x1fc] sm:$0xf]
      %v4666 = vld [vmem:[%s307 + $0x260] sm:$0xf]
      %v4667 = vld [vmem:[%s307 + $0x264] sm:$0xf]
      %v4668 = vld [vmem:[%s307 + $0x268] sm:$0xf]
      %v4669 = vld [vmem:[%s307 + $0x26c] sm:$0xf]
      %v4670 = vld [vmem:[%s307 + $0x270] sm:$0xf]
      %v4671 = vld [vmem:[%s307 + $0x274] sm:$0xf]
      %v4672 = vld [vmem:[%s307 + $0x278] sm:$0xf]
      %v4673 = vld [vmem:[%s307 + $0x27c] sm:$0xf]
      %v4674 = vld [vmem:[%s307 + $0x2e0] sm:$0xf]
      %v4675 = vld [vmem:[%s307 + $0x2e4] sm:$0xf]
      %v4676 = vld [vmem:[%s307 + $0x2e8] sm:$0xf]
      %v4677 = vld [vmem:[%s307 + $0x2ec] sm:$0xf]
      %v4678 = vld [vmem:[%s307 + $0x2f0] sm:$0xf]
      %v4679 = vld [vmem:[%s307 + $0x2f4] sm:$0xf]
      %v4680 = vld [vmem:[%s307 + $0x2f8] sm:$0xf]
      %v4681 = vld [vmem:[%s307 + $0x2fc] sm:$0xf]
      %v4682 = vld [vmem:[%s307 + $0x360] sm:$0xf]
      %v4683 = vld [vmem:[%s307 + $0x364] sm:$0xf]
      %v4684 = vld [vmem:[%s307 + $0x368] sm:$0xf]
      %v4685 = vld [vmem:[%s307 + $0x36c] sm:$0xf]
      %v4686 = vld [vmem:[%s307 + $0x370] sm:$0xf]
      %v4687 = vld [vmem:[%s307 + $0x374] sm:$0xf]
      %v4688 = vld [vmem:[%s307 + $0x378] sm:$0xf]
      %v4689 = vld [vmem:[%s307 + $0x37c] sm:$0xf]
      %v4690 = vld [vmem:[%s307 + $0x3e0] sm:$0xf]
      %v4691 = vld [vmem:[%s307 + $0x3e4] sm:$0xf]
      %v4692 = vld [vmem:[%s307 + $0x3e8] sm:$0xf]
      %v4693 = vld [vmem:[%s307 + $0x3ec] sm:$0xf]
      %v4694 = vld [vmem:[%s307 + $0x3f0] sm:$0xf]
      %v4695 = vld [vmem:[%s307 + $0x3f4] sm:$0xf]
      %v4696 = vld [vmem:[%s307 + $0x3f8] sm:$0xf]
      %v4697 = vld [vmem:[%s307 + $0x3fc] sm:$0xf]
      %v4698 = vld [vmem:[%s307 + $0x460] sm:$0xf]
      %v4699 = vld [vmem:[%s307 + $0x464] sm:$0xf]
      %v4700 = vld [vmem:[%s307 + $0x468] sm:$0xf]
      %v4701 = vld [vmem:[%s307 + $0x46c] sm:$0xf]
      %v4702 = vld [vmem:[%s307 + $0x470] sm:$0xf]
      %v4703 = vld [vmem:[%s307 + $0x474] sm:$0xf]
      %v4704 = vld [vmem:[%s307 + $0x478] sm:$0xf]
      %v4705 = vld [vmem:[%s307 + $0x47c] sm:$0xf]
      %v4706 = vld [vmem:[%s307 + $0x4e0] sm:$0xf]
      %v4707 = vld [vmem:[%s307 + $0x4e4] sm:$0xf]
      %v4708 = vld [vmem:[%s307 + $0x4e8] sm:$0xf]
      %v4709 = vld [vmem:[%s307 + $0x4ec] sm:$0xf]
      %v4710 = vld [vmem:[%s307 + $0x4f0] sm:$0xf]
      %v4711 = vld [vmem:[%s307 + $0x4f4] sm:$0xf]
      %v4712 = vld [vmem:[%s307 + $0x4f8] sm:$0xf]
      %v4713 = vld [vmem:[%s307 + $0x4fc] sm:$0xf]
      %v4714 = vld [vmem:[%s307 + $0x560] sm:$0xf]
      %v4715 = vld [vmem:[%s307 + $0x564] sm:$0xf]
      %v4716 = vld [vmem:[%s307 + $0x568] sm:$0xf]
      %v4717 = vld [vmem:[%s307 + $0x56c] sm:$0xf]
      %v4718 = vld [vmem:[%s307 + $0x570] sm:$0xf]
      %v4719 = vld [vmem:[%s307 + $0x574] sm:$0xf]
      %v4720 = vld [vmem:[%s307 + $0x578] sm:$0xf]
      %v4721 = vld [vmem:[%s307 + $0x57c] sm:$0xf]
      %v4722 = vld [vmem:[%s307 + $0x5e0] sm:$0xf]
      %v4723 = vld [vmem:[%s307 + $0x5e4] sm:$0xf]
      %v4724 = vld [vmem:[%s307 + $0x5e8] sm:$0xf]
      %v4725 = vld [vmem:[%s307 + $0x5ec] sm:$0xf]
      %v4726 = vld [vmem:[%s307 + $0x5f0] sm:$0xf]
      %v4727 = vld [vmem:[%s307 + $0x5f4] sm:$0xf]
      %v4728 = vld [vmem:[%s307 + $0x5f8] sm:$0xf]
      %v4729 = vld [vmem:[%s307 + $0x5fc] sm:$0xf]
      %v4730 = vld [vmem:[%s307 + $0x660] sm:$0xf]
      %v4731 = vld [vmem:[%s307 + $0x664] sm:$0xf]
      %v4732 = vld [vmem:[%s307 + $0x668] sm:$0xf]
      %v4733 = vld [vmem:[%s307 + $0x66c] sm:$0xf]
      %v4734 = vld [vmem:[%s307 + $0x670] sm:$0xf]
      %v4735 = vld [vmem:[%s307 + $0x674] sm:$0xf]
      %v4736 = vld [vmem:[%s307 + $0x678] sm:$0xf]
      %v4737 = vld [vmem:[%s307 + $0x67c] sm:$0xf]
      %v4738 = vld [vmem:[%s307 + $0x6e0] sm:$0xf]
      %v4739 = vld [vmem:[%s307 + $0x6e4] sm:$0xf]
      %v4740 = vld [vmem:[%s307 + $0x6e8] sm:$0xf]
      %v4741 = vld [vmem:[%s307 + $0x6ec] sm:$0xf]
      %v4742 = vld [vmem:[%s307 + $0x6f0] sm:$0xf]
      %v4743 = vld [vmem:[%s307 + $0x6f4] sm:$0xf]
      %v4744 = vld [vmem:[%s307 + $0x6f8] sm:$0xf]
      %v4745 = vld [vmem:[%s307 + $0x6fc] sm:$0xf]
      %v4746 = vld [vmem:[%s307 + $0x760] sm:$0xf]
      %v4747 = vld [vmem:[%s307 + $0x764] sm:$0xf]
      %v4748 = vld [vmem:[%s307 + $0x768] sm:$0xf]
      %v4749 = vld [vmem:[%s307 + $0x76c] sm:$0xf]
      %v4750 = vld [vmem:[%s307 + $0x770] sm:$0xf]
      %v4751 = vld [vmem:[%s307 + $0x774] sm:$0xf]
      %v4752 = vld [vmem:[%s307 + $0x778] sm:$0xf]
      %v4753 = vld [vmem:[%s307 + $0x77c] sm:$0xf]
      %v4754 = vld [vmem:[%s307 + $0x7e0] sm:$0xf]
      %v4755 = vld [vmem:[%s307 + $0x7e4] sm:$0xf]
      %v4756 = vld [vmem:[%s307 + $0x7e8] sm:$0xf]
      %v4757 = vld [vmem:[%s307 + $0x7ec] sm:$0xf]
      %v4758 = vld [vmem:[%s307 + $0x7f0] sm:$0xf]
      %v4759 = vld [vmem:[%s307 + $0x7f4] sm:$0xf]
      %v4760 = vld [vmem:[%s307 + $0x7f8] sm:$0xf]
      %v4761 = vld [vmem:[%s307 + $0x7fc] sm:$0xf]
      %v4890 = vunpack.c.l.b16 %v4634
      %v4891 = vunpack.c.l.b16 %v4635
      %v4892 = vunpack.c.l.b16 %v4636
      %v4893 = vunpack.c.l.b16 %v4637
      %v4894 = vunpack.c.l.b16 %v4638
      %v4895 = vunpack.c.l.b16 %v4639
      %v4896 = vunpack.c.l.b16 %v4640
      %v4897 = vunpack.c.l.b16 %v4641
      %v4898 = vunpack.c.l.b16 %v4642
      %v4899 = vunpack.c.l.b16 %v4643
      %v4900 = vunpack.c.l.b16 %v4644
      %v4901 = vunpack.c.l.b16 %v4645
      %v4902 = vunpack.c.l.b16 %v4646
      %v4903 = vunpack.c.l.b16 %v4647
      %v4904 = vunpack.c.l.b16 %v4648
      %v4905 = vunpack.c.l.b16 %v4649
      %v4906 = vunpack.c.l.b16 %v4650
      %v4907 = vunpack.c.l.b16 %v4651
      %v4908 = vunpack.c.l.b16 %v4652
      %v4909 = vunpack.c.l.b16 %v4653
      %v4910 = vunpack.c.l.b16 %v4654
      %v4911 = vunpack.c.l.b16 %v4655
      %v4912 = vunpack.c.l.b16 %v4656
      %v4913 = vunpack.c.l.b16 %v4657
      %v4914 = vunpack.c.l.b16 %v4658
      %v4915 = vunpack.c.l.b16 %v4659
      %v4916 = vunpack.c.l.b16 %v4660
      %v4917 = vunpack.c.l.b16 %v4661
      %v4918 = vunpack.c.l.b16 %v4662
      %v4919 = vunpack.c.l.b16 %v4663
      %v4920 = vunpack.c.l.b16 %v4664
      %v4921 = vunpack.c.l.b16 %v4665
      %v4922 = vunpack.c.l.b16 %v4666
      %v4923 = vunpack.c.l.b16 %v4667
      %v4924 = vunpack.c.l.b16 %v4668
      %v4925 = vunpack.c.l.b16 %v4669
      %v4926 = vunpack.c.l.b16 %v4670
      %v4927 = vunpack.c.l.b16 %v4671
      %v4928 = vunpack.c.l.b16 %v4672
      %v4929 = vunpack.c.l.b16 %v4673
      %v4930 = vunpack.c.l.b16 %v4674
      %v4931 = vunpack.c.l.b16 %v4675
      %v4932 = vunpack.c.l.b16 %v4676
      %v4933 = vunpack.c.l.b16 %v4677
      %v4934 = vunpack.c.l.b16 %v4678
      %v4935 = vunpack.c.l.b16 %v4679
      %v4936 = vunpack.c.l.b16 %v4680
      %v4937 = vunpack.c.l.b16 %v4681
      %v4938 = vunpack.c.l.b16 %v4682
      %v4939 = vunpack.c.l.b16 %v4683
      %v4940 = vunpack.c.l.b16 %v4684
      %v4941 = vunpack.c.l.b16 %v4685
      %v4942 = vunpack.c.l.b16 %v4686
      %v4943 = vunpack.c.l.b16 %v4687
      %v4944 = vunpack.c.l.b16 %v4688
      %v4945 = vunpack.c.l.b16 %v4689
      %v4946 = vunpack.c.l.b16 %v4690
      %v4947 = vunpack.c.l.b16 %v4691
      %v4948 = vunpack.c.l.b16 %v4692
      %v4949 = vunpack.c.l.b16 %v4693
      %v4950 = vunpack.c.l.b16 %v4694
      %v4951 = vunpack.c.l.b16 %v4695
      %v4952 = vunpack.c.l.b16 %v4696
      %v4953 = vunpack.c.l.b16 %v4697
      %v4954 = vunpack.c.l.b16 %v4698
      %v4955 = vunpack.c.l.b16 %v4699
      %v4956 = vunpack.c.l.b16 %v4700
      %v4957 = vunpack.c.l.b16 %v4701
      %v4958 = vunpack.c.l.b16 %v4702
      %v4959 = vunpack.c.l.b16 %v4703
      %v4960 = vunpack.c.l.b16 %v4704
      %v4961 = vunpack.c.l.b16 %v4705
      %v4962 = vunpack.c.l.b16 %v4706
      %v4963 = vunpack.c.l.b16 %v4707
      %v4964 = vunpack.c.l.b16 %v4708
      %v4965 = vunpack.c.l.b16 %v4709
      %v4966 = vunpack.c.l.b16 %v4710
      %v4967 = vunpack.c.l.b16 %v4711
      %v4968 = vunpack.c.l.b16 %v4712
      %v4969 = vunpack.c.l.b16 %v4713
      %v4970 = vunpack.c.l.b16 %v4714
      %v4971 = vunpack.c.l.b16 %v4715
      %v4972 = vunpack.c.l.b16 %v4716
      %v4973 = vunpack.c.l.b16 %v4717
      %v4974 = vunpack.c.l.b16 %v4718
      %v4975 = vunpack.c.l.b16 %v4719
      %v4976 = vunpack.c.l.b16 %v4720
      %v4977 = vunpack.c.l.b16 %v4721
      %v4978 = vunpack.c.l.b16 %v4722
      %v4979 = vunpack.c.l.b16 %v4723
      %v4980 = vunpack.c.l.b16 %v4724
      %v4981 = vunpack.c.l.b16 %v4725
      %v4982 = vunpack.c.l.b16 %v4726
      %v4983 = vunpack.c.l.b16 %v4727
      %v4984 = vunpack.c.l.b16 %v4728
      %v4985 = vunpack.c.l.b16 %v4729
      %v4986 = vunpack.c.l.b16 %v4730
      %v4987 = vunpack.c.l.b16 %v4731
      %v4988 = vunpack.c.l.b16 %v4732
      %v4989 = vunpack.c.l.b16 %v4733
      %v4990 = vunpack.c.l.b16 %v4734
      %v4991 = vunpack.c.l.b16 %v4735
      %v4992 = vunpack.c.l.b16 %v4736
      %v4993 = vunpack.c.l.b16 %v4737
      %v4994 = vunpack.c.l.b16 %v4738
      %v4995 = vunpack.c.l.b16 %v4739
      %v4996 = vunpack.c.l.b16 %v4740
      %v4997 = vunpack.c.l.b16 %v4741
      %v4998 = vunpack.c.l.b16 %v4742
      %v4999 = vunpack.c.l.b16 %v4743
      %v5000 = vunpack.c.l.b16 %v4744
      %v5001 = vunpack.c.l.b16 %v4745
      %v5002 = vunpack.c.l.b16 %v4746
      %v5003 = vunpack.c.l.b16 %v4747
      %v5004 = vunpack.c.l.b16 %v4748
      %v5005 = vunpack.c.l.b16 %v4749
      %v5006 = vunpack.c.l.b16 %v4750
      %v5007 = vunpack.c.l.b16 %v4751
      %v5008 = vunpack.c.l.b16 %v4752
      %v5009 = vunpack.c.l.b16 %v4753
      %v5010 = vunpack.c.l.b16 %v4754
      %v5011 = vunpack.c.l.b16 %v4755
      %v5012 = vunpack.c.l.b16 %v4756
      %v5013 = vunpack.c.l.b16 %v4757
      %v5014 = vunpack.c.l.b16 %v4758
      %v5015 = vunpack.c.l.b16 %v4759
      %v5016 = vunpack.c.l.b16 %v4760
      %v5017 = vunpack.c.l.b16 %v4761
      %v5018 = vpack.c.b16 %v4891, %v4890
      %v5019 = vpack.c.b16 %v4893, %v4892
      %v5020 = vpack.c.b16 %v4895, %v4894
      %v5021 = vpack.c.b16 %v4897, %v4896
      %v5022 = vpack.c.b16 %v4899, %v4898
      %v5023 = vpack.c.b16 %v4901, %v4900
      %v5024 = vpack.c.b16 %v4903, %v4902
      %v5025 = vpack.c.b16 %v4905, %v4904
      %v5026 = vpack.c.b16 %v4907, %v4906
      %v5027 = vpack.c.b16 %v4909, %v4908
      %v5028 = vpack.c.b16 %v4911, %v4910
      %v5029 = vpack.c.b16 %v4913, %v4912
      %v5030 = vpack.c.b16 %v4915, %v4914
      %v5031 = vpack.c.b16 %v4917, %v4916
      %v5032 = vpack.c.b16 %v4919, %v4918
      %v5033 = vpack.c.b16 %v4921, %v4920
      %v5034 = vpack.c.b16 %v4923, %v4922
      %v5035 = vpack.c.b16 %v4925, %v4924
      %v5036 = vpack.c.b16 %v4927, %v4926
      %v5037 = vpack.c.b16 %v4929, %v4928
      %v5038 = vpack.c.b16 %v4931, %v4930
      %v5039 = vpack.c.b16 %v4933, %v4932
      %v5040 = vpack.c.b16 %v4935, %v4934
      %v5041 = vpack.c.b16 %v4937, %v4936
      %v5042 = vpack.c.b16 %v4939, %v4938
      %v5043 = vpack.c.b16 %v4941, %v4940
      %v5044 = vpack.c.b16 %v4943, %v4942
      %v5045 = vpack.c.b16 %v4945, %v4944
      %v5046 = vpack.c.b16 %v4947, %v4946
      %v5047 = vpack.c.b16 %v4949, %v4948
      %v5048 = vpack.c.b16 %v4951, %v4950
      %v5049 = vpack.c.b16 %v4953, %v4952
      %v5050 = vpack.c.b16 %v4955, %v4954
      %v5051 = vpack.c.b16 %v4957, %v4956
      %v5052 = vpack.c.b16 %v4959, %v4958
      %v5053 = vpack.c.b16 %v4961, %v4960
      %v5054 = vpack.c.b16 %v4963, %v4962
      %v5055 = vpack.c.b16 %v4965, %v4964
      %v5056 = vpack.c.b16 %v4967, %v4966
      %v5057 = vpack.c.b16 %v4969, %v4968
      %v5058 = vpack.c.b16 %v4971, %v4970
      %v5059 = vpack.c.b16 %v4973, %v4972
      %v5060 = vpack.c.b16 %v4975, %v4974
      %v5061 = vpack.c.b16 %v4977, %v4976
      %v5062 = vpack.c.b16 %v4979, %v4978
      %v5063 = vpack.c.b16 %v4981, %v4980
      %v5064 = vpack.c.b16 %v4983, %v4982
      %v5065 = vpack.c.b16 %v4985, %v4984
      %v5066 = vpack.c.b16 %v4987, %v4986
      %v5067 = vpack.c.b16 %v4989, %v4988
      %v5068 = vpack.c.b16 %v4991, %v4990
      %v5069 = vpack.c.b16 %v4993, %v4992
      %v5070 = vpack.c.b16 %v4995, %v4994
      %v5071 = vpack.c.b16 %v4997, %v4996
      %v5072 = vpack.c.b16 %v4999, %v4998
      %v5073 = vpack.c.b16 %v5001, %v5000
      %v5074 = vpack.c.b16 %v5003, %v5002
      %v5075 = vpack.c.b16 %v5005, %v5004
      %v5076 = vpack.c.b16 %v5007, %v5006
      %v5077 = vpack.c.b16 %v5009, %v5008
      %v5078 = vpack.c.b16 %v5011, %v5010
      %v5079 = vpack.c.b16 %v5013, %v5012
      %v5080 = vpack.c.b16 %v5015, %v5014
      %v5081 = vpack.c.b16 %v5017, %v5016
      %5146 = vmatprep.subr.bf16.mxu0 0
      %5147 = vmatpush1.bf16.msra.mxu0 %v903
      %5148 = vmatprep.subr.bf16.mxu0 0
      %5149 = vmatpush1.bf16.msra.mxu0 %v904
      %5150 = vmatprep.subr.bf16.mxu0 0
      %5151 = vmatpush1.bf16.msra.mxu0 %v905
      %5152 = vmatprep.subr.bf16.mxu0 0
      %5153 = vmatpush1.bf16.msra.mxu0 %v906
      %5154 = vmatprep.subr.bf16.mxu0 0
      %5155 = vmatpush1.bf16.msra.mxu0 %v907
      %5156 = vmatprep.subr.bf16.mxu0 0
      %5157 = vmatpush1.bf16.msra.mxu0 %v908
      %5158 = vmatprep.subr.bf16.mxu0 0
      %5159 = vmatpush1.bf16.msra.mxu0 %v909
      %5160 = vmatprep.subr.bf16.mxu0 0
      %5161 = vmatpush1.bf16.msra.mxu0 %v910
      %5162 = vmatprep.subr.bf16.mxu0 0
      %5163 = vmatpush1.bf16.msra.mxu0 0
      %5164 = vmatprep.subr.bf16.mxu0 0
      %5165 = vmatpush1.bf16.msra.mxu0 0
      %5166 = vmatprep.subr.bf16.mxu0 0
      %5167 = vmatpush1.bf16.msra.mxu0 0
      %5168 = vmatprep.subr.bf16.mxu0 0
      %5169 = vmatpush1.bf16.msra.mxu0 0
      %5170 = vmatprep.subr.bf16.mxu0 0
      %5171 = vmatpush1.bf16.msra.mxu0 0
      %5172 = vmatprep.subr.bf16.mxu0 0
      %5173 = vmatpush1.bf16.msra.mxu0 0
      %5174 = vmatprep.subr.bf16.mxu0 0
      %5175 = vmatpush1.bf16.msra.mxu0 0
      %5176 = vmatprep.subr.bf16.mxu0 0
      %5177 = vmatpush1.bf16.msra.mxu0 0
      %5178 = vmatprep.mubr.bf16.mxu0 0
      %5179 = vmatmul.mubr.bf16.gmra.mrb[0].mxu0 %v5018
      %v5180 = vpop.f32.mrb[0].mxu0
      %v5181 = vadd.f32 %v485, %v5180
      %v5182 = vpop.f32.mrb[0].mxu0
      %v5183 = vpop.f32.mrb[0].mxu0
      %v5184 = vadd.f32 %v485, %v5183
      %v5185 = vpop.f32.mrb[0].mxu0
      %5186 = vmatprep.mubr.bf16.mxu0 0
      %5187 = vmatmul.mubr.bf16.gmra.mrb[0].mxu0 %v5019
      %v5188 = vpop.f32.mrb[0].mxu0
      %v5189 = vadd.f32 %v485, %v5188
      %v5190 = vpop.f32.mrb[0].mxu0
      %v5191 = vpop.f32.mrb[0].mxu0
      %v5192 = vadd.f32 %v485, %v5191
      %v5193 = vpop.f32.mrb[0].mxu0
      %5194 = vmatprep.mubr.bf16.mxu0 0
      %5195 = vmatmul.mubr.bf16.gmra.mrb[0].mxu0 %v5020
      %v5196 = vpop.f32.mrb[0].mxu0
      %v5197 = vadd.f32 %v485, %v5196
      %v5198 = vpop.f32.mrb[0].mxu0
      %v5199 = vpop.f32.mrb[0].mxu0
      %v5200 = vadd.f32 %v485, %v5199
      %v5201 = vpop.f32.mrb[0].mxu0
      %5202 = vmatprep.mubr.bf16.mxu0 0
      %5203 = vmatmul.mubr.bf16.gmra.mrb[0].mxu0 %v5021
      %v5204 = vpop.f32.mrb[0].mxu0
      %v5205 = vadd.f32 %v485, %v5204
      %v5206 = vpop.f32.mrb[0].mxu0
      %v5207 = vpop.f32.mrb[0].mxu0
      %v5208 = vadd.f32 %v485, %v5207
      %v5209 = vpop.f32.mrb[0].mxu0
      %5210 = vmatprep.mubr.bf16.mxu0 0
      %5211 = vmatmul.mubr.bf16.gmra.mrb[0].mxu0 %v5022
      %v5212 = vpop.f32.mrb[0].mxu0
      %v5213 = vadd.f32 %v485, %v5212
      %v5214 = vpop.f32.mrb[0].mxu0
      %v5215 = vpop.f32.mrb[0].mxu0
      %v5216 = vadd.f32 %v485, %v5215
      %v5217 = vpop.f32.mrb[0].mxu0
      %5218 = vmatprep.mubr.bf16.mxu0 0
      %5219 = vmatmul.mubr.bf16.gmra.mrb[0].mxu0 %v5023
      %v5220 = vpop.f32.mrb[0].mxu0
      %v5221 = vadd.f32 %v485, %v5220
      %v5222 = vpop.f32.mrb[0].mxu0
      %v5223 = vpop.f32.mrb[0].mxu0
      %v5224 = vadd.f32 %v485, %v5223
      %v5225 = vpop.f32.mrb[0].mxu0
      %5226 = vmatprep.mubr.bf16.mxu0 0
      %5227 = vmatmul.mubr.bf16.gmra.mrb[0].mxu0 %v5024
      %v5228 = vpop.f32.mrb[0].mxu0
      %v5229 = vadd.f32 %v485, %v5228
      %v5230 = vpop.f32.mrb[0].mxu0
      %v5231 = vpop.f32.mrb[0].mxu0
      %v5232 = vadd.f32 %v485, %v5231
      %v5233 = vpop.f32.mrb[0].mxu0
      %5234 = vmatprep.mubr.bf16.mxu0 0
      %5235 = vmatmul.mubr.bf16.gmra.mrb[0].mxu0 %v5025
      %v5236 = vpop.f32.mrb[0].mxu0
      %v5237 = vadd.f32 %v485, %v5236
      %v5238 = vpop.f32.mrb[0].mxu0
      %v5239 = vpop.f32.mrb[0].mxu0
      %v5240 = vadd.f32 %v485, %v5239
      %v5241 = vpop.f32.mrb[0].mxu0
      %5242 = vmatprep.mubr.bf16.mxu0 0
      %5243 = vmatmul.mubr.bf16.gmra.mrb[0].mxu0 %v5026
      %v5244 = vpop.f32.mrb[0].mxu0
      %v5245 = vadd.f32 %v485, %v5244
      %v5246 = vpop.f32.mrb[0].mxu0
      %v5247 = vpop.f32.mrb[0].mxu0
      %v5248 = vadd.f32 %v485, %v5247
      %v5249 = vpop.f32.mrb[0].mxu0
      %5250 = vmatprep.mubr.bf16.mxu0 0
      %5251 = vmatmul.mubr.bf16.gmra.mrb[0].mxu0 %v5027
      %v5252 = vpop.f32.mrb[0].mxu0
      %v5253 = vadd.f32 %v485, %v5252
      %v5254 = vpop.f32.mrb[0].mxu0
      %v5255 = vpop.f32.mrb[0].mxu0
      %v5256 = vadd.f32 %v485, %v5255
      %v5257 = vpop.f32.mrb[0].mxu0
      %5258 = vmatprep.mubr.bf16.mxu0 0
      %5259 = vmatmul.mubr.bf16.gmra.mrb[0].mxu0 %v5028
      %v5260 = vpop.f32.mrb[0].mxu0
      %v5261 = vadd.f32 %v485, %v5260
      %v5262 = vpop.f32.mrb[0].mxu0
      %v5263 = vpop.f32.mrb[0].mxu0
      %v5264 = vadd.f32 %v485, %v5263
      %v5265 = vpop.f32.mrb[0].mxu0
      %5266 = vmatprep.mubr.bf16.mxu0 0
      %5267 = vmatmul.mubr.bf16.gmra.mrb[0].mxu0 %v5029
      %v5268 = vpop.f32.mrb[0].mxu0
      %v5269 = vadd.f32 %v485, %v5268
      %v5270 = vpop.f32.mrb[0].mxu0
      %v5271 = vpop.f32.mrb[0].mxu0
      %v5272 = vadd.f32 %v485, %v5271
      %v5273 = vpop.f32.mrb[0].mxu0
      %5274 = vmatprep.mubr.bf16.mxu0 0
      %5275 = vmatmul.mubr.bf16.gmra.mrb[0].mxu0 %v5030
      %v5276 = vpop.f32.mrb[0].mxu0
      %v5277 = vadd.f32 %v485, %v5276
      %v5278 = vpop.f32.mrb[0].mxu0
      %v5279 = vpop.f32.mrb[0].mxu0
      %v5280 = vadd.f32 %v485, %v5279
      %v5281 = vpop.f32.mrb[0].mxu0
      %5282 = vmatprep.mubr.bf16.mxu0 0
      %5283 = vmatmul.mubr.bf16.gmra.mrb[0].mxu0 %v5031
      %v5284 = vpop.f32.mrb[0].mxu0
      %v5285 = vadd.f32 %v485, %v5284
      %v5286 = vpop.f32.mrb[0].mxu0
      %v5287 = vpop.f32.mrb[0].mxu0
      %v5288 = vadd.f32 %v485, %v5287
      %v5289 = vpop.f32.mrb[0].mxu0
      %5290 = vmatprep.mubr.bf16.mxu0 0
      %5291 = vmatmul.mubr.bf16.gmra.mrb[0].mxu0 %v5032
      %v5292 = vpop.f32.mrb[0].mxu0
      %v5293 = vadd.f32 %v485, %v5292
      %v5294 = vpop.f32.mrb[0].mxu0
      %v5295 = vpop.f32.mrb[0].mxu0
      %v5296 = vadd.f32 %v485, %v5295
      %v5297 = vpop.f32.mrb[0].mxu0
      %5298 = vmatprep.mubr.bf16.mxu0 0
      %5299 = vmatmul.mubr.bf16.gmra.mrb[0].mxu0 %v5033
      %v5300 = vpop.f32.mrb[0].mxu0
      %v5301 = vadd.f32 %v485, %v5300
      %v5302 = vpop.f32.mrb[0].mxu0
      %v5303 = vpop.f32.mrb[0].mxu0
      %v5304 = vadd.f32 %v485, %v5303
      %v5305 = vpop.f32.mrb[0].mxu0
      %5306 = vmatprep.mubr.bf16.mxu0 0
      %5307 = vmatmul.mubr.bf16.gmra.mrb[0].mxu0 %v5034
      %v5308 = vpop.f32.mrb[0].mxu0
      %v5309 = vadd.f32 %v485, %v5308
      %v5310 = vpop.f32.mrb[0].mxu0
      %v5311 = vpop.f32.mrb[0].mxu0
      %v5312 = vadd.f32 %v485, %v5311
      %v5313 = vpop.f32.mrb[0].mxu0
      %5314 = vmatprep.mubr.bf16.mxu0 0
      %5315 = vmatmul.mubr.bf16.gmra.mrb[0].mxu0 %v5035
      %v5316 = vpop.f32.mrb[0].mxu0
      %v5317 = vadd.f32 %v485, %v5316
      %v5318 = vpop.f32.mrb[0].mxu0
      %v5319 = vpop.f32.mrb[0].mxu0
      %v5320 = vadd.f32 %v485, %v5319
      %v5321 = vpop.f32.mrb[0].mxu0
      %5322 = vmatprep.mubr.bf16.mxu0 0
      %5323 = vmatmul.mubr.bf16.gmra.mrb[0].mxu0 %v5036
      %v5324 = vpop.f32.mrb[0].mxu0
      %v5325 = vadd.f32 %v485, %v5324
      %v5326 = vpop.f32.mrb[0].mxu0
      %v5327 = vpop.f32.mrb[0].mxu0
      %v5328 = vadd.f32 %v485, %v5327
      %v5329 = vpop.f32.mrb[0].mxu0
      %5330 = vmatprep.mubr.bf16.mxu0 0
      %5331 = vmatmul.mubr.bf16.gmra.mrb[0].mxu0 %v5037
      %v5332 = vpop.f32.mrb[0].mxu0
      %v5333 = vadd.f32 %v485, %v5332
      %v5334 = vpop.f32.mrb[0].mxu0
      %v5335 = vpop.f32.mrb[0].mxu0
      %v5336 = vadd.f32 %v485, %v5335
      %v5337 = vpop.f32.mrb[0].mxu0
      %5338 = vmatprep.mubr.bf16.mxu0 0
      %5339 = vmatmul.mubr.bf16.gmra.mrb[0].mxu0 %v5038
      %v5340 = vpop.f32.mrb[0].mxu0
      %v5341 = vadd.f32 %v485, %v5340
      %v5342 = vpop.f32.mrb[0].mxu0
      %v5343 = vpop.f32.mrb[0].mxu0
      %v5344 = vadd.f32 %v485, %v5343
      %v5345 = vpop.f32.mrb[0].mxu0
      %5346 = vmatprep.mubr.bf16.mxu0 0
      %5347 = vmatmul.mubr.bf16.gmra.mrb[0].mxu0 %v5039
      %v5348 = vpop.f32.mrb[0].mxu0
      %v5349 = vadd.f32 %v485, %v5348
      %v5350 = vpop.f32.mrb[0].mxu0
      %v5351 = vpop.f32.mrb[0].mxu0
      %v5352 = vadd.f32 %v485, %v5351
      %v5353 = vpop.f32.mrb[0].mxu0
      %5354 = vmatprep.mubr.bf16.mxu0 0
      %5355 = vmatmul.mubr.bf16.gmra.mrb[0].mxu0 %v5040
      %v5356 = vpop.f32.mrb[0].mxu0
      %v5357 = vadd.f32 %v485, %v5356
      %v5358 = vpop.f32.mrb[0].mxu0
      %v5359 = vpop.f32.mrb[0].mxu0
      %v5360 = vadd.f32 %v485, %v5359
      %v5361 = vpop.f32.mrb[0].mxu0
      %5362 = vmatprep.mubr.bf16.mxu0 0
      %5363 = vmatmul.mubr.bf16.gmra.mrb[0].mxu0 %v5041
      %v5364 = vpop.f32.mrb[0].mxu0
      %v5365 = vadd.f32 %v485, %v5364
      %v5366 = vpop.f32.mrb[0].mxu0
      %v5367 = vpop.f32.mrb[0].mxu0
      %v5368 = vadd.f32 %v485, %v5367
      %v5369 = vpop.f32.mrb[0].mxu0
      %5370 = vmatprep.mubr.bf16.mxu0 0
      %5371 = vmatmul.mubr.bf16.gmra.mrb[0].mxu0 %v5042
      %v5372 = vpop.f32.mrb[0].mxu0
      %v5373 = vadd.f32 %v485, %v5372
      %v5374 = vpop.f32.mrb[0].mxu0
      %v5375 = vpop.f32.mrb[0].mxu0
      %v5376 = vadd.f32 %v485, %v5375
      %v5377 = vpop.f32.mrb[0].mxu0
      %5378 = vmatprep.mubr.bf16.mxu0 0
      %5379 = vmatmul.mubr.bf16.gmra.mrb[0].mxu0 %v5043
      %v5380 = vpop.f32.mrb[0].mxu0
      %v5381 = vadd.f32 %v485, %v5380
      %v5382 = vpop.f32.mrb[0].mxu0
      %v5383 = vpop.f32.mrb[0].mxu0
      %v5384 = vadd.f32 %v485, %v5383
      %v5385 = vpop.f32.mrb[0].mxu0
      %5386 = vmatprep.mubr.bf16.mxu0 0
      %5387 = vmatmul.mubr.bf16.gmra.mrb[0].mxu0 %v5044
      %v5388 = vpop.f32.mrb[0].mxu0
      %v5389 = vadd.f32 %v485, %v5388
      %v5390 = vpop.f32.mrb[0].mxu0
      %v5391 = vpop.f32.mrb[0].mxu0
      %v5392 = vadd.f32 %v485, %v5391
      %v5393 = vpop.f32.mrb[0].mxu0
      %5394 = vmatprep.mubr.bf16.mxu0 0
      %5395 = vmatmul.mubr.bf16.gmra.mrb[0].mxu0 %v5045
      %v5396 = vpop.f32.mrb[0].mxu0
      %v5397 = vadd.f32 %v485, %v5396
      %v5398 = vpop.f32.mrb[0].mxu0
      %v5399 = vpop.f32.mrb[0].mxu0
      %v5400 = vadd.f32 %v485, %v5399
      %v5401 = vpop.f32.mrb[0].mxu0
      %5402 = vmatprep.mubr.bf16.mxu0 0
      %5403 = vmatmul.mubr.bf16.gmra.mrb[0].mxu0 %v5046
      %v5404 = vpop.f32.mrb[0].mxu0
      %v5405 = vadd.f32 %v485, %v5404
      %v5406 = vpop.f32.mrb[0].mxu0
      %v5407 = vpop.f32.mrb[0].mxu0
      %v5408 = vadd.f32 %v485, %v5407
      %v5409 = vpop.f32.mrb[0].mxu0
      %5410 = vmatprep.mubr.bf16.mxu0 0
      %5411 = vmatmul.mubr.bf16.gmra.mrb[0].mxu0 %v5047
      %v5412 = vpop.f32.mrb[0].mxu0
      %v5413 = vadd.f32 %v485, %v5412
      %v5414 = vpop.f32.mrb[0].mxu0
      %v5415 = vpop.f32.mrb[0].mxu0
      %v5416 = vadd.f32 %v485, %v5415
      %v5417 = vpop.f32.mrb[0].mxu0
      %5418 = vmatprep.mubr.bf16.mxu0 0
      %5419 = vmatmul.mubr.bf16.gmra.mrb[0].mxu0 %v5048
      %v5420 = vpop.f32.mrb[0].mxu0
      %v5421 = vadd.f32 %v485, %v5420
      %v5422 = vpop.f32.mrb[0].mxu0
      %v5423 = vpop.f32.mrb[0].mxu0
      %v5424 = vadd.f32 %v485, %v5423
      %v5425 = vpop.f32.mrb[0].mxu0
      %5426 = vmatprep.mubr.bf16.mxu0 0
      %5427 = vmatmul.mubr.bf16.gmra.mrb[0].mxu0 %v5049
      %v5428 = vpop.f32.mrb[0].mxu0
      %v5429 = vadd.f32 %v485, %v5428
      %v5430 = vpop.f32.mrb[0].mxu0
      %v5431 = vpop.f32.mrb[0].mxu0
      %v5432 = vadd.f32 %v485, %v5431
      %v5433 = vpop.f32.mrb[0].mxu0
      %5434 = vmatprep.mubr.bf16.mxu0 0
      %5435 = vmatmul.mubr.bf16.gmra.mrb[0].mxu0 %v5050
      %v5436 = vpop.f32.mrb[0].mxu0
      %v5437 = vadd.f32 %v485, %v5436
      %v5438 = vpop.f32.mrb[0].mxu0
      %v5439 = vpop.f32.mrb[0].mxu0
      %v5440 = vadd.f32 %v485, %v5439
      %v5441 = vpop.f32.mrb[0].mxu0
      %5442 = vmatprep.mubr.bf16.mxu0 0
      %5443 = vmatmul.mubr.bf16.gmra.mrb[0].mxu0 %v5051
      %v5444 = vpop.f32.mrb[0].mxu0
      %v5445 = vadd.f32 %v485, %v5444
      %v5446 = vpop.f32.mrb[0].mxu0
      %v5447 = vpop.f32.mrb[0].mxu0
      %v5448 = vadd.f32 %v485, %v5447
      %v5449 = vpop.f32.mrb[0].mxu0
      %5450 = vmatprep.mubr.bf16.mxu0 0
      %5451 = vmatmul.mubr.bf16.gmra.mrb[0].mxu0 %v5052
      %v5452 = vpop.f32.mrb[0].mxu0
      %v5453 = vadd.f32 %v485, %v5452
      %v5454 = vpop.f32.mrb[0].mxu0
      %v5455 = vpop.f32.mrb[0].mxu0
      %v5456 = vadd.f32 %v485, %v5455
      %v5457 = vpop.f32.mrb[0].mxu0
      %5458 = vmatprep.mubr.bf16.mxu0 0
      %5459 = vmatmul.mubr.bf16.gmra.mrb[0].mxu0 %v5053
      %v5460 = vpop.f32.mrb[0].mxu0
      %v5461 = vadd.f32 %v485, %v5460
      %v5462 = vpop.f32.mrb[0].mxu0
      %v5463 = vpop.f32.mrb[0].mxu0
      %v5464 = vadd.f32 %v485, %v5463
      %v5465 = vpop.f32.mrb[0].mxu0
      %5466 = vmatprep.mubr.bf16.mxu0 0
      %5467 = vmatmul.mubr.bf16.gmra.mrb[0].mxu0 %v5054
      %v5468 = vpop.f32.mrb[0].mxu0
      %v5469 = vadd.f32 %v485, %v5468
      %v5470 = vpop.f32.mrb[0].mxu0
      %v5471 = vpop.f32.mrb[0].mxu0
      %v5472 = vadd.f32 %v485, %v5471
      %v5473 = vpop.f32.mrb[0].mxu0
      %5474 = vmatprep.mubr.bf16.mxu0 0
      %5475 = vmatmul.mubr.bf16.gmra.mrb[0].mxu0 %v5055
      %v5476 = vpop.f32.mrb[0].mxu0
      %v5477 = vadd.f32 %v485, %v5476
      %v5478 = vpop.f32.mrb[0].mxu0
      %v5479 = vpop.f32.mrb[0].mxu0
      %v5480 = vadd.f32 %v485, %v5479
      %v5481 = vpop.f32.mrb[0].mxu0
      %5482 = vmatprep.mubr.bf16.mxu0 0
      %5483 = vmatmul.mubr.bf16.gmra.mrb[0].mxu0 %v5056
      %v5484 = vpop.f32.mrb[0].mxu0
      %v5485 = vadd.f32 %v485, %v5484
      %v5486 = vpop.f32.mrb[0].mxu0
      %v5487 = vpop.f32.mrb[0].mxu0
      %v5488 = vadd.f32 %v485, %v5487
      %v5489 = vpop.f32.mrb[0].mxu0
      %5490 = vmatprep.mubr.bf16.mxu0 0
      %5491 = vmatmul.mubr.bf16.gmra.mrb[0].mxu0 %v5057
      %v5492 = vpop.f32.mrb[0].mxu0
      %v5493 = vadd.f32 %v485, %v5492
      %v5494 = vpop.f32.mrb[0].mxu0
      %v5495 = vpop.f32.mrb[0].mxu0
      %v5496 = vadd.f32 %v485, %v5495
      %v5497 = vpop.f32.mrb[0].mxu0
      %5498 = vmatprep.mubr.bf16.mxu0 0
      %5499 = vmatmul.mubr.bf16.gmra.mrb[0].mxu0 %v5058
      %v5500 = vpop.f32.mrb[0].mxu0
      %v5501 = vadd.f32 %v485, %v5500
      %v5502 = vpop.f32.mrb[0].mxu0
      %v5503 = vpop.f32.mrb[0].mxu0
      %v5504 = vadd.f32 %v485, %v5503
      %v5505 = vpop.f32.mrb[0].mxu0
      %5506 = vmatprep.mubr.bf16.mxu0 0
      %5507 = vmatmul.mubr.bf16.gmra.mrb[0].mxu0 %v5059
      %v5508 = vpop.f32.mrb[0].mxu0
      %v5509 = vadd.f32 %v485, %v5508
      %v5510 = vpop.f32.mrb[0].mxu0
      %v5511 = vpop.f32.mrb[0].mxu0
      %v5512 = vadd.f32 %v485, %v5511
      %v5513 = vpop.f32.mrb[0].mxu0
      %5514 = vmatprep.mubr.bf16.mxu0 0
      %5515 = vmatmul.mubr.bf16.gmra.mrb[0].mxu0 %v5060
      %v5516 = vpop.f32.mrb[0].mxu0
      %v5517 = vadd.f32 %v485, %v5516
      %v5518 = vpop.f32.mrb[0].mxu0
      %v5519 = vpop.f32.mrb[0].mxu0
      %v5520 = vadd.f32 %v485, %v5519
      %v5521 = vpop.f32.mrb[0].mxu0
      %5522 = vmatprep.mubr.bf16.mxu0 0
      %5523 = vmatmul.mubr.bf16.gmra.mrb[0].mxu0 %v5061
      %v5524 = vpop.f32.mrb[0].mxu0
      %v5525 = vadd.f32 %v485, %v5524
      %v5526 = vpop.f32.mrb[0].mxu0
      %v5527 = vpop.f32.mrb[0].mxu0
      %v5528 = vadd.f32 %v485, %v5527
      %v5529 = vpop.f32.mrb[0].mxu0
      %5530 = vmatprep.mubr.bf16.mxu0 0
      %5531 = vmatmul.mubr.bf16.gmra.mrb[0].mxu0 %v5062
      %v5532 = vpop.f32.mrb[0].mxu0
      %v5533 = vadd.f32 %v485, %v5532
      %v5534 = vpop.f32.mrb[0].mxu0
      %v5535 = vpop.f32.mrb[0].mxu0
      %v5536 = vadd.f32 %v485, %v5535
      %v5537 = vpop.f32.mrb[0].mxu0
      %5538 = vmatprep.mubr.bf16.mxu0 0
      %5539 = vmatmul.mubr.bf16.gmra.mrb[0].mxu0 %v5063
      %v5540 = vpop.f32.mrb[0].mxu0
      %v5541 = vadd.f32 %v485, %v5540
      %v5542 = vpop.f32.mrb[0].mxu0
      %v5543 = vpop.f32.mrb[0].mxu0
      %v5544 = vadd.f32 %v485, %v5543
      %v5545 = vpop.f32.mrb[0].mxu0
      %5546 = vmatprep.mubr.bf16.mxu0 0
      %5547 = vmatmul.mubr.bf16.gmra.mrb[0].mxu0 %v5064
      %v5548 = vpop.f32.mrb[0].mxu0
      %v5549 = vadd.f32 %v485, %v5548
      %v5550 = vpop.f32.mrb[0].mxu0
      %v5551 = vpop.f32.mrb[0].mxu0
      %v5552 = vadd.f32 %v485, %v5551
      %v5553 = vpop.f32.mrb[0].mxu0
      %5554 = vmatprep.mubr.bf16.mxu0 0
      %5555 = vmatmul.mubr.bf16.gmra.mrb[0].mxu0 %v5065
      %v5556 = vpop.f32.mrb[0].mxu0
      %v5557 = vadd.f32 %v485, %v5556
      %v5558 = vpop.f32.mrb[0].mxu0
      %v5559 = vpop.f32.mrb[0].mxu0
      %v5560 = vadd.f32 %v485, %v5559
      %v5561 = vpop.f32.mrb[0].mxu0
      %5562 = vmatprep.mubr.bf16.mxu0 0
      %5563 = vmatmul.mubr.bf16.gmra.mrb[0].mxu0 %v5066
      %v5564 = vpop.f32.mrb[0].mxu0
      %v5565 = vadd.f32 %v485, %v5564
      %v5566 = vpop.f32.mrb[0].mxu0
      %v5567 = vpop.f32.mrb[0].mxu0
      %v5568 = vadd.f32 %v485, %v5567
      %v5569 = vpop.f32.mrb[0].mxu0
      %5570 = vmatprep.mubr.bf16.mxu0 0
      %5571 = vmatmul.mubr.bf16.gmra.mrb[0].mxu0 %v5067
      %v5572 = vpop.f32.mrb[0].mxu0
      %v5573 = vadd.f32 %v485, %v5572
      %v5574 = vpop.f32.mrb[0].mxu0
      %v5575 = vpop.f32.mrb[0].mxu0
      %v5576 = vadd.f32 %v485, %v5575
      %v5577 = vpop.f32.mrb[0].mxu0
      %5578 = vmatprep.mubr.bf16.mxu0 0
      %5579 = vmatmul.mubr.bf16.gmra.mrb[0].mxu0 %v5068
      %v5580 = vpop.f32.mrb[0].mxu0
      %v5581 = vadd.f32 %v485, %v5580
      %v5582 = vpop.f32.mrb[0].mxu0
      %v5583 = vpop.f32.mrb[0].mxu0
      %v5584 = vadd.f32 %v485, %v5583
      %v5585 = vpop.f32.mrb[0].mxu0
      %5586 = vmatprep.mubr.bf16.mxu0 0
      %5587 = vmatmul.mubr.bf16.gmra.mrb[0].mxu0 %v5069
      %v5588 = vpop.f32.mrb[0].mxu0
      %v5589 = vadd.f32 %v485, %v5588
      %v5590 = vpop.f32.mrb[0].mxu0
      %v5591 = vpop.f32.mrb[0].mxu0
      %v5592 = vadd.f32 %v485, %v5591
      %v5593 = vpop.f32.mrb[0].mxu0
      %5594 = vmatprep.mubr.bf16.mxu0 0
      %5595 = vmatmul.mubr.bf16.gmra.mrb[0].mxu0 %v5070
      %v5596 = vpop.f32.mrb[0].mxu0
      %v5597 = vadd.f32 %v485, %v5596
      %v5598 = vpop.f32.mrb[0].mxu0
      %v5599 = vpop.f32.mrb[0].mxu0
      %v5600 = vadd.f32 %v485, %v5599
      %v5601 = vpop.f32.mrb[0].mxu0
      %5602 = vmatprep.mubr.bf16.mxu0 0
      %5603 = vmatmul.mubr.bf16.gmra.mrb[0].mxu0 %v5071
      %v5604 = vpop.f32.mrb[0].mxu0
      %v5605 = vadd.f32 %v485, %v5604
      %v5606 = vpop.f32.mrb[0].mxu0
      %v5607 = vpop.f32.mrb[0].mxu0
      %v5608 = vadd.f32 %v485, %v5607
      %v5609 = vpop.f32.mrb[0].mxu0
      %5610 = vmatprep.mubr.bf16.mxu0 0
      %5611 = vmatmul.mubr.bf16.gmra.mrb[0].mxu0 %v5072
      %v5612 = vpop.f32.mrb[0].mxu0
      %v5613 = vadd.f32 %v485, %v5612
      %v5614 = vpop.f32.mrb[0].mxu0
      %v5615 = vpop.f32.mrb[0].mxu0
      %v5616 = vadd.f32 %v485, %v5615
      %v5617 = vpop.f32.mrb[0].mxu0
      %5618 = vmatprep.mubr.bf16.mxu0 0
      %5619 = vmatmul.mubr.bf16.gmra.mrb[0].mxu0 %v5073
      %v5620 = vpop.f32.mrb[0].mxu0
      %v5621 = vadd.f32 %v485, %v5620
      %v5622 = vpop.f32.mrb[0].mxu0
      %v5623 = vpop.f32.mrb[0].mxu0
      %v5624 = vadd.f32 %v485, %v5623
      %v5625 = vpop.f32.mrb[0].mxu0
      %5626 = vmatprep.mubr.bf16.mxu0 0
      %5627 = vmatmul.mubr.bf16.gmra.mrb[0].mxu0 %v5074
      %v5628 = vpop.f32.mrb[0].mxu0
      %v5629 = vadd.f32 %v485, %v5628
      %v5630 = vpop.f32.mrb[0].mxu0
      %v5631 = vpop.f32.mrb[0].mxu0
      %v5632 = vadd.f32 %v485, %v5631
      %v5633 = vpop.f32.mrb[0].mxu0
      %5634 = vmatprep.mubr.bf16.mxu0 0
      %5635 = vmatmul.mubr.bf16.gmra.mrb[0].mxu0 %v5075
      %v5636 = vpop.f32.mrb[0].mxu0
      %v5637 = vadd.f32 %v485, %v5636
      %v5638 = vpop.f32.mrb[0].mxu0
      %v5639 = vpop.f32.mrb[0].mxu0
      %v5640 = vadd.f32 %v485, %v5639
      %v5641 = vpop.f32.mrb[0].mxu0
      %5642 = vmatprep.mubr.bf16.mxu0 0
      %5643 = vmatmul.mubr.bf16.gmra.mrb[0].mxu0 %v5076
      %v5644 = vpop.f32.mrb[0].mxu0
      %v5645 = vadd.f32 %v485, %v5644
      %v5646 = vpop.f32.mrb[0].mxu0
      %v5647 = vpop.f32.mrb[0].mxu0
      %v5648 = vadd.f32 %v485, %v5647
      %v5649 = vpop.f32.mrb[0].mxu0
      %5650 = vmatprep.mubr.bf16.mxu0 0
      %5651 = vmatmul.mubr.bf16.gmra.mrb[0].mxu0 %v5077
      %v5652 = vpop.f32.mrb[0].mxu0
      %v5653 = vadd.f32 %v485, %v5652
      %v5654 = vpop.f32.mrb[0].mxu0
      %v5655 = vpop.f32.mrb[0].mxu0
      %v5656 = vadd.f32 %v485, %v5655
      %v5657 = vpop.f32.mrb[0].mxu0
      %5658 = vmatprep.mubr.bf16.mxu0 0
      %5659 = vmatmul.mubr.bf16.gmra.mrb[0].mxu0 %v5078
      %v5660 = vpop.f32.mrb[0].mxu0
      %v5661 = vadd.f32 %v485, %v5660
      %v5662 = vpop.f32.mrb[0].mxu0
      %v5663 = vpop.f32.mrb[0].mxu0
      %v5664 = vadd.f32 %v485, %v5663
      %v5665 = vpop.f32.mrb[0].mxu0
      %5666 = vmatprep.mubr.bf16.mxu0 0
      %5667 = vmatmul.mubr.bf16.gmra.mrb[0].mxu0 %v5079
      %v5668 = vpop.f32.mrb[0].mxu0
      %v5669 = vadd.f32 %v485, %v5668
      %v5670 = vpop.f32.mrb[0].mxu0
      %v5671 = vpop.f32.mrb[0].mxu0
      %v5672 = vadd.f32 %v485, %v5671
      %v5673 = vpop.f32.mrb[0].mxu0
      %5674 = vmatprep.mubr.bf16.mxu0 0
      %5675 = vmatmul.mubr.bf16.gmra.mrb[0].mxu0 %v5080
      %v5676 = vpop.f32.mrb[0].mxu0
      %v5677 = vadd.f32 %v485, %v5676
      %v5678 = vpop.f32.mrb[0].mxu0
      %v5679 = vpop.f32.mrb[0].mxu0
      %v5680 = vadd.f32 %v485, %v5679
      %v5681 = vpop.f32.mrb[0].mxu0
      %5682 = vmatprep.mubr.bf16.mxu0 0
      %5683 = vmatmul.mubr.bf16.gmra.mrb[0].mxu0 %v5081
      %v5684 = vpop.f32.mrb[0].mxu0
      %v5685 = vadd.f32 %v485, %v5684
      %v5686 = vpop.f32.mrb[0].mxu0
      %v5687 = vpop.f32.mrb[0].mxu0
      %v5688 = vadd.f32 %v485, %v5687
      %v5689 = vpop.f32.mrb[0].mxu0
      %5690 = vdwg.mxu0
      %v5691 = vmax.f32 %v5181, 0.0
      %v5692 = vmax.f32 %v5184, 0.0
      %v5693 = vmax.f32 %v5189, 0.0
      %v5694 = vmax.f32 %v5192, 0.0
      %v5695 = vmax.f32 %v5197, 0.0
      %v5696 = vmax.f32 %v5200, 0.0
      %v5697 = vmax.f32 %v5205, 0.0
      %v5698 = vmax.f32 %v5208, 0.0
      %v5699 = vmax.f32 %v5213, 0.0
      %v5700 = vmax.f32 %v5216, 0.0
      %v5701 = vmax.f32 %v5221, 0.0
      %v5702 = vmax.f32 %v5224, 0.0
      %v5703 = vmax.f32 %v5229, 0.0
      %v5704 = vmax.f32 %v5232, 0.0
      %v5705 = vmax.f32 %v5237, 0.0
      %v5706 = vmax.f32 %v5240, 0.0
      %v5707 = vmax.f32 %v5245, 0.0
      %v5708 = vmax.f32 %v5248, 0.0
      %v5709 = vmax.f32 %v5253, 0.0
      %v5710 = vmax.f32 %v5256, 0.0
      %v5711 = vmax.f32 %v5261, 0.0
      %v5712 = vmax.f32 %v5264, 0.0
      %v5713 = vmax.f32 %v5269, 0.0
      %v5714 = vmax.f32 %v5272, 0.0
      %v5715 = vmax.f32 %v5277, 0.0
      %v5716 = vmax.f32 %v5280, 0.0
      %v5717 = vmax.f32 %v5285, 0.0
      %v5718 = vmax.f32 %v5288, 0.0
      %v5719 = vmax.f32 %v5293, 0.0
      %v5720 = vmax.f32 %v5296, 0.0
      %v5721 = vmax.f32 %v5301, 0.0
      %v5722 = vmax.f32 %v5304, 0.0
      %v5723 = vmax.f32 %v5309, 0.0
      %v5724 = vmax.f32 %v5312, 0.0
      %v5725 = vmax.f32 %v5317, 0.0
      %v5726 = vmax.f32 %v5320, 0.0
      %v5727 = vmax.f32 %v5325, 0.0
      %v5728 = vmax.f32 %v5328, 0.0
      %v5729 = vmax.f32 %v5333, 0.0
      %v5730 = vmax.f32 %v5336, 0.0
      %v5731 = vmax.f32 %v5341, 0.0
      %v5732 = vmax.f32 %v5344, 0.0
      %v5733 = vmax.f32 %v5349, 0.0
      %v5734 = vmax.f32 %v5352, 0.0
      %v5735 = vmax.f32 %v5357, 0.0
      %v5736 = vmax.f32 %v5360, 0.0
      %v5737 = vmax.f32 %v5365, 0.0
      %v5738 = vmax.f32 %v5368, 0.0
      %v5739 = vmax.f32 %v5373, 0.0
      %v5740 = vmax.f32 %v5376, 0.0
      %v5741 = vmax.f32 %v5381, 0.0
      %v5742 = vmax.f32 %v5384, 0.0
      %v5743 = vmax.f32 %v5389, 0.0
      %v5744 = vmax.f32 %v5392, 0.0
      %v5745 = vmax.f32 %v5397, 0.0
      %v5746 = vmax.f32 %v5400, 0.0
      %v5747 = vmax.f32 %v5405, 0.0
      %v5748 = vmax.f32 %v5408, 0.0
      %v5749 = vmax.f32 %v5413, 0.0
      %v5750 = vmax.f32 %v5416, 0.0
      %v5751 = vmax.f32 %v5421, 0.0
      %v5752 = vmax.f32 %v5424, 0.0
      %v5753 = vmax.f32 %v5429, 0.0
      %v5754 = vmax.f32 %v5432, 0.0
      %v5755 = vmax.f32 %v5437, 0.0
      %v5756 = vmax.f32 %v5440, 0.0
      %v5757 = vmax.f32 %v5445, 0.0
      %v5758 = vmax.f32 %v5448, 0.0
      %v5759 = vmax.f32 %v5453, 0.0
      %v5760 = vmax.f32 %v5456, 0.0
      %v5761 = vmax.f32 %v5461, 0.0
      %v5762 = vmax.f32 %v5464, 0.0
      %v5763 = vmax.f32 %v5469, 0.0
      %v5764 = vmax.f32 %v5472, 0.0
      %v5765 = vmax.f32 %v5477, 0.0
      %v5766 = vmax.f32 %v5480, 0.0
      %v5767 = vmax.f32 %v5485, 0.0
      %v5768 = vmax.f32 %v5488, 0.0
      %v5769 = vmax.f32 %v5493, 0.0
      %v5770 = vmax.f32 %v5496, 0.0
      %v5771 = vmax.f32 %v5501, 0.0
      %v5772 = vmax.f32 %v5504, 0.0
      %v5773 = vmax.f32 %v5509, 0.0
      %v5774 = vmax.f32 %v5512, 0.0
      %v5775 = vmax.f32 %v5517, 0.0
      %v5776 = vmax.f32 %v5520, 0.0
      %v5777 = vmax.f32 %v5525, 0.0
      %v5778 = vmax.f32 %v5528, 0.0
      %v5779 = vmax.f32 %v5533, 0.0
      %v5780 = vmax.f32 %v5536, 0.0
      %v5781 = vmax.f32 %v5541, 0.0
      %v5782 = vmax.f32 %v5544, 0.0
      %v5783 = vmax.f32 %v5549, 0.0
      %v5784 = vmax.f32 %v5552, 0.0
      %v5785 = vmax.f32 %v5557, 0.0
      %v5786 = vmax.f32 %v5560, 0.0
      %v5787 = vmax.f32 %v5565, 0.0
      %v5788 = vmax.f32 %v5568, 0.0
      %v5789 = vmax.f32 %v5573, 0.0
      %v5790 = vmax.f32 %v5576, 0.0
      %v5791 = vmax.f32 %v5581, 0.0
      %v5792 = vmax.f32 %v5584, 0.0
      %v5793 = vmax.f32 %v5589, 0.0
      %v5794 = vmax.f32 %v5592, 0.0
      %v5795 = vmax.f32 %v5597, 0.0
      %v5796 = vmax.f32 %v5600, 0.0
      %v5797 = vmax.f32 %v5605, 0.0
      %v5798 = vmax.f32 %v5608, 0.0
      %v5799 = vmax.f32 %v5613, 0.0
      %v5800 = vmax.f32 %v5616, 0.0
      %v5801 = vmax.f32 %v5621, 0.0
      %v5802 = vmax.f32 %v5624, 0.0
      %v5803 = vmax.f32 %v5629, 0.0
      %v5804 = vmax.f32 %v5632, 0.0
      %v5805 = vmax.f32 %v5637, 0.0
      %v5806 = vmax.f32 %v5640, 0.0
      %v5807 = vmax.f32 %v5645, 0.0
      %v5808 = vmax.f32 %v5648, 0.0
      %v5809 = vmax.f32 %v5653, 0.0
      %v5810 = vmax.f32 %v5656, 0.0
      %v5811 = vmax.f32 %v5661, 0.0
      %v5812 = vmax.f32 %v5664, 0.0
      %v5813 = vmax.f32 %v5669, 0.0
      %v5814 = vmax.f32 %v5672, 0.0
      %v5815 = vmax.f32 %v5677, 0.0
      %v5816 = vmax.f32 %v5680, 0.0
      %v5817 = vmax.f32 %v5685, 0.0
      %v5818 = vmax.f32 %v5688, 0.0
      %v5819 = vadd.f32 %v5691, %v5692
      %v5820 = vadd.f32 %v5819, %v5693
      %v5821 = vadd.f32 %v5820, %v5694
      %v5822 = vadd.f32 %v5821, %v5695
      %v5823 = vadd.f32 %v5822, %v5696
      %v5824 = vadd.f32 %v5823, %v5697
      %v5825 = vadd.f32 %v5824, %v5698
      %v5826 = vrot.slane %v5825, 4
      %v5827 = vadd.f32 %v5825, %v5826
      %v5828 = vrot.slane %v5827, 2
      %v5829 = vadd.f32 %v5827, %v5828
      %v5830 = vrot.slane %v5829, 1
      %v5831 = vadd.f32 %v5829, %v5830
      %v5832 = vadd.f32 %v5699, %v5700
      %v5833 = vadd.f32 %v5832, %v5701
      %v5834 = vadd.f32 %v5833, %v5702
      %v5835 = vadd.f32 %v5834, %v5703
      %v5836 = vadd.f32 %v5835, %v5704
      %v5837 = vadd.f32 %v5836, %v5705
      %v5838 = vadd.f32 %v5837, %v5706
      %v5839 = vrot.slane %v5838, 4
      %v5840 = vadd.f32 %v5838, %v5839
      %v5841 = vrot.slane %v5840, 2
      %v5842 = vadd.f32 %v5840, %v5841
      %v5843 = vrot.slane %v5842, 1
      %v5844 = vadd.f32 %v5842, %v5843
      %v5845 = vadd.f32 %v5707, %v5708
      %v5846 = vadd.f32 %v5845, %v5709
      %v5847 = vadd.f32 %v5846, %v5710
      %v5848 = vadd.f32 %v5847, %v5711
      %v5849 = vadd.f32 %v5848, %v5712
      %v5850 = vadd.f32 %v5849, %v5713
      %v5851 = vadd.f32 %v5850, %v5714
      %v5852 = vrot.slane %v5851, 4
      %v5853 = vadd.f32 %v5851, %v5852
      %v5854 = vrot.slane %v5853, 2
      %v5855 = vadd.f32 %v5853, %v5854
      %v5856 = vrot.slane %v5855, 1
      %v5857 = vadd.f32 %v5855, %v5856
      %v5858 = vadd.f32 %v5715, %v5716
      %v5859 = vadd.f32 %v5858, %v5717
      %v5860 = vadd.f32 %v5859, %v5718
      %v5861 = vadd.f32 %v5860, %v5719
      %v5862 = vadd.f32 %v5861, %v5720
      %v5863 = vadd.f32 %v5862, %v5721
      %v5864 = vadd.f32 %v5863, %v5722
      %v5865 = vrot.slane %v5864, 4
      %v5866 = vadd.f32 %v5864, %v5865
      %v5867 = vrot.slane %v5866, 2
      %v5868 = vadd.f32 %v5866, %v5867
      %v5869 = vrot.slane %v5868, 1
      %v5870 = vadd.f32 %v5868, %v5869
      %v5871 = vadd.f32 %v5723, %v5724
      %v5872 = vadd.f32 %v5871, %v5725
      %v5873 = vadd.f32 %v5872, %v5726
      %v5874 = vadd.f32 %v5873, %v5727
      %v5875 = vadd.f32 %v5874, %v5728
      %v5876 = vadd.f32 %v5875, %v5729
      %v5877 = vadd.f32 %v5876, %v5730
      %v5878 = vrot.slane %v5877, 4
      %v5879 = vadd.f32 %v5877, %v5878
      %v5880 = vrot.slane %v5879, 2
      %v5881 = vadd.f32 %v5879, %v5880
      %v5882 = vrot.slane %v5881, 1
      %v5883 = vadd.f32 %v5881, %v5882
      %v5884 = vadd.f32 %v5731, %v5732
      %v5885 = vadd.f32 %v5884, %v5733
      %v5886 = vadd.f32 %v5885, %v5734
      %v5887 = vadd.f32 %v5886, %v5735
      %v5888 = vadd.f32 %v5887, %v5736
      %v5889 = vadd.f32 %v5888, %v5737
      %v5890 = vadd.f32 %v5889, %v5738
      %v5891 = vrot.slane %v5890, 4
      %v5892 = vadd.f32 %v5890, %v5891
      %v5893 = vrot.slane %v5892, 2
      %v5894 = vadd.f32 %v5892, %v5893
      %v5895 = vrot.slane %v5894, 1
      %v5896 = vadd.f32 %v5894, %v5895
      %v5897 = vadd.f32 %v5739, %v5740
      %v5898 = vadd.f32 %v5897, %v5741
      %v5899 = vadd.f32 %v5898, %v5742
      %v5900 = vadd.f32 %v5899, %v5743
      %v5901 = vadd.f32 %v5900, %v5744
      %v5902 = vadd.f32 %v5901, %v5745
      %v5903 = vadd.f32 %v5902, %v5746
      %v5904 = vrot.slane %v5903, 4
      %v5905 = vadd.f32 %v5903, %v5904
      %v5906 = vrot.slane %v5905, 2
      %v5907 = vadd.f32 %v5905, %v5906
      %v5908 = vrot.slane %v5907, 1
      %v5909 = vadd.f32 %v5907, %v5908
      %v5910 = vadd.f32 %v5747, %v5748
      %v5911 = vadd.f32 %v5910, %v5749
      %v5912 = vadd.f32 %v5911, %v5750
      %v5913 = vadd.f32 %v5912, %v5751
      %v5914 = vadd.f32 %v5913, %v5752
      %v5915 = vadd.f32 %v5914, %v5753
      %v5916 = vadd.f32 %v5915, %v5754
      %v5917 = vrot.slane %v5916, 4
      %v5918 = vadd.f32 %v5916, %v5917
      %v5919 = vrot.slane %v5918, 2
      %v5920 = vadd.f32 %v5918, %v5919
      %v5921 = vrot.slane %v5920, 1
      %v5922 = vadd.f32 %v5920, %v5921
      %v5923 = vadd.f32 %v5755, %v5756
      %v5924 = vadd.f32 %v5923, %v5757
      %v5925 = vadd.f32 %v5924, %v5758
      %v5926 = vadd.f32 %v5925, %v5759
      %v5927 = vadd.f32 %v5926, %v5760
      %v5928 = vadd.f32 %v5927, %v5761
      %v5929 = vadd.f32 %v5928, %v5762
      %v5930 = vrot.slane %v5929, 4
      %v5931 = vadd.f32 %v5929, %v5930
      %v5932 = vrot.slane %v5931, 2
      %v5933 = vadd.f32 %v5931, %v5932
      %v5934 = vrot.slane %v5933, 1
      %v5935 = vadd.f32 %v5933, %v5934
      %v5936 = vadd.f32 %v5763, %v5764
      %v5937 = vadd.f32 %v5936, %v5765
      %v5938 = vadd.f32 %v5937, %v5766
      %v5939 = vadd.f32 %v5938, %v5767
      %v5940 = vadd.f32 %v5939, %v5768
      %v5941 = vadd.f32 %v5940, %v5769
      %v5942 = vadd.f32 %v5941, %v5770
      %v5943 = vrot.slane %v5942, 4
      %v5944 = vadd.f32 %v5942, %v5943
      %v5945 = vrot.slane %v5944, 2
      %v5946 = vadd.f32 %v5944, %v5945
      %v5947 = vrot.slane %v5946, 1
      %v5948 = vadd.f32 %v5946, %v5947
      %v5949 = vadd.f32 %v5771, %v5772
      %v5950 = vadd.f32 %v5949, %v5773
      %v5951 = vadd.f32 %v5950, %v5774
      %v5952 = vadd.f32 %v5951, %v5775
      %v5953 = vadd.f32 %v5952, %v5776
      %v5954 = vadd.f32 %v5953, %v5777
      %v5955 = vadd.f32 %v5954, %v5778
      %v5956 = vrot.slane %v5955, 4
      %v5957 = vadd.f32 %v5955, %v5956
      %v5958 = vrot.slane %v5957, 2
      %v5959 = vadd.f32 %v5957, %v5958
      %v5960 = vrot.slane %v5959, 1
      %v5961 = vadd.f32 %v5959, %v5960
      %v5962 = vadd.f32 %v5779, %v5780
      %v5963 = vadd.f32 %v5962, %v5781
      %v5964 = vadd.f32 %v5963, %v5782
      %v5965 = vadd.f32 %v5964, %v5783
      %v5966 = vadd.f32 %v5965, %v5784
      %v5967 = vadd.f32 %v5966, %v5785
      %v5968 = vadd.f32 %v5967, %v5786
      %v5969 = vrot.slane %v5968, 4
      %v5970 = vadd.f32 %v5968, %v5969
      %v5971 = vrot.slane %v5970, 2
      %v5972 = vadd.f32 %v5970, %v5971
      %v5973 = vrot.slane %v5972, 1
      %v5974 = vadd.f32 %v5972, %v5973
      %v5975 = vadd.f32 %v5787, %v5788
      %v5976 = vadd.f32 %v5975, %v5789
      %v5977 = vadd.f32 %v5976, %v5790
      %v5978 = vadd.f32 %v5977, %v5791
      %v5979 = vadd.f32 %v5978, %v5792
      %v5980 = vadd.f32 %v5979, %v5793
      %v5981 = vadd.f32 %v5980, %v5794
      %v5982 = vrot.slane %v5981, 4
      %v5983 = vadd.f32 %v5981, %v5982
      %v5984 = vrot.slane %v5983, 2
      %v5985 = vadd.f32 %v5983, %v5984
      %v5986 = vrot.slane %v5985, 1
      %v5987 = vadd.f32 %v5985, %v5986
      %v5988 = vadd.f32 %v5795, %v5796
      %v5989 = vadd.f32 %v5988, %v5797
      %v5990 = vadd.f32 %v5989, %v5798
      %v5991 = vadd.f32 %v5990, %v5799
      %v5992 = vadd.f32 %v5991, %v5800
      %v5993 = vadd.f32 %v5992, %v5801
      %v5994 = vadd.f32 %v5993, %v5802
      %v5995 = vrot.slane %v5994, 4
      %v5996 = vadd.f32 %v5994, %v5995
      %v5997 = vrot.slane %v5996, 2
      %v5998 = vadd.f32 %v5996, %v5997
      %v5999 = vrot.slane %v5998, 1
      %v6000 = vadd.f32 %v5998, %v5999
      %v6001 = vadd.f32 %v5803, %v5804
      %v6002 = vadd.f32 %v6001, %v5805
      %v6003 = vadd.f32 %v6002, %v5806
      %v6004 = vadd.f32 %v6003, %v5807
      %v6005 = vadd.f32 %v6004, %v5808
      %v6006 = vadd.f32 %v6005, %v5809
      %v6007 = vadd.f32 %v6006, %v5810
      %v6008 = vrot.slane %v6007, 4
      %v6009 = vadd.f32 %v6007, %v6008
      %v6010 = vrot.slane %v6009, 2
      %v6011 = vadd.f32 %v6009, %v6010
      %v6012 = vrot.slane %v6011, 1
      %v6013 = vadd.f32 %v6011, %v6012
      %v6014 = vadd.f32 %v5811, %v5812
      %v6015 = vadd.f32 %v6014, %v5813
      %v6016 = vadd.f32 %v6015, %v5814
      %v6017 = vadd.f32 %v6016, %v5815
      %v6018 = vadd.f32 %v6017, %v5816
      %v6019 = vadd.f32 %v6018, %v5817
      %v6020 = vadd.f32 %v6019, %v5818
      %v6021 = vrot.slane %v6020, 4
      %v6022 = vadd.f32 %v6020, %v6021
      %v6023 = vrot.slane %v6022, 2
      %v6024 = vadd.f32 %v6022, %v6023
      %v6025 = vrot.slane %v6024, 1
      %v6026 = vadd.f32 %v6024, %v6025
      %v6027 = vadd.f32 %v4618, %v5831
      %v6028 = vadd.f32 %v4619, %v5844
      %v6029 = vadd.f32 %v4620, %v5857
      %v6030 = vadd.f32 %v4621, %v5870
      %v6031 = vadd.f32 %v4622, %v5883
      %v6032 = vadd.f32 %v4623, %v5896
      %v6033 = vadd.f32 %v4624, %v5909
      %v6034 = vadd.f32 %v4625, %v5922
      %v6035 = vadd.f32 %v4626, %v5935
      %v6036 = vadd.f32 %v4627, %v5948
      %v6037 = vadd.f32 %v4628, %v5961
      %v6038 = vadd.f32 %v4629, %v5974
      %v6039 = vadd.f32 %v4630, %v5987
      %v6040 = vadd.f32 %v4631, %v6000
      %v6041 = vadd.f32 %v4632, %v6013
      %v6042 = vadd.f32 %v4633, %v6026
      %v6043 = vpack.c.bf16 %v6027, %v6027
      %v6044 = vpack.c.bf16 %v6028, %v6028
      %v6045 = vpack.c.bf16 %v6029, %v6029
      %v6046 = vpack.c.bf16 %v6030, %v6030
      %v6047 = vpack.c.bf16 %v6031, %v6031
      %v6048 = vpack.c.bf16 %v6032, %v6032
      %v6049 = vpack.c.bf16 %v6033, %v6033
      %v6050 = vpack.c.bf16 %v6034, %v6034
      %v6051 = vpack.c.bf16 %v6035, %v6035
      %v6052 = vpack.c.bf16 %v6036, %v6036
      %v6053 = vpack.c.bf16 %v6037, %v6037
      %v6054 = vpack.c.bf16 %v6038, %v6038
      %v6055 = vpack.c.bf16 %v6039, %v6039
      %v6056 = vpack.c.bf16 %v6040, %v6040
      %v6057 = vpack.c.bf16 %v6041, %v6041
      %v6058 = vpack.c.bf16 %v6042, %v6042
      %v6059 = vld [vmem:[%s321] sm:$0xf]
      %v6060 = vld [vmem:[%s321 + $0x4] sm:$0xf]
      %v6061 = vld [vmem:[%s321 + $0x8] sm:$0xf]
      %v6062 = vld [vmem:[%s321 + $0xc] sm:$0xf]
      %v6063 = vld [vmem:[%s321 + $0x10] sm:$0xf]
      %v6064 = vld [vmem:[%s321 + $0x14] sm:$0xf]
      %v6065 = vld [vmem:[%s321 + $0x18] sm:$0xf]
      %v6066 = vld [vmem:[%s321 + $0x1c] sm:$0xf]
      %v6067 = vld [vmem:[%s321 + $0x20] sm:$0xf]
      %v6068 = vld [vmem:[%s321 + $0x24] sm:$0xf]
      %v6069 = vld [vmem:[%s321 + $0x28] sm:$0xf]
      %v6070 = vld [vmem:[%s321 + $0x2c] sm:$0xf]
      %v6071 = vld [vmem:[%s321 + $0x30] sm:$0xf]
      %v6072 = vld [vmem:[%s321 + $0x34] sm:$0xf]
      %v6073 = vld [vmem:[%s321 + $0x38] sm:$0xf]
      %v6074 = vld [vmem:[%s321 + $0x3c] sm:$0xf]
      %v6075 = vld [vmem:[%s324] sm:$0x1]
      %v6077 = vlaneseq
      %v6078 = vshrl.u32 %v6077, 7
      %v6079 = vsub.s32 0, %v6078
      %v6080 = vrot.slane %v6075, %v6079
      %v6098 = vunpack.c.l.b16 %v6043
      %v6099 = vunpack.c.l.b16 %v6044
      %v6100 = vunpack.c.l.b16 %v6045
      %v6101 = vunpack.c.l.b16 %v6046
      %v6102 = vunpack.c.l.b16 %v6047
      %v6103 = vunpack.c.l.b16 %v6048
      %v6104 = vunpack.c.l.b16 %v6049
      %v6105 = vunpack.c.l.b16 %v6050
      %v6106 = vunpack.c.l.b16 %v6051
      %v6107 = vunpack.c.l.b16 %v6052
      %v6108 = vunpack.c.l.b16 %v6053
      %v6109 = vunpack.c.l.b16 %v6054
      %v6110 = vunpack.c.l.b16 %v6055
      %v6111 = vunpack.c.l.b16 %v6056
      %v6112 = vunpack.c.l.b16 %v6057
      %v6113 = vunpack.c.l.b16 %v6058
      %vm6114 = vcmask 1041409
      %v6115 = vsel %vm6114, %v6099, %v6098
      %vm6116 = vcmask 1042434
      %v6117 = vsel %vm6116, %v6100, %v6115
      %vm6118 = vcmask 1043459
      %v6119 = vsel %vm6118, %v6101, %v6117
      %vm6120 = vcmask 1044484
      %v6121 = vsel %vm6120, %v6102, %v6119
      %vm6122 = vcmask 1045509
      %v6123 = vsel %vm6122, %v6103, %v6121
      %vm6124 = vcmask 1046534
      %v6125 = vsel %vm6124, %v6104, %v6123
      %vm6126 = vcmask 1047559
      %v6127 = vsel %vm6126, %v6105, %v6125
      %v6128 = vsel %vm6114, %v6107, %v6106
      %v6129 = vsel %vm6116, %v6108, %v6128
      %v6130 = vsel %vm6118, %v6109, %v6129
      %v6131 = vsel %vm6120, %v6110, %v6130
      %v6132 = vsel %vm6122, %v6111, %v6131
      %v6133 = vsel %vm6124, %v6112, %v6132
      %v6134 = vsel %vm6126, %v6113, %v6133
      %v6135 = vpack.c.b16 %v6134, %v6127
      %v6153 = vunpack.c.l.b16 %v6059
      %v6154 = vunpack.c.l.b16 %v6060
      %v6155 = vunpack.c.l.b16 %v6061
      %v6156 = vunpack.c.l.b16 %v6062
      %v6157 = vunpack.c.l.b16 %v6063
      %v6158 = vunpack.c.l.b16 %v6064
      %v6159 = vunpack.c.l.b16 %v6065
      %v6160 = vunpack.c.l.b16 %v6066
      %v6161 = vunpack.c.l.b16 %v6067
      %v6162 = vunpack.c.l.b16 %v6068
      %v6163 = vunpack.c.l.b16 %v6069
      %v6164 = vunpack.c.l.b16 %v6070
      %v6165 = vunpack.c.l.b16 %v6071
      %v6166 = vunpack.c.l.b16 %v6072
      %v6167 = vunpack.c.l.b16 %v6073
      %v6168 = vunpack.c.l.b16 %v6074
      %v6169 = vpack.c.b16 %v6154, %v6153
      %v6170 = vpack.c.b16 %v6156, %v6155
      %v6171 = vpack.c.b16 %v6158, %v6157
      %v6172 = vpack.c.b16 %v6160, %v6159
      %v6173 = vpack.c.b16 %v6162, %v6161
      %v6174 = vpack.c.b16 %v6164, %v6163
      %v6175 = vpack.c.b16 %v6166, %v6165
      %v6176 = vpack.c.b16 %v6168, %v6167
      %6185 = vmatprep.subr.bf16.mxu0 0
      %6186 = vmatpush1.bf16.msra.mxu0 %v6169
      %6187 = vmatprep.subr.bf16.mxu0 0
      %6188 = vmatpush1.bf16.msra.mxu0 %v6170
      %6189 = vmatprep.subr.bf16.mxu0 0
      %6190 = vmatpush1.bf16.msra.mxu0 %v6171
      %6191 = vmatprep.subr.bf16.mxu0 0
      %6192 = vmatpush1.bf16.msra.mxu0 %v6172
      %6193 = vmatprep.subr.bf16.mxu0 0
      %6194 = vmatpush1.bf16.msra.mxu0 %v6173
      %6195 = vmatprep.subr.bf16.mxu0 0
      %6196 = vmatpush1.bf16.msra.mxu0 %v6174
      %6197 = vmatprep.subr.bf16.mxu0 0
      %6198 = vmatpush1.bf16.msra.mxu0 %v6175
      %6199 = vmatprep.subr.bf16.mxu0 0
      %6200 = vmatpush1.bf16.msra.mxu0 %v6176
      %6201 = vmatprep.subr.bf16.mxu0 0
      %6202 = vmatpush1.bf16.msra.mxu0 0
      %6203 = vmatprep.subr.bf16.mxu0 0
      %6204 = vmatpush1.bf16.msra.mxu0 0
      %6205 = vmatprep.subr.bf16.mxu0 0
      %6206 = vmatpush1.bf16.msra.mxu0 0
      %6207 = vmatprep.subr.bf16.mxu0 0
      %6208 = vmatpush1.bf16.msra.mxu0 0
      %6209 = vmatprep.subr.bf16.mxu0 0
      %6210 = vmatpush1.bf16.msra.mxu0 0
      %6211 = vmatprep.subr.bf16.mxu0 0
      %6212 = vmatpush1.bf16.msra.mxu0 0
      %6213 = vmatprep.subr.bf16.mxu0 0
      %6214 = vmatpush1.bf16.msra.mxu0 0
      %6215 = vmatprep.subr.bf16.mxu0 0
      %6216 = vmatpush1.bf16.msra.mxu0 0
      %6217 = vmatprep.mubr.bf16.mxu0 0
      %6218 = vmatmul.mubr.bf16.gmra.mrb[0].mxu0 %v6135
      %v6219 = vpop.f32.mrb[0].mxu0
      %v6220 = vadd.f32 %v6080, %v6219
      %v6221 = vpop.f32.mrb[0].mxu0
      %v6222 = vpop.f32.mrb[0].mxu0
      %v6223 = vadd.f32 %v6080, %v6222
      %v6224 = vpop.f32.mrb[0].mxu0
      %6225 = vdwg.mxu0
      %6226 = vst [vmem:[%s333] sm:$0xff] %v6220
      %6227 = vst [vmem:[%s333 + $0x8] sm:$0xff] %v6223
      %s6228 = smul.u32 2, %s21
      %p6229 = scmp.lt.s32.totalorder %s20, 1
      %s6230 = scalar_select %p6229, %s20, 1
      %p6231 = scmp.lt.s32.totalorder %s6228, 1
      %s6232 = scalar_select %p6231, %s6228, 1
      %s6233 = smul.addr %s6230, 2
      %s6234 = sadd.s32 %s6232, %s6233
      %s6235 = smul.addr %s6234, 8
      %s6236 = scalar_lea.vmem %s5, %s6235
      // Predicated region
      $region41: #{multiview_stack_forward.1} parent=39 // pred_check
        %p6237 = pneg %p180
      $region42: #{multiview_stack_forward.1} parent=39 // pred_check_branch
        %6239 = sbr.rel (%p6237) target = $region44
      $region43: #{multiview_stack_forward.1} parent=39 // pred_region
        %s6240 = smul.u32 2, %s21
      $region44: #{multiview_stack_forward.1} parent=39 // pred_fallthru
        _
    $region40: #{multiview_stack_forward.1} parent=5 // pred_fallthru
      _
    %p6241 = scmp.le.s32.totalorder 2, %s11
    // Predicated region
    $region45: #{multiview_stack_forward.1} parent=5 // pred_check
      %p6242 = pneg %p6241
    $region46: #{multiview_stack_forward.1} parent=5 // pred_check_branch
      %6244 = sbr.rel (%p6242) target = $region48
    $region47: #{multiview_stack_forward.1} parent=5 // pred_region
      %s6245 = ssub.s32 %s11, 2
      // Predicated region
      $region49: #{multiview_stack_forward.1} parent=47 // pred_check
        %p6246 = pneg %p186
      $region50: #{multiview_stack_forward.1} parent=47 // pred_check_branch
        %6248 = sbr.rel (%p6246) target = $region52
      $region51: #{multiview_stack_forward.1} parent=47 // pred_region
        %s6249 = smul.u32 2, %s23
        %p6250 = scmp.lt.s32.totalorder %s22, 1
        %s6251 = scalar_select %p6250, %s22, 1
        %p6252 = scmp.lt.s32.totalorder %s6249, 1
        %s6253 = scalar_select %p6252, %s6249, 1
        %s6254 = smul.addr %s6251, 2
        %s6255 = sadd.s32 %s6253, %s6254
        %s6256 = smul.addr %s6255, 8
        %s6257 = scalar_lea.vmem %s5, %s6256
      $region52: #{multiview_stack_forward.1} parent=47 // pred_fallthru
        _
    $region48: #{multiview_stack_forward.1} parent=5 // pred_fallthru
      _
  $region6: #{multiview_stack_forward.1} parent=0 // loop_footer
    %s15 = sadd.s32 1, %s11
  $region7: #{multiview_stack_forward.1} parent=0 // loop_footer_branch
    %10 = sbr.rel target = $region3
  $region8: #{multiview_stack_forward.1} parent=0 // loop_exit
    _

</llo_original>
